<compile_context>
chip_gen: v6e
topology: v6e:2x2x1
jax: 0.10.0
libtpu: 0.0.40
codegen_flags: <defaults>
</compile_context>

<pallas_src>
import functools

import jax
import jax.numpy as jnp
from jax import lax
from jax.experimental import pallas as pl
from jax.experimental.pallas import tpu as pltpu


def _round_up(x, m):
    return ((x + m - 1) // m) * m


def _conv3d_lrelu_kernel(x_ref, w_ref, b_ref, o_ref, *, D, H, W, C_in, C_out_p, slope):
    # x_ref: (1, D+2, H+2, W+2, C_in)  f32  -- full padded volume for one batch
    # w_ref: (27*C_in, C_out_p)        bf16 -- folded weights, rows ordered (kd,kh,kw,c)
    # b_ref: (1, C_out_p)              f32
    # o_ref: (1, D, H*W, C_out_p)      out dtype, lane-dense slab
    def depth_step(d, carry):
        xs = x_ref[0, pl.ds(d, 3)]  # (3, H+2, W+2, C_in) -- one dynamic slice per d
        cols = []
        for kd in range(3):
            for kh in range(3):
                for kw in range(3):
                    cols.append(xs[kd, kh:kh + H, kw:kw + W, :].reshape(H * W, C_in))
        # im2col slab; column order matches the (kd,kh,kw,c) weight reshape.
        slab = jnp.concatenate(cols, axis=-1).astype(jnp.bfloat16)      # (H*W, 27*C_in)
        acc = jnp.dot(slab, w_ref[...], preferred_element_type=jnp.float32)
        y = acc + b_ref[...]
        y = jnp.where(y > 0, y, slope * y)                              # LeakyReLU(0.1)
        o_ref[0, pl.ds(d, 1)] = y.reshape(1, H * W, C_out_p).astype(o_ref.dtype)
        return carry

    lax.fori_loop(0, D, depth_step, 0, unroll=(D <= 8))


def conv3d_block(x_ncdhw, w_oidhw, bias, *, slope=0.1):
    """Conv3d(k=3, s=1, padding='same') + LeakyReLU(0.1), PyTorch NCDHW semantics."""
    N, C_in, D, H, W = x_ncdhw.shape
    C_out = w_oidhw.shape[0]
    C_out_p = _round_up(max(C_out, 128), 128)
    Hp, Wp = H + 2, W + 2
    K = 27 * C_in

    # Glue (plain JAX): layout change, explicit 'same' halo, weight folding/padding.
    # TODO(synk): for large volumes, replace the jnp.pad copy + full-volume resident
    # input block with a halo-blocked D pipeline (manual double-buffered DMA from
    # memory_space=pl.ANY) so VMEM stays bounded on v7x and pad traffic disappears.
    x = jnp.transpose(x_ncdhw, (0, 2, 3, 4, 1))                           # NDHWC
    x_pad = jnp.pad(x, ((0, 0), (1, 1), (1, 1), (1, 1), (0, 0)))
    w2d = jnp.transpose(w_oidhw, (2, 3, 4, 1, 0)).reshape(K, C_out)       # (27*C_in, C_out)
    w2d = jnp.pad(w2d, ((0, 0), (0, C_out_p - C_out))).astype(jnp.bfloat16)
    b2 = jnp.pad(bias, (0, C_out_p - C_out)).reshape(1, C_out_p).astype(jnp.float32)

    kernel = functools.partial(
        _conv3d_lrelu_kernel, D=D, H=H, W=W, C_in=C_in, C_out_p=C_out_p, slope=slope)

    x_bytes = (D + 2) * Hp * Wp * C_in * x_pad.dtype.itemsize
    o_bytes = D * H * W * C_out_p * jnp.dtype(x_ncdhw.dtype).itemsize
    vmem_bytes = 2 * (x_bytes + o_bytes) + 2 * (w2d.size * 2 + C_out_p * 4) + (8 << 20)
    vmem_limit = int(min(max(vmem_bytes, 32 << 20), 100 << 20))

    out = pl.pallas_call(
        kernel,
        out_shape=jax.ShapeDtypeStruct((N, D, H * W, C_out_p), x_ncdhw.dtype),
        grid_spec=pltpu.PrefetchScalarGridSpec(
            num_scalar_prefetch=0,
            grid=(N,),
            in_specs=[
                # full padded volume for batch n
                pl.BlockSpec((1, D + 2, Hp, Wp, C_in), lambda n: (n, 0, 0, 0, 0)),
                # folded 2-D weight tile, resident
                pl.BlockSpec((K, C_out_p), lambda n: (0, 0)),
                # bias, resident
                pl.BlockSpec((1, C_out_p), lambda n: (0, 0)),
            ],
            out_specs=pl.BlockSpec((1, D, H * W, C_out_p), lambda n: (n, 0, 0, 0)),
        ),
        compiler_params=pltpu.CompilerParams(
            dimension_semantics=("parallel",),
            vmem_limit_bytes=vmem_limit,
        ),
    )(x_pad, w2d, b2)

    out = out[..., :C_out].reshape(N, D, H, W, C_out)
    return jnp.transpose(out, (0, 4, 1, 2, 3))  # back to NCDHW


def _reference(x_ncdhw, w_oidhw, bias, slope=0.1):
    y = lax.conv_general_dilated(
        x_ncdhw, w_oidhw,
        window_strides=(1, 1, 1), padding="SAME",
        dimension_numbers=("NCDHW", "OIDHW", "NCDHW"),
    )
    y = y + bias.reshape(1, -1, 1, 1, 1)
    return jnp.where(y > 0, y, slope * y)


if __name__ == "__main__":
    # Small synthetic problem consistent with Conv3DBlock(channel_in=4, channel_out=8)
    N, C_in, C_out, D, H, W = 2, 4, 8, 4, 8, 8

    key = jax.random.PRNGKey(0)
    kx, kw, kb = jax.random.split(key, 3)

    x = jax.random.normal(kx, (N, C_in, D, H, W), dtype=jnp.float32)

    # Deterministic parameter init (PyTorch-style uniform bound = 1/sqrt(fan_in))
    fan_in = C_in * 3 * 3 * 3
    bound = 1.0 / (fan_in ** 0.5)
    weight = jax.random.uniform(kw, (C_out, C_in, 3, 3, 3),
                                minval=-bound, maxval=bound, dtype=jnp.float32)
    bias = jax.random.uniform(kb, (C_out,), minval=-bound, maxval=bound,
                              dtype=jnp.float32)

    out = conv3d_block(x, weight, bias)
    out = jax.block_until_ready(out)

    ref = _reference(x, weight, bias)
    assert out.shape == (N, C_out, D, H, W), out.shape
    # bf16 matmul operands (f32 accumulation) -> relaxed tolerance.
    assert jnp.allclose(out, ref, rtol=2e-2, atol=2e-2), float(jnp.max(jnp.abs(out - ref)))

    print("KERNEL_OK")
</pallas_src>

<mosaic_0001>
module attributes {stable_mosaic.version = 11 : i64} {
  func.func @_conv3d_lrelu_kernel(%arg0: i32, %arg1: memref<1x6x10x10x4xf32, #tpu.memory_space<vmem>>, %arg2: memref<108x128xbf16, #tpu.memory_space<vmem>>, %arg3: memref<1x128xf32, #tpu.memory_space<vmem>>, %arg4: memref<1x4x64x128xf32, #tpu.memory_space<vmem>>) attributes {dimension_semantics = [#tpu.dimension_semantics<parallel>], iteration_bounds = array<i64: 2>, scalar_prefetch = 0 : i64, scratch_operands = 0 : i64, tpu.core_type = #tpu.core_type<tc>, window_params = [{transform_indices = @transform_0, window_bounds = array<i64: 1, 6, 10, 10, 4>}, {pipeline_mode = #tpu.pipeline_mode<synchronous>, transform_indices = @transform_1, window_bounds = array<i64: 108, 128>}, {pipeline_mode = #tpu.pipeline_mode<synchronous>, transform_indices = @transform_2, window_bounds = array<i64: 1, 128>}, {transform_indices = @transform_3, window_bounds = array<i64: 1, 4, 64, 128>}]} {
    %c0_i32 = arith.constant 0 : i32
    %c0 = arith.constant 0 : index
    %0 = arith.index_cast %c0_i32 : i32 to index
    %c0_0 = arith.constant 0 : index
    %c0_1 = arith.constant 0 : index
    %c0_2 = arith.constant 0 : index
    %1 = vector.load %arg1[%c0, %0, %c0_0, %c0_1, %c0_2] : memref<1x6x10x10x4xf32, #tpu.memory_space<vmem>>, vector<1x3x10x10x4xf32>
    %2 = vector.shape_cast %1 : vector<1x3x10x10x4xf32> to vector<3x10x10x4xf32>
    %3 = vector.extract_strided_slice %2 {offsets = [0, 0, 0, 0], sizes = [1, 8, 8, 4], strides = [1, 1, 1, 1]} : vector<3x10x10x4xf32> to vector<1x8x8x4xf32>
    %4 = vector.shape_cast %3 : vector<1x8x8x4xf32> to vector<8x8x4xf32>
    %5 = vector.shape_cast %4 : vector<8x8x4xf32> to vector<64x4xf32>
    %6 = vector.extract_strided_slice %2 {offsets = [0, 0, 1, 0], sizes = [1, 8, 8, 4], strides = [1, 1, 1, 1]} : vector<3x10x10x4xf32> to vector<1x8x8x4xf32>
    %7 = vector.shape_cast %6 : vector<1x8x8x4xf32> to vector<8x8x4xf32>
    %8 = vector.shape_cast %7 : vector<8x8x4xf32> to vector<64x4xf32>
    %9 = vector.extract_strided_slice %2 {offsets = [0, 0, 2, 0], sizes = [1, 8, 8, 4], strides = [1, 1, 1, 1]} : vector<3x10x10x4xf32> to vector<1x8x8x4xf32>
    %10 = vector.shape_cast %9 : vector<1x8x8x4xf32> to vector<8x8x4xf32>
    %11 = vector.shape_cast %10 : vector<8x8x4xf32> to vector<64x4xf32>
    %12 = vector.extract_strided_slice %2 {offsets = [0, 1, 0, 0], sizes = [1, 8, 8, 4], strides = [1, 1, 1, 1]} : vector<3x10x10x4xf32> to vector<1x8x8x4xf32>
    %13 = vector.shape_cast %12 : vector<1x8x8x4xf32> to vector<8x8x4xf32>
    %14 = vector.shape_cast %13 : vector<8x8x4xf32> to vector<64x4xf32>
    %15 = vector.extract_strided_slice %2 {offsets = [0, 1, 1, 0], sizes = [1, 8, 8, 4], strides = [1, 1, 1, 1]} : vector<3x10x10x4xf32> to vector<1x8x8x4xf32>
    %16 = vector.shape_cast %15 : vector<1x8x8x4xf32> to vector<8x8x4xf32>
    %17 = vector.shape_cast %16 : vector<8x8x4xf32> to vector<64x4xf32>
    %18 = vector.extract_strided_slice %2 {offsets = [0, 1, 2, 0], sizes = [1, 8, 8, 4], strides = [1, 1, 1, 1]} : vector<3x10x10x4xf32> to vector<1x8x8x4xf32>
    %19 = vector.shape_cast %18 : vector<1x8x8x4xf32> to vector<8x8x4xf32>
    %20 = vector.shape_cast %19 : vector<8x8x4xf32> to vector<64x4xf32>
    %21 = vector.extract_strided_slice %2 {offsets = [0, 2, 0, 0], sizes = [1, 8, 8, 4], strides = [1, 1, 1, 1]} : vector<3x10x10x4xf32> to vector<1x8x8x4xf32>
    %22 = vector.shape_cast %21 : vector<1x8x8x4xf32> to vector<8x8x4xf32>
    %23 = vector.shape_cast %22 : vector<8x8x4xf32> to vector<64x4xf32>
    %24 = vector.extract_strided_slice %2 {offsets = [0, 2, 1, 0], sizes = [1, 8, 8, 4], strides = [1, 1, 1, 1]} : vector<3x10x10x4xf32> to vector<1x8x8x4xf32>
    %25 = vector.shape_cast %24 : vector<1x8x8x4xf32> to vector<8x8x4xf32>
    %26 = vector.shape_cast %25 : vector<8x8x4xf32> to vector<64x4xf32>
    %27 = vector.extract_strided_slice %2 {offsets = [0, 2, 2, 0], sizes = [1, 8, 8, 4], strides = [1, 1, 1, 1]} : vector<3x10x10x4xf32> to vector<1x8x8x4xf32>
    %28 = vector.shape_cast %27 : vector<1x8x8x4xf32> to vector<8x8x4xf32>
    %29 = vector.shape_cast %28 : vector<8x8x4xf32> to vector<64x4xf32>
    %30 = vector.extract_strided_slice %2 {offsets = [1, 0, 0, 0], sizes = [1, 8, 8, 4], strides = [1, 1, 1, 1]} : vector<3x10x10x4xf32> to vector<1x8x8x4xf32>
    %31 = vector.shape_cast %30 : vector<1x8x8x4xf32> to vector<8x8x4xf32>
    %32 = vector.shape_cast %31 : vector<8x8x4xf32> to vector<64x4xf32>
    %33 = vector.extract_strided_slice %2 {offsets = [1, 0, 1, 0], sizes = [1, 8, 8, 4], strides = [1, 1, 1, 1]} : vector<3x10x10x4xf32> to vector<1x8x8x4xf32>
    %34 = vector.shape_cast %33 : vector<1x8x8x4xf32> to vector<8x8x4xf32>
    %35 = vector.shape_cast %34 : vector<8x8x4xf32> to vector<64x4xf32>
    %36 = vector.extract_strided_slice %2 {offsets = [1, 0, 2, 0], sizes = [1, 8, 8, 4], strides = [1, 1, 1, 1]} : vector<3x10x10x4xf32> to vector<1x8x8x4xf32>
    %37 = vector.shape_cast %36 : vector<1x8x8x4xf32> to vector<8x8x4xf32>
    %38 = vector.shape_cast %37 : vector<8x8x4xf32> to vector<64x4xf32>
    %39 = vector.extract_strided_slice %2 {offsets = [1, 1, 0, 0], sizes = [1, 8, 8, 4], strides = [1, 1, 1, 1]} : vector<3x10x10x4xf32> to vector<1x8x8x4xf32>
    %40 = vector.shape_cast %39 : vector<1x8x8x4xf32> to vector<8x8x4xf32>
    %41 = vector.shape_cast %40 : vector<8x8x4xf32> to vector<64x4xf32>
    %42 = vector.extract_strided_slice %2 {offsets = [1, 1, 1, 0], sizes = [1, 8, 8, 4], strides = [1, 1, 1, 1]} : vector<3x10x10x4xf32> to vector<1x8x8x4xf32>
    %43 = vector.shape_cast %42 : vector<1x8x8x4xf32> to vector<8x8x4xf32>
    %44 = vector.shape_cast %43 : vector<8x8x4xf32> to vector<64x4xf32>
    %45 = vector.extract_strided_slice %2 {offsets = [1, 1, 2, 0], sizes = [1, 8, 8, 4], strides = [1, 1, 1, 1]} : vector<3x10x10x4xf32> to vector<1x8x8x4xf32>
    %46 = vector.shape_cast %45 : vector<1x8x8x4xf32> to vector<8x8x4xf32>
    %47 = vector.shape_cast %46 : vector<8x8x4xf32> to vector<64x4xf32>
    %48 = vector.extract_strided_slice %2 {offsets = [1, 2, 0, 0], sizes = [1, 8, 8, 4], strides = [1, 1, 1, 1]} : vector<3x10x10x4xf32> to vector<1x8x8x4xf32>
    %49 = vector.shape_cast %48 : vector<1x8x8x4xf32> to vector<8x8x4xf32>
    %50 = vector.shape_cast %49 : vector<8x8x4xf32> to vector<64x4xf32>
    %51 = vector.extract_strided_slice %2 {offsets = [1, 2, 1, 0], sizes = [1, 8, 8, 4], strides = [1, 1, 1, 1]} : vector<3x10x10x4xf32> to vector<1x8x8x4xf32>
    %52 = vector.shape_cast %51 : vector<1x8x8x4xf32> to vector<8x8x4xf32>
    %53 = vector.shape_cast %52 : vector<8x8x4xf32> to vector<64x4xf32>
    %54 = vector.extract_strided_slice %2 {offsets = [1, 2, 2, 0], sizes = [1, 8, 8, 4], strides = [1, 1, 1, 1]} : vector<3x10x10x4xf32> to vector<1x8x8x4xf32>
    %55 = vector.shape_cast %54 : vector<1x8x8x4xf32> to vector<8x8x4xf32>
    %56 = vector.shape_cast %55 : vector<8x8x4xf32> to vector<64x4xf32>
    %57 = vector.extract_strided_slice %2 {offsets = [2, 0, 0, 0], sizes = [1, 8, 8, 4], strides = [1, 1, 1, 1]} : vector<3x10x10x4xf32> to vector<1x8x8x4xf32>
    %58 = vector.shape_cast %57 : vector<1x8x8x4xf32> to vector<8x8x4xf32>
    %59 = vector.shape_cast %58 : vector<8x8x4xf32> to vector<64x4xf32>
    %60 = vector.extract_strided_slice %2 {offsets = [2, 0, 1, 0], sizes = [1, 8, 8, 4], strides = [1, 1, 1, 1]} : vector<3x10x10x4xf32> to vector<1x8x8x4xf32>
    %61 = vector.shape_cast %60 : vector<1x8x8x4xf32> to vector<8x8x4xf32>
    %62 = vector.shape_cast %61 : vector<8x8x4xf32> to vector<64x4xf32>
    %63 = vector.extract_strided_slice %2 {offsets = [2, 0, 2, 0], sizes = [1, 8, 8, 4], strides = [1, 1, 1, 1]} : vector<3x10x10x4xf32> to vector<1x8x8x4xf32>
    %64 = vector.shape_cast %63 : vector<1x8x8x4xf32> to vector<8x8x4xf32>
    %65 = vector.shape_cast %64 : vector<8x8x4xf32> to vector<64x4xf32>
    %66 = vector.extract_strided_slice %2 {offsets = [2, 1, 0, 0], sizes = [1, 8, 8, 4], strides = [1, 1, 1, 1]} : vector<3x10x10x4xf32> to vector<1x8x8x4xf32>
    %67 = vector.shape_cast %66 : vector<1x8x8x4xf32> to vector<8x8x4xf32>
    %68 = vector.shape_cast %67 : vector<8x8x4xf32> to vector<64x4xf32>
    %69 = vector.extract_strided_slice %2 {offsets = [2, 1, 1, 0], sizes = [1, 8, 8, 4], strides = [1, 1, 1, 1]} : vector<3x10x10x4xf32> to vector<1x8x8x4xf32>
    %70 = vector.shape_cast %69 : vector<1x8x8x4xf32> to vector<8x8x4xf32>
    %71 = vector.shape_cast %70 : vector<8x8x4xf32> to vector<64x4xf32>
    %72 = vector.extract_strided_slice %2 {offsets = [2, 1, 2, 0], sizes = [1, 8, 8, 4], strides = [1, 1, 1, 1]} : vector<3x10x10x4xf32> to vector<1x8x8x4xf32>
    %73 = vector.shape_cast %72 : vector<1x8x8x4xf32> to vector<8x8x4xf32>
    %74 = vector.shape_cast %73 : vector<8x8x4xf32> to vector<64x4xf32>
    %75 = vector.extract_strided_slice %2 {offsets = [2, 2, 0, 0], sizes = [1, 8, 8, 4], strides = [1, 1, 1, 1]} : vector<3x10x10x4xf32> to vector<1x8x8x4xf32>
    %76 = vector.shape_cast %75 : vector<1x8x8x4xf32> to vector<8x8x4xf32>
    %77 = vector.shape_cast %76 : vector<8x8x4xf32> to vector<64x4xf32>
    %78 = vector.extract_strided_slice %2 {offsets = [2, 2, 1, 0], sizes = [1, 8, 8, 4], strides = [1, 1, 1, 1]} : vector<3x10x10x4xf32> to vector<1x8x8x4xf32>
    %79 = vector.shape_cast %78 : vector<1x8x8x4xf32> to vector<8x8x4xf32>
    %80 = vector.shape_cast %79 : vector<8x8x4xf32> to vector<64x4xf32>
    %81 = vector.extract_strided_slice %2 {offsets = [2, 2, 2, 0], sizes = [1, 8, 8, 4], strides = [1, 1, 1, 1]} : vector<3x10x10x4xf32> to vector<1x8x8x4xf32>
    %82 = vector.shape_cast %81 : vector<1x8x8x4xf32> to vector<8x8x4xf32>
    %83 = vector.shape_cast %82 : vector<8x8x4xf32> to vector<64x4xf32>
    %84 = tpu.concatenate %5, %8, %11, %14, %17, %20, %23, %26, %29, %32, %35, %38, %41, %44, %47, %50 in 1 : vector<64x4xf32>, vector<64x4xf32>, vector<64x4xf32>, vector<64x4xf32>, vector<64x4xf32>, vector<64x4xf32>, vector<64x4xf32>, vector<64x4xf32>, vector<64x4xf32>, vector<64x4xf32>, vector<64x4xf32>, vector<64x4xf32>, vector<64x4xf32>, vector<64x4xf32>, vector<64x4xf32>, vector<64x4xf32> -> vector<64x64xf32>
    %85 = tpu.concatenate %53, %56, %59, %62, %65, %68, %71, %74, %77, %80, %83 in 1 : vector<64x4xf32>, vector<64x4xf32>, vector<64x4xf32>, vector<64x4xf32>, vector<64x4xf32>, vector<64x4xf32>, vector<64x4xf32>, vector<64x4xf32>, vector<64x4xf32>, vector<64x4xf32>, vector<64x4xf32> -> vector<64x44xf32>
    %86 = tpu.concatenate %84, %85 in 1 : vector<64x64xf32>, vector<64x44xf32> -> vector<64x108xf32>
    %87 = arith.truncf %86 : vector<64x108xf32> to vector<64x108xbf16>
    %c0_3 = arith.constant 0 : index
    %c0_4 = arith.constant 0 : index
    %88 = vector.load %arg2[%c0_3, %c0_4] : memref<108x128xbf16, #tpu.memory_space<vmem>>, vector<108x128xbf16>
    %cst = arith.constant dense<0.000000e+00> : vector<64x128xf32>
    %89 = tpu.matmul %87, %88, %cst {dimension_numbers = #tpu.dot_dimension_numbers<[1], [0], [0], [1], [0, 0, 1, 1], [], []>} : vector<64x108xbf16>, vector<108x128xbf16>, vector<64x128xf32> -> vector<64x128xf32>
    %c0_5 = arith.constant 0 : index
    %c0_6 = arith.constant 0 : index
    %90 = vector.load %arg3[%c0_5, %c0_6] : memref<1x128xf32, #tpu.memory_space<vmem>>, vector<1x128xf32>
    %91 = vector.broadcast %90 : vector<1x128xf32> to vector<64x128xf32>
    %92 = arith.addf %89, %91 : vector<64x128xf32>
    %cst_7 = arith.constant 0.000000e+00 : f32
    %93 = vector.broadcast %cst_7 : f32 to vector<64x128xf32>
    %94 = arith.cmpf ogt, %92, %93 : vector<64x128xf32>
    %cst_8 = arith.constant 1.000000e-01 : f32
    %95 = vector.broadcast %cst_8 : f32 to vector<64x128xf32>
    %96 = arith.mulf %95, %92 : vector<64x128xf32>
    %97 = arith.select %94, %92, %96 : vector<64x128xi1>, vector<64x128xf32>
    %98 = vector.shape_cast %97 : vector<64x128xf32> to vector<1x64x128xf32>
    %c0_9 = arith.constant 0 : index
    %99 = arith.index_cast %c0_i32 : i32 to index
    %c0_10 = arith.constant 0 : index
    %c0_11 = arith.constant 0 : index
    %100 = vector.load %arg4[%c0_9, %99, %c0_10, %c0_11] : memref<1x4x64x128xf32, #tpu.memory_space<vmem>>, vector<1x1x64x128xf32>
    %101 = vector.shape_cast %100 : vector<1x1x64x128xf32> to vector<1x64x128xf32>
    %102 = vector.shape_cast %98 : vector<1x64x128xf32> to vector<1x1x64x128xf32>
    tpu.vector_store %arg4[%c0_9, %99, %c0_10, %c0_11], %102 {strides = array<i32>} : memref<1x4x64x128xf32, #tpu.memory_space<vmem>>, vector<1x1x64x128xf32>,
    %c1_i32 = arith.constant 1 : i32
    %c0_12 = arith.constant 0 : index
    %103 = arith.index_cast %c1_i32 : i32 to index
    %c0_13 = arith.constant 0 : index
    %c0_14 = arith.constant 0 : index
    %c0_15 = arith.constant 0 : index
    %104 = vector.load %arg1[%c0_12, %103, %c0_13, %c0_14, %c0_15] : memref<1x6x10x10x4xf32, #tpu.memory_space<vmem>>, vector<1x3x10x10x4xf32>
    %105 = vector.shape_cast %104 : vector<1x3x10x10x4xf32> to vector<3x10x10x4xf32>
    %106 = vector.extract_strided_slice %105 {offsets = [0, 0, 0, 0], sizes = [1, 8, 8, 4], strides = [1, 1, 1, 1]} : vector<3x10x10x4xf32> to vector<1x8x8x4xf32>
    %107 = vector.shape_cast %106 : vector<1x8x8x4xf32> to vector<8x8x4xf32>
    %108 = vector.shape_cast %107 : vector<8x8x4xf32> to vector<64x4xf32>
    %109 = vector.extract_strided_slice %105 {offsets = [0, 0, 1, 0], sizes = [1, 8, 8, 4], strides = [1, 1, 1, 1]} : vector<3x10x10x4xf32> to vector<1x8x8x4xf32>
    %110 = vector.shape_cast %109 : vector<1x8x8x4xf32> to vector<8x8x4xf32>
    %111 = vector.shape_cast %110 : vector<8x8x4xf32> to vector<64x4xf32>
    %112 = vector.extract_strided_slice %105 {offsets = [0, 0, 2, 0], sizes = [1, 8, 8, 4], strides = [1, 1, 1, 1]} : vector<3x10x10x4xf32> to vector<1x8x8x4xf32>
    %113 = vector.shape_cast %112 : vector<1x8x8x4xf32> to vector<8x8x4xf32>
    %114 = vector.shape_cast %113 : vector<8x8x4xf32> to vector<64x4xf32>
    %115 = vector.extract_strided_slice %105 {offsets = [0, 1, 0, 0], sizes = [1, 8, 8, 4], strides = [1, 1, 1, 1]} : vector<3x10x10x4xf32> to vector<1x8x8x4xf32>
    %116 = vector.shape_cast %115 : vector<1x8x8x4xf32> to vector<8x8x4xf32>
    %117 = vector.shape_cast %116 : vector<8x8x4xf32> to vector<64x4xf32>
    %118 = vector.extract_strided_slice %105 {offsets = [0, 1, 1, 0], sizes = [1, 8, 8, 4], strides = [1, 1, 1, 1]} : vector<3x10x10x4xf32> to vector<1x8x8x4xf32>
    %119 = vector.shape_cast %118 : vector<1x8x8x4xf32> to vector<8x8x4xf32>
    %120 = vector.shape_cast %119 : vector<8x8x4xf32> to vector<64x4xf32>
    %121 = vector.extract_strided_slice %105 {offsets = [0, 1, 2, 0], sizes = [1, 8, 8, 4], strides = [1, 1, 1, 1]} : vector<3x10x10x4xf32> to vector<1x8x8x4xf32>
    %122 = vector.shape_cast %121 : vector<1x8x8x4xf32> to vector<8x8x4xf32>
    %123 = vector.shape_cast %122 : vector<8x8x4xf32> to vector<64x4xf32>
    %124 = vector.extract_strided_slice %105 {offsets = [0, 2, 0, 0], sizes = [1, 8, 8, 4], strides = [1, 1, 1, 1]} : vector<3x10x10x4xf32> to vector<1x8x8x4xf32>
    %125 = vector.shape_cast %124 : vector<1x8x8x4xf32> to vector<8x8x4xf32>
    %126 = vector.shape_cast %125 : vector<8x8x4xf32> to vector<64x4xf32>
    %127 = vector.extract_strided_slice %105 {offsets = [0, 2, 1, 0], sizes = [1, 8, 8, 4], strides = [1, 1, 1, 1]} : vector<3x10x10x4xf32> to vector<1x8x8x4xf32>
    %128 = vector.shape_cast %127 : vector<1x8x8x4xf32> to vector<8x8x4xf32>
    %129 = vector.shape_cast %128 : vector<8x8x4xf32> to vector<64x4xf32>
    %130 = vector.extract_strided_slice %105 {offsets = [0, 2, 2, 0], sizes = [1, 8, 8, 4], strides = [1, 1, 1, 1]} : vector<3x10x10x4xf32> to vector<1x8x8x4xf32>
    %131 = vector.shape_cast %130 : vector<1x8x8x4xf32> to vector<8x8x4xf32>
    %132 = vector.shape_cast %131 : vector<8x8x4xf32> to vector<64x4xf32>
    %133 = vector.extract_strided_slice %105 {offsets = [1, 0, 0, 0], sizes = [1, 8, 8, 4], strides = [1, 1, 1, 1]} : vector<3x10x10x4xf32> to vector<1x8x8x4xf32>
    %134 = vector.shape_cast %133 : vector<1x8x8x4xf32> to vector<8x8x4xf32>
    %135 = vector.shape_cast %134 : vector<8x8x4xf32> to vector<64x4xf32>
    %136 = vector.extract_strided_slice %105 {offsets = [1, 0, 1, 0], sizes = [1, 8, 8, 4], strides = [1, 1, 1, 1]} : vector<3x10x10x4xf32> to vector<1x8x8x4xf32>
    %137 = vector.shape_cast %136 : vector<1x8x8x4xf32> to vector<8x8x4xf32>
    %138 = vector.shape_cast %137 : vector<8x8x4xf32> to vector<64x4xf32>
    %139 = vector.extract_strided_slice %105 {offsets = [1, 0, 2, 0], sizes = [1, 8, 8, 4], strides = [1, 1, 1, 1]} : vector<3x10x10x4xf32> to vector<1x8x8x4xf32>
    %140 = vector.shape_cast %139 : vector<1x8x8x4xf32> to vector<8x8x4xf32>
    %141 = vector.shape_cast %140 : vector<8x8x4xf32> to vector<64x4xf32>
    %142 = vector.extract_strided_slice %105 {offsets = [1, 1, 0, 0], sizes = [1, 8, 8, 4], strides = [1, 1, 1, 1]} : vector<3x10x10x4xf32> to vector<1x8x8x4xf32>
    %143 = vector.shape_cast %142 : vector<1x8x8x4xf32> to vector<8x8x4xf32>
    %144 = vector.shape_cast %143 : vector<8x8x4xf32> to vector<64x4xf32>
    %145 = vector.extract_strided_slice %105 {offsets = [1, 1, 1, 0], sizes = [1, 8, 8, 4], strides = [1, 1, 1, 1]} : vector<3x10x10x4xf32> to vector<1x8x8x4xf32>
    %146 = vector.shape_cast %145 : vector<1x8x8x4xf32> to vector<8x8x4xf32>
    %147 = vector.shape_cast %146 : vector<8x8x4xf32> to vector<64x4xf32>
    %148 = vector.extract_strided_slice %105 {offsets = [1, 1, 2, 0], sizes = [1, 8, 8, 4], strides = [1, 1, 1, 1]} : vector<3x10x10x4xf32> to vector<1x8x8x4xf32>
    %149 = vector.shape_cast %148 : vector<1x8x8x4xf32> to vector<8x8x4xf32>
    %150 = vector.shape_cast %149 : vector<8x8x4xf32> to vector<64x4xf32>
    %151 = vector.extract_strided_slice %105 {offsets = [1, 2, 0, 0], sizes = [1, 8, 8, 4], strides = [1, 1, 1, 1]} : vector<3x10x10x4xf32> to vector<1x8x8x4xf32>
    %152 = vector.shape_cast %151 : vector<1x8x8x4xf32> to vector<8x8x4xf32>
    %153 = vector.shape_cast %152 : vector<8x8x4xf32> to vector<64x4xf32>
    %154 = vector.extract_strided_slice %105 {offsets = [1, 2, 1, 0], sizes = [1, 8, 8, 4], strides = [1, 1, 1, 1]} : vector<3x10x10x4xf32> to vector<1x8x8x4xf32>
    %155 = vector.shape_cast %154 : vector<1x8x8x4xf32> to vector<8x8x4xf32>
    %156 = vector.shape_cast %155 : vector<8x8x4xf32> to vector<64x4xf32>
    %157 = vector.extract_strided_slice %105 {offsets = [1, 2, 2, 0], sizes = [1, 8, 8, 4], strides = [1, 1, 1, 1]} : vector<3x10x10x4xf32> to vector<1x8x8x4xf32>
    %158 = vector.shape_cast %157 : vector<1x8x8x4xf32> to vector<8x8x4xf32>
    %159 = vector.shape_cast %158 : vector<8x8x4xf32> to vector<64x4xf32>
    %160 = vector.extract_strided_slice %105 {offsets = [2, 0, 0, 0], sizes = [1, 8, 8, 4], strides = [1, 1, 1, 1]} : vector<3x10x10x4xf32> to vector<1x8x8x4xf32>
    %161 = vector.shape_cast %160 : vector<1x8x8x4xf32> to vector<8x8x4xf32>
    %162 = vector.shape_cast %161 : vector<8x8x4xf32> to vector<64x4xf32>
    %163 = vector.extract_strided_slice %105 {offsets = [2, 0, 1, 0], sizes = [1, 8, 8, 4], strides = [1, 1, 1, 1]} : vector<3x10x10x4xf32> to vector<1x8x8x4xf32>
    %164 = vector.shape_cast %163 : vector<1x8x8x4xf32> to vector<8x8x4xf32>
    %165 = vector.shape_cast %164 : vector<8x8x4xf32> to vector<64x4xf32>
    %166 = vector.extract_strided_slice %105 {offsets = [2, 0, 2, 0], sizes = [1, 8, 8, 4], strides = [1, 1, 1, 1]} : vector<3x10x10x4xf32> to vector<1x8x8x4xf32>
    %167 = vector.shape_cast %166 : vector<1x8x8x4xf32> to vector<8x8x4xf32>
    %168 = vector.shape_cast %167 : vector<8x8x4xf32> to vector<64x4xf32>
    %169 = vector.extract_strided_slice %105 {offsets = [2, 1, 0, 0], sizes = [1, 8, 8, 4], strides = [1, 1, 1, 1]} : vector<3x10x10x4xf32> to vector<1x8x8x4xf32>
    %170 = vector.shape_cast %169 : vector<1x8x8x4xf32> to vector<8x8x4xf32>
    %171 = vector.shape_cast %170 : vector<8x8x4xf32> to vector<64x4xf32>
    %172 = vector.extract_strided_slice %105 {offsets = [2, 1, 1, 0], sizes = [1, 8, 8, 4], strides = [1, 1, 1, 1]} : vector<3x10x10x4xf32> to vector<1x8x8x4xf32>
    %173 = vector.shape_cast %172 : vector<1x8x8x4xf32> to vector<8x8x4xf32>
    %174 = vector.shape_cast %173 : vector<8x8x4xf32> to vector<64x4xf32>
    %175 = vector.extract_strided_slice %105 {offsets = [2, 1, 2, 0], sizes = [1, 8, 8, 4], strides = [1, 1, 1, 1]} : vector<3x10x10x4xf32> to vector<1x8x8x4xf32>
    %176 = vector.shape_cast %175 : vector<1x8x8x4xf32> to vector<8x8x4xf32>
    %177 = vector.shape_cast %176 : vector<8x8x4xf32> to vector<64x4xf32>
    %178 = vector.extract_strided_slice %105 {offsets = [2, 2, 0, 0], sizes = [1, 8, 8, 4], strides = [1, 1, 1, 1]} : vector<3x10x10x4xf32> to vector<1x8x8x4xf32>
    %179 = vector.shape_cast %178 : vector<1x8x8x4xf32> to vector<8x8x4xf32>
    %180 = vector.shape_cast %179 : vector<8x8x4xf32> to vector<64x4xf32>
    %181 = vector.extract_strided_slice %105 {offsets = [2, 2, 1, 0], sizes = [1, 8, 8, 4], strides = [1, 1, 1, 1]} : vector<3x10x10x4xf32> to vector<1x8x8x4xf32>
    %182 = vector.shape_cast %181 : vector<1x8x8x4xf32> to vector<8x8x4xf32>
    %183 = vector.shape_cast %182 : vector<8x8x4xf32> to vector<64x4xf32>
    %184 = vector.extract_strided_slice %105 {offsets = [2, 2, 2, 0], sizes = [1, 8, 8, 4], strides = [1, 1, 1, 1]} : vector<3x10x10x4xf32> to vector<1x8x8x4xf32>
    %185 = vector.shape_cast %184 : vector<1x8x8x4xf32> to vector<8x8x4xf32>
    %186 = vector.shape_cast %185 : vector<8x8x4xf32> to vector<64x4xf32>
    %187 = tpu.concatenate %108, %111, %114, %117, %120, %123, %126, %129, %132, %135, %138, %141, %144, %147, %150, %153 in 1 : vector<64x4xf32>, vector<64x4xf32>, vector<64x4xf32>, vector<64x4xf32>, vector<64x4xf32>, vector<64x4xf32>, vector<64x4xf32>, vector<64x4xf32>, vector<64x4xf32>, vector<64x4xf32>, vector<64x4xf32>, vector<64x4xf32>, vector<64x4xf32>, vector<64x4xf32>, vector<64x4xf32>, vector<64x4xf32> -> vector<64x64xf32>
    %188 = tpu.concatenate %156, %159, %162, %165, %168, %171, %174, %177, %180, %183, %186 in 1 : vector<64x4xf32>, vector<64x4xf32>, vector<64x4xf32>, vector<64x4xf32>, vector<64x4xf32>, vector<64x4xf32>, vector<64x4xf32>, vector<64x4xf32>, vector<64x4xf32>, vector<64x4xf32>, vector<64x4xf32> -> vector<64x44xf32>
    %189 = tpu.concatenate %187, %188 in 1 : vector<64x64xf32>, vector<64x44xf32> -> vector<64x108xf32>
    %190 = arith.truncf %189 : vector<64x108xf32> to vector<64x108xbf16>
    %c0_16 = arith.constant 0 : index
    %c0_17 = arith.constant 0 : index
    %191 = vector.load %arg2[%c0_16, %c0_17] : memref<108x128xbf16, #tpu.memory_space<vmem>>, vector<108x128xbf16>
    %cst_18 = arith.constant dense<0.000000e+00> : vector<64x128xf32>
    %192 = tpu.matmul %190, %191, %cst_18 {dimension_numbers = #tpu.dot_dimension_numbers<[1], [0], [0], [1], [0, 0, 1, 1], [], []>} : vector<64x108xbf16>, vector<108x128xbf16>, vector<64x128xf32> -> vector<64x128xf32>
    %c0_19 = arith.constant 0 : index
    %c0_20 = arith.constant 0 : index
    %193 = vector.load %arg3[%c0_19, %c0_20] : memref<1x128xf32, #tpu.memory_space<vmem>>, vector<1x128xf32>
    %194 = vector.broadcast %193 : vector<1x128xf32> to vector<64x128xf32>
    %195 = arith.addf %192, %194 : vector<64x128xf32>
    %cst_21 = arith.constant 0.000000e+00 : f32
    %196 = vector.broadcast %cst_21 : f32 to vector<64x128xf32>
    %197 = arith.cmpf ogt, %195, %196 : vector<64x128xf32>
    %cst_22 = arith.constant 1.000000e-01 : f32
    %198 = vector.broadcast %cst_22 : f32 to vector<64x128xf32>
    %199 = arith.mulf %198, %195 : vector<64x128xf32>
    %200 = arith.select %197, %195, %199 : vector<64x128xi1>, vector<64x128xf32>
    %201 = vector.shape_cast %200 : vector<64x128xf32> to vector<1x64x128xf32>
    %c0_23 = arith.constant 0 : index
    %202 = arith.index_cast %c1_i32 : i32 to index
    %c0_24 = arith.constant 0 : index
    %c0_25 = arith.constant 0 : index
    %203 = vector.load %arg4[%c0_23, %202, %c0_24, %c0_25] : memref<1x4x64x128xf32, #tpu.memory_space<vmem>>, vector<1x1x64x128xf32>
    %204 = vector.shape_cast %203 : vector<1x1x64x128xf32> to vector<1x64x128xf32>
    %205 = vector.shape_cast %201 : vector<1x64x128xf32> to vector<1x1x64x128xf32>
    tpu.vector_store %arg4[%c0_23, %202, %c0_24, %c0_25], %205 {strides = array<i32>} : memref<1x4x64x128xf32, #tpu.memory_space<vmem>>, vector<1x1x64x128xf32>,
    %c2_i32 = arith.constant 2 : i32
    %c0_26 = arith.constant 0 : index
    %206 = arith.index_cast %c2_i32 : i32 to index
    %c0_27 = arith.constant 0 : index
    %c0_28 = arith.constant 0 : index
    %c0_29 = arith.constant 0 : index
    %207 = vector.load %arg1[%c0_26, %206, %c0_27, %c0_28, %c0_29] : memref<1x6x10x10x4xf32, #tpu.memory_space<vmem>>, vector<1x3x10x10x4xf32>
    %208 = vector.shape_cast %207 : vector<1x3x10x10x4xf32> to vector<3x10x10x4xf32>
    %209 = vector.extract_strided_slice %208 {offsets = [0, 0, 0, 0], sizes = [1, 8, 8, 4], strides = [1, 1, 1, 1]} : vector<3x10x10x4xf32> to vector<1x8x8x4xf32>
    %210 = vector.shape_cast %209 : vector<1x8x8x4xf32> to vector<8x8x4xf32>
    %211 = vector.shape_cast %210 : vector<8x8x4xf32> to vector<64x4xf32>
    %212 = vector.extract_strided_slice %208 {offsets = [0, 0, 1, 0], sizes = [1, 8, 8, 4], strides = [1, 1, 1, 1]} : vector<3x10x10x4xf32> to vector<1x8x8x4xf32>
    %213 = vector.shape_cast %212 : vector<1x8x8x4xf32> to vector<8x8x4xf32>
    %214 = vector.shape_cast %213 : vector<8x8x4xf32> to vector<64x4xf32>
    %215 = vector.extract_strided_slice %208 {offsets = [0, 0, 2, 0], sizes = [1, 8, 8, 4], strides = [1, 1, 1, 1]} : vector<3x10x10x4xf32> to vector<1x8x8x4xf32>
    %216 = vector.shape_cast %215 : vector<1x8x8x4xf32> to vector<8x8x4xf32>
    %217 = vector.shape_cast %216 : vector<8x8x4xf32> to vector<64x4xf32>
    %218 = vector.extract_strided_slice %208 {offsets = [0, 1, 0, 0], sizes = [1, 8, 8, 4], strides = [1, 1, 1, 1]} : vector<3x10x10x4xf32> to vector<1x8x8x4xf32>
    %219 = vector.shape_cast %218 : vector<1x8x8x4xf32> to vector<8x8x4xf32>
    %220 = vector.shape_cast %219 : vector<8x8x4xf32> to vector<64x4xf32>
    %221 = vector.extract_strided_slice %208 {offsets = [0, 1, 1, 0], sizes = [1, 8, 8, 4], strides = [1, 1, 1, 1]} : vector<3x10x10x4xf32> to vector<1x8x8x4xf32>
    %222 = vector.shape_cast %221 : vector<1x8x8x4xf32> to vector<8x8x4xf32>
    %223 = vector.shape_cast %222 : vector<8x8x4xf32> to vector<64x4xf32>
    %224 = vector.extract_strided_slice %208 {offsets = [0, 1, 2, 0], sizes = [1, 8, 8, 4], strides = [1, 1, 1, 1]} : vector<3x10x10x4xf32> to vector<1x8x8x4xf32>
    %225 = vector.shape_cast %224 : vector<1x8x8x4xf32> to vector<8x8x4xf32>
    %226 = vector.shape_cast %225 : vector<8x8x4xf32> to vector<64x4xf32>
    %227 = vector.extract_strided_slice %208 {offsets = [0, 2, 0, 0], sizes = [1, 8, 8, 4], strides = [1, 1, 1, 1]} : vector<3x10x10x4xf32> to vector<1x8x8x4xf32>
    %228 = vector.shape_cast %227 : vector<1x8x8x4xf32> to vector<8x8x4xf32>
    %229 = vector.shape_cast %228 : vector<8x8x4xf32> to vector<64x4xf32>
    %230 = vector.extract_strided_slice %208 {offsets = [0, 2, 1, 0], sizes = [1, 8, 8, 4], strides = [1, 1, 1, 1]} : vector<3x10x10x4xf32> to vector<1x8x8x4xf32>
    %231 = vector.shape_cast %230 : vector<1x8x8x4xf32> to vector<8x8x4xf32>
    %232 = vector.shape_cast %231 : vector<8x8x4xf32> to vector<64x4xf32>
    %233 = vector.extract_strided_slice %208 {offsets = [0, 2, 2, 0], sizes = [1, 8, 8, 4], strides = [1, 1, 1, 1]} : vector<3x10x10x4xf32> to vector<1x8x8x4xf32>
    %234 = vector.shape_cast %233 : vector<1x8x8x4xf32> to vector<8x8x4xf32>
    %235 = vector.shape_cast %234 : vector<8x8x4xf32> to vector<64x4xf32>
    %236 = vector.extract_strided_slice %208 {offsets = [1, 0, 0, 0], sizes = [1, 8, 8, 4], strides = [1, 1, 1, 1]} : vector<3x10x10x4xf32> to vector<1x8x8x4xf32>
    %237 = vector.shape_cast %236 : vector<1x8x8x4xf32> to vector<8x8x4xf32>
    %238 = vector.shape_cast %237 : vector<8x8x4xf32> to vector<64x4xf32>
    %239 = vector.extract_strided_slice %208 {offsets = [1, 0, 1, 0], sizes = [1, 8, 8, 4], strides = [1, 1, 1, 1]} : vector<3x10x10x4xf32> to vector<1x8x8x4xf32>
    %240 = vector.shape_cast %239 : vector<1x8x8x4xf32> to vector<8x8x4xf32>
    %241 = vector.shape_cast %240 : vector<8x8x4xf32> to vector<64x4xf32>
    %242 = vector.extract_strided_slice %208 {offsets = [1, 0, 2, 0], sizes = [1, 8, 8, 4], strides = [1, 1, 1, 1]} : vector<3x10x10x4xf32> to vector<1x8x8x4xf32>
    %243 = vector.shape_cast %242 : vector<1x8x8x4xf32> to vector<8x8x4xf32>
    %244 = vector.shape_cast %243 : vector<8x8x4xf32> to vector<64x4xf32>
    %245 = vector.extract_strided_slice %208 {offsets = [1, 1, 0, 0], sizes = [1, 8, 8, 4], strides = [1, 1, 1, 1]} : vector<3x10x10x4xf32> to vector<1x8x8x4xf32>
    %246 = vector.shape_cast %245 : vector<1x8x8x4xf32> to vector<8x8x4xf32>
    %247 = vector.shape_cast %246 : vector<8x8x4xf32> to vector<64x4xf32>
    %248 = vector.extract_strided_slice %208 {offsets = [1, 1, 1, 0], sizes = [1, 8, 8, 4], strides = [1, 1, 1, 1]} : vector<3x10x10x4xf32> to vector<1x8x8x4xf32>
    %249 = vector.shape_cast %248 : vector<1x8x8x4xf32> to vector<8x8x4xf32>
    %250 = vector.shape_cast %249 : vector<8x8x4xf32> to vector<64x4xf32>
    %251 = vector.extract_strided_slice %208 {offsets = [1, 1, 2, 0], sizes = [1, 8, 8, 4], strides = [1, 1, 1, 1]} : vector<3x10x10x4xf32> to vector<1x8x8x4xf32>
    %252 = vector.shape_cast %251 : vector<1x8x8x4xf32> to vector<8x8x4xf32>
    %253 = vector.shape_cast %252 : vector<8x8x4xf32> to vector<64x4xf32>
    %254 = vector.extract_strided_slice %208 {offsets = [1, 2, 0, 0], sizes = [1, 8, 8, 4], strides = [1, 1, 1, 1]} : vector<3x10x10x4xf32> to vector<1x8x8x4xf32>
    %255 = vector.shape_cast %254 : vector<1x8x8x4xf32> to vector<8x8x4xf32>
    %256 = vector.shape_cast %255 : vector<8x8x4xf32> to vector<64x4xf32>
    %257 = vector.extract_strided_slice %208 {offsets = [1, 2, 1, 0], sizes = [1, 8, 8, 4], strides = [1, 1, 1, 1]} : vector<3x10x10x4xf32> to vector<1x8x8x4xf32>
    %258 = vector.shape_cast %257 : vector<1x8x8x4xf32> to vector<8x8x4xf32>
    %259 = vector.shape_cast %258 : vector<8x8x4xf32> to vector<64x4xf32>
    %260 = vector.extract_strided_slice %208 {offsets = [1, 2, 2, 0], sizes = [1, 8, 8, 4], strides = [1, 1, 1, 1]} : vector<3x10x10x4xf32> to vector<1x8x8x4xf32>
    %261 = vector.shape_cast %260 : vector<1x8x8x4xf32> to vector<8x8x4xf32>
    %262 = vector.shape_cast %261 : vector<8x8x4xf32> to vector<64x4xf32>
    %263 = vector.extract_strided_slice %208 {offsets = [2, 0, 0, 0], sizes = [1, 8, 8, 4], strides = [1, 1, 1, 1]} : vector<3x10x10x4xf32> to vector<1x8x8x4xf32>
    %264 = vector.shape_cast %263 : vector<1x8x8x4xf32> to vector<8x8x4xf32>
    %265 = vector.shape_cast %264 : vector<8x8x4xf32> to vector<64x4xf32>
    %266 = vector.extract_strided_slice %208 {offsets = [2, 0, 1, 0], sizes = [1, 8, 8, 4], strides = [1, 1, 1, 1]} : vector<3x10x10x4xf32> to vector<1x8x8x4xf32>
    %267 = vector.shape_cast %266 : vector<1x8x8x4xf32> to vector<8x8x4xf32>
    %268 = vector.shape_cast %267 : vector<8x8x4xf32> to vector<64x4xf32>
    %269 = vector.extract_strided_slice %208 {offsets = [2, 0, 2, 0], sizes = [1, 8, 8, 4], strides = [1, 1, 1, 1]} : vector<3x10x10x4xf32> to vector<1x8x8x4xf32>
    %270 = vector.shape_cast %269 : vector<1x8x8x4xf32> to vector<8x8x4xf32>
    %271 = vector.shape_cast %270 : vector<8x8x4xf32> to vector<64x4xf32>
    %272 = vector.extract_strided_slice %208 {offsets = [2, 1, 0, 0], sizes = [1, 8, 8, 4], strides = [1, 1, 1, 1]} : vector<3x10x10x4xf32> to vector<1x8x8x4xf32>
    %273 = vector.shape_cast %272 : vector<1x8x8x4xf32> to vector<8x8x4xf32>
    %274 = vector.shape_cast %273 : vector<8x8x4xf32> to vector<64x4xf32>
    %275 = vector.extract_strided_slice %208 {offsets = [2, 1, 1, 0], sizes = [1, 8, 8, 4], strides = [1, 1, 1, 1]} : vector<3x10x10x4xf32> to vector<1x8x8x4xf32>
    %276 = vector.shape_cast %275 : vector<1x8x8x4xf32> to vector<8x8x4xf32>
    %277 = vector.shape_cast %276 : vector<8x8x4xf32> to vector<64x4xf32>
    %278 = vector.extract_strided_slice %208 {offsets = [2, 1, 2, 0], sizes = [1, 8, 8, 4], strides = [1, 1, 1, 1]} : vector<3x10x10x4xf32> to vector<1x8x8x4xf32>
    %279 = vector.shape_cast %278 : vector<1x8x8x4xf32> to vector<8x8x4xf32>
    %280 = vector.shape_cast %279 : vector<8x8x4xf32> to vector<64x4xf32>
    %281 = vector.extract_strided_slice %208 {offsets = [2, 2, 0, 0], sizes = [1, 8, 8, 4], strides = [1, 1, 1, 1]} : vector<3x10x10x4xf32> to vector<1x8x8x4xf32>
    %282 = vector.shape_cast %281 : vector<1x8x8x4xf32> to vector<8x8x4xf32>
    %283 = vector.shape_cast %282 : vector<8x8x4xf32> to vector<64x4xf32>
    %284 = vector.extract_strided_slice %208 {offsets = [2, 2, 1, 0], sizes = [1, 8, 8, 4], strides = [1, 1, 1, 1]} : vector<3x10x10x4xf32> to vector<1x8x8x4xf32>
    %285 = vector.shape_cast %284 : vector<1x8x8x4xf32> to vector<8x8x4xf32>
    %286 = vector.shape_cast %285 : vector<8x8x4xf32> to vector<64x4xf32>
    %287 = vector.extract_strided_slice %208 {offsets = [2, 2, 2, 0], sizes = [1, 8, 8, 4], strides = [1, 1, 1, 1]} : vector<3x10x10x4xf32> to vector<1x8x8x4xf32>
    %288 = vector.shape_cast %287 : vector<1x8x8x4xf32> to vector<8x8x4xf32>
    %289 = vector.shape_cast %288 : vector<8x8x4xf32> to vector<64x4xf32>
    %290 = tpu.concatenate %211, %214, %217, %220, %223, %226, %229, %232, %235, %238, %241, %244, %247, %250, %253, %256 in 1 : vector<64x4xf32>, vector<64x4xf32>, vector<64x4xf32>, vector<64x4xf32>, vector<64x4xf32>, vector<64x4xf32>, vector<64x4xf32>, vector<64x4xf32>, vector<64x4xf32>, vector<64x4xf32>, vector<64x4xf32>, vector<64x4xf32>, vector<64x4xf32>, vector<64x4xf32>, vector<64x4xf32>, vector<64x4xf32> -> vector<64x64xf32>
    %291 = tpu.concatenate %259, %262, %265, %268, %271, %274, %277, %280, %283, %286, %289 in 1 : vector<64x4xf32>, vector<64x4xf32>, vector<64x4xf32>, vector<64x4xf32>, vector<64x4xf32>, vector<64x4xf32>, vector<64x4xf32>, vector<64x4xf32>, vector<64x4xf32>, vector<64x4xf32>, vector<64x4xf32> -> vector<64x44xf32>
    %292 = tpu.concatenate %290, %291 in 1 : vector<64x64xf32>, vector<64x44xf32> -> vector<64x108xf32>
    %293 = arith.truncf %292 : vector<64x108xf32> to vector<64x108xbf16>
    %c0_30 = arith.constant 0 : index
    %c0_31 = arith.constant 0 : index
    %294 = vector.load %arg2[%c0_30, %c0_31] : memref<108x128xbf16, #tpu.memory_space<vmem>>, vector<108x128xbf16>
    %cst_32 = arith.constant dense<0.000000e+00> : vector<64x128xf32>
    %295 = tpu.matmul %293, %294, %cst_32 {dimension_numbers = #tpu.dot_dimension_numbers<[1], [0], [0], [1], [0, 0, 1, 1], [], []>} : vector<64x108xbf16>, vector<108x128xbf16>, vector<64x128xf32> -> vector<64x128xf32>
    %c0_33 = arith.constant 0 : index
    %c0_34 = arith.constant 0 : index
    %296 = vector.load %arg3[%c0_33, %c0_34] : memref<1x128xf32, #tpu.memory_space<vmem>>, vector<1x128xf32>
    %297 = vector.broadcast %296 : vector<1x128xf32> to vector<64x128xf32>
    %298 = arith.addf %295, %297 : vector<64x128xf32>
    %cst_35 = arith.constant 0.000000e+00 : f32
    %299 = vector.broadcast %cst_35 : f32 to vector<64x128xf32>
    %300 = arith.cmpf ogt, %298, %299 : vector<64x128xf32>
    %cst_36 = arith.constant 1.000000e-01 : f32
    %301 = vector.broadcast %cst_36 : f32 to vector<64x128xf32>
    %302 = arith.mulf %301, %298 : vector<64x128xf32>
    %303 = arith.select %300, %298, %302 : vector<64x128xi1>, vector<64x128xf32>
    %304 = vector.shape_cast %303 : vector<64x128xf32> to vector<1x64x128xf32>
    %c0_37 = arith.constant 0 : index
    %305 = arith.index_cast %c2_i32 : i32 to index
    %c0_38 = arith.constant 0 : index
    %c0_39 = arith.constant 0 : index
    %306 = vector.load %arg4[%c0_37, %305, %c0_38, %c0_39] : memref<1x4x64x128xf32, #tpu.memory_space<vmem>>, vector<1x1x64x128xf32>
    %307 = vector.shape_cast %306 : vector<1x1x64x128xf32> to vector<1x64x128xf32>
    %308 = vector.shape_cast %304 : vector<1x64x128xf32> to vector<1x1x64x128xf32>
    tpu.vector_store %arg4[%c0_37, %305, %c0_38, %c0_39], %308 {strides = array<i32>} : memref<1x4x64x128xf32, #tpu.memory_space<vmem>>, vector<1x1x64x128xf32>,
    %c3_i32 = arith.constant 3 : i32
    %c0_40 = arith.constant 0 : index
    %309 = arith.index_cast %c3_i32 : i32 to index
    %c0_41 = arith.constant 0 : index
    %c0_42 = arith.constant 0 : index
    %c0_43 = arith.constant 0 : index
    %310 = vector.load %arg1[%c0_40, %309, %c0_41, %c0_42, %c0_43] : memref<1x6x10x10x4xf32, #tpu.memory_space<vmem>>, vector<1x3x10x10x4xf32>
    %311 = vector.shape_cast %310 : vector<1x3x10x10x4xf32> to vector<3x10x10x4xf32>
    %312 = vector.extract_strided_slice %311 {offsets = [0, 0, 0, 0], sizes = [1, 8, 8, 4], strides = [1, 1, 1, 1]} : vector<3x10x10x4xf32> to vector<1x8x8x4xf32>
    %313 = vector.shape_cast %312 : vector<1x8x8x4xf32> to vector<8x8x4xf32>
    %314 = vector.shape_cast %313 : vector<8x8x4xf32> to vector<64x4xf32>
    %315 = vector.extract_strided_slice %311 {offsets = [0, 0, 1, 0], sizes = [1, 8, 8, 4], strides = [1, 1, 1, 1]} : vector<3x10x10x4xf32> to vector<1x8x8x4xf32>
    %316 = vector.shape_cast %315 : vector<1x8x8x4xf32> to vector<8x8x4xf32>
    %317 = vector.shape_cast %316 : vector<8x8x4xf32> to vector<64x4xf32>
    %318 = vector.extract_strided_slice %311 {offsets = [0, 0, 2, 0], sizes = [1, 8, 8, 4], strides = [1, 1, 1, 1]} : vector<3x10x10x4xf32> to vector<1x8x8x4xf32>
    %319 = vector.shape_cast %318 : vector<1x8x8x4xf32> to vector<8x8x4xf32>
    %320 = vector.shape_cast %319 : vector<8x8x4xf32> to vector<64x4xf32>
    %321 = vector.extract_strided_slice %311 {offsets = [0, 1, 0, 0], sizes = [1, 8, 8, 4], strides = [1, 1, 1, 1]} : vector<3x10x10x4xf32> to vector<1x8x8x4xf32>
    %322 = vector.shape_cast %321 : vector<1x8x8x4xf32> to vector<8x8x4xf32>
    %323 = vector.shape_cast %322 : vector<8x8x4xf32> to vector<64x4xf32>
    %324 = vector.extract_strided_slice %311 {offsets = [0, 1, 1, 0], sizes = [1, 8, 8, 4], strides = [1, 1, 1, 1]} : vector<3x10x10x4xf32> to vector<1x8x8x4xf32>
    %325 = vector.shape_cast %324 : vector<1x8x8x4xf32> to vector<8x8x4xf32>
    %326 = vector.shape_cast %325 : vector<8x8x4xf32> to vector<64x4xf32>
    %327 = vector.extract_strided_slice %311 {offsets = [0, 1, 2, 0], sizes = [1, 8, 8, 4], strides = [1, 1, 1, 1]} : vector<3x10x10x4xf32> to vector<1x8x8x4xf32>
    %328 = vector.shape_cast %327 : vector<1x8x8x4xf32> to vector<8x8x4xf32>
    %329 = vector.shape_cast %328 : vector<8x8x4xf32> to vector<64x4xf32>
    %330 = vector.extract_strided_slice %311 {offsets = [0, 2, 0, 0], sizes = [1, 8, 8, 4], strides = [1, 1, 1, 1]} : vector<3x10x10x4xf32> to vector<1x8x8x4xf32>
    %331 = vector.shape_cast %330 : vector<1x8x8x4xf32> to vector<8x8x4xf32>
    %332 = vector.shape_cast %331 : vector<8x8x4xf32> to vector<64x4xf32>
    %333 = vector.extract_strided_slice %311 {offsets = [0, 2, 1, 0], sizes = [1, 8, 8, 4], strides = [1, 1, 1, 1]} : vector<3x10x10x4xf32> to vector<1x8x8x4xf32>
    %334 = vector.shape_cast %333 : vector<1x8x8x4xf32> to vector<8x8x4xf32>
    %335 = vector.shape_cast %334 : vector<8x8x4xf32> to vector<64x4xf32>
    %336 = vector.extract_strided_slice %311 {offsets = [0, 2, 2, 0], sizes = [1, 8, 8, 4], strides = [1, 1, 1, 1]} : vector<3x10x10x4xf32> to vector<1x8x8x4xf32>
    %337 = vector.shape_cast %336 : vector<1x8x8x4xf32> to vector<8x8x4xf32>
    %338 = vector.shape_cast %337 : vector<8x8x4xf32> to vector<64x4xf32>
    %339 = vector.extract_strided_slice %311 {offsets = [1, 0, 0, 0], sizes = [1, 8, 8, 4], strides = [1, 1, 1, 1]} : vector<3x10x10x4xf32> to vector<1x8x8x4xf32>
    %340 = vector.shape_cast %339 : vector<1x8x8x4xf32> to vector<8x8x4xf32>
    %341 = vector.shape_cast %340 : vector<8x8x4xf32> to vector<64x4xf32>
    %342 = vector.extract_strided_slice %311 {offsets = [1, 0, 1, 0], sizes = [1, 8, 8, 4], strides = [1, 1, 1, 1]} : vector<3x10x10x4xf32> to vector<1x8x8x4xf32>
    %343 = vector.shape_cast %342 : vector<1x8x8x4xf32> to vector<8x8x4xf32>
    %344 = vector.shape_cast %343 : vector<8x8x4xf32> to vector<64x4xf32>
    %345 = vector.extract_strided_slice %311 {offsets = [1, 0, 2, 0], sizes = [1, 8, 8, 4], strides = [1, 1, 1, 1]} : vector<3x10x10x4xf32> to vector<1x8x8x4xf32>
    %346 = vector.shape_cast %345 : vector<1x8x8x4xf32> to vector<8x8x4xf32>
    %347 = vector.shape_cast %346 : vector<8x8x4xf32> to vector<64x4xf32>
    %348 = vector.extract_strided_slice %311 {offsets = [1, 1, 0, 0], sizes = [1, 8, 8, 4], strides = [1, 1, 1, 1]} : vector<3x10x10x4xf32> to vector<1x8x8x4xf32>
    %349 = vector.shape_cast %348 : vector<1x8x8x4xf32> to vector<8x8x4xf32>
    %350 = vector.shape_cast %349 : vector<8x8x4xf32> to vector<64x4xf32>
    %351 = vector.extract_strided_slice %311 {offsets = [1, 1, 1, 0], sizes = [1, 8, 8, 4], strides = [1, 1, 1, 1]} : vector<3x10x10x4xf32> to vector<1x8x8x4xf32>
    %352 = vector.shape_cast %351 : vector<1x8x8x4xf32> to vector<8x8x4xf32>
    %353 = vector.shape_cast %352 : vector<8x8x4xf32> to vector<64x4xf32>
    %354 = vector.extract_strided_slice %311 {offsets = [1, 1, 2, 0], sizes = [1, 8, 8, 4], strides = [1, 1, 1, 1]} : vector<3x10x10x4xf32> to vector<1x8x8x4xf32>
    %355 = vector.shape_cast %354 : vector<1x8x8x4xf32> to vector<8x8x4xf32>
    %356 = vector.shape_cast %355 : vector<8x8x4xf32> to vector<64x4xf32>
    %357 = vector.extract_strided_slice %311 {offsets = [1, 2, 0, 0], sizes = [1, 8, 8, 4], strides = [1, 1, 1, 1]} : vector<3x10x10x4xf32> to vector<1x8x8x4xf32>
    %358 = vector.shape_cast %357 : vector<1x8x8x4xf32> to vector<8x8x4xf32>
    %359 = vector.shape_cast %358 : vector<8x8x4xf32> to vector<64x4xf32>
    %360 = vector.extract_strided_slice %311 {offsets = [1, 2, 1, 0], sizes = [1, 8, 8, 4], strides = [1, 1, 1, 1]} : vector<3x10x10x4xf32> to vector<1x8x8x4xf32>
    %361 = vector.shape_cast %360 : vector<1x8x8x4xf32> to vector<8x8x4xf32>
    %362 = vector.shape_cast %361 : vector<8x8x4xf32> to vector<64x4xf32>
    %363 = vector.extract_strided_slice %311 {offsets = [1, 2, 2, 0], sizes = [1, 8, 8, 4], strides = [1, 1, 1, 1]} : vector<3x10x10x4xf32> to vector<1x8x8x4xf32>
    %364 = vector.shape_cast %363 : vector<1x8x8x4xf32> to vector<8x8x4xf32>
    %365 = vector.shape_cast %364 : vector<8x8x4xf32> to vector<64x4xf32>
    %366 = vector.extract_strided_slice %311 {offsets = [2, 0, 0, 0], sizes = [1, 8, 8, 4], strides = [1, 1, 1, 1]} : vector<3x10x10x4xf32> to vector<1x8x8x4xf32>
    %367 = vector.shape_cast %366 : vector<1x8x8x4xf32> to vector<8x8x4xf32>
    %368 = vector.shape_cast %367 : vector<8x8x4xf32> to vector<64x4xf32>
    %369 = vector.extract_strided_slice %311 {offsets = [2, 0, 1, 0], sizes = [1, 8, 8, 4], strides = [1, 1, 1, 1]} : vector<3x10x10x4xf32> to vector<1x8x8x4xf32>
    %370 = vector.shape_cast %369 : vector<1x8x8x4xf32> to vector<8x8x4xf32>
    %371 = vector.shape_cast %370 : vector<8x8x4xf32> to vector<64x4xf32>
    %372 = vector.extract_strided_slice %311 {offsets = [2, 0, 2, 0], sizes = [1, 8, 8, 4], strides = [1, 1, 1, 1]} : vector<3x10x10x4xf32> to vector<1x8x8x4xf32>
    %373 = vector.shape_cast %372 : vector<1x8x8x4xf32> to vector<8x8x4xf32>
    %374 = vector.shape_cast %373 : vector<8x8x4xf32> to vector<64x4xf32>
    %375 = vector.extract_strided_slice %311 {offsets = [2, 1, 0, 0], sizes = [1, 8, 8, 4], strides = [1, 1, 1, 1]} : vector<3x10x10x4xf32> to vector<1x8x8x4xf32>
    %376 = vector.shape_cast %375 : vector<1x8x8x4xf32> to vector<8x8x4xf32>
    %377 = vector.shape_cast %376 : vector<8x8x4xf32> to vector<64x4xf32>
    %378 = vector.extract_strided_slice %311 {offsets = [2, 1, 1, 0], sizes = [1, 8, 8, 4], strides = [1, 1, 1, 1]} : vector<3x10x10x4xf32> to vector<1x8x8x4xf32>
    %379 = vector.shape_cast %378 : vector<1x8x8x4xf32> to vector<8x8x4xf32>
    %380 = vector.shape_cast %379 : vector<8x8x4xf32> to vector<64x4xf32>
    %381 = vector.extract_strided_slice %311 {offsets = [2, 1, 2, 0], sizes = [1, 8, 8, 4], strides = [1, 1, 1, 1]} : vector<3x10x10x4xf32> to vector<1x8x8x4xf32>
    %382 = vector.shape_cast %381 : vector<1x8x8x4xf32> to vector<8x8x4xf32>
    %383 = vector.shape_cast %382 : vector<8x8x4xf32> to vector<64x4xf32>
    %384 = vector.extract_strided_slice %311 {offsets = [2, 2, 0, 0], sizes = [1, 8, 8, 4], strides = [1, 1, 1, 1]} : vector<3x10x10x4xf32> to vector<1x8x8x4xf32>
    %385 = vector.shape_cast %384 : vector<1x8x8x4xf32> to vector<8x8x4xf32>
    %386 = vector.shape_cast %385 : vector<8x8x4xf32> to vector<64x4xf32>
    %387 = vector.extract_strided_slice %311 {offsets = [2, 2, 1, 0], sizes = [1, 8, 8, 4], strides = [1, 1, 1, 1]} : vector<3x10x10x4xf32> to vector<1x8x8x4xf32>
    %388 = vector.shape_cast %387 : vector<1x8x8x4xf32> to vector<8x8x4xf32>
    %389 = vector.shape_cast %388 : vector<8x8x4xf32> to vector<64x4xf32>
    %390 = vector.extract_strided_slice %311 {offsets = [2, 2, 2, 0], sizes = [1, 8, 8, 4], strides = [1, 1, 1, 1]} : vector<3x10x10x4xf32> to vector<1x8x8x4xf32>
    %391 = vector.shape_cast %390 : vector<1x8x8x4xf32> to vector<8x8x4xf32>
    %392 = vector.shape_cast %391 : vector<8x8x4xf32> to vector<64x4xf32>
    %393 = tpu.concatenate %314, %317, %320, %323, %326, %329, %332, %335, %338, %341, %344, %347, %350, %353, %356, %359 in 1 : vector<64x4xf32>, vector<64x4xf32>, vector<64x4xf32>, vector<64x4xf32>, vector<64x4xf32>, vector<64x4xf32>, vector<64x4xf32>, vector<64x4xf32>, vector<64x4xf32>, vector<64x4xf32>, vector<64x4xf32>, vector<64x4xf32>, vector<64x4xf32>, vector<64x4xf32>, vector<64x4xf32>, vector<64x4xf32> -> vector<64x64xf32>
    %394 = tpu.concatenate %362, %365, %368, %371, %374, %377, %380, %383, %386, %389, %392 in 1 : vector<64x4xf32>, vector<64x4xf32>, vector<64x4xf32>, vector<64x4xf32>, vector<64x4xf32>, vector<64x4xf32>, vector<64x4xf32>, vector<64x4xf32>, vector<64x4xf32>, vector<64x4xf32>, vector<64x4xf32> -> vector<64x44xf32>
    %395 = tpu.concatenate %393, %394 in 1 : vector<64x64xf32>, vector<64x44xf32> -> vector<64x108xf32>
    %396 = arith.truncf %395 : vector<64x108xf32> to vector<64x108xbf16>
    %c0_44 = arith.constant 0 : index
    %c0_45 = arith.constant 0 : index
    %397 = vector.load %arg2[%c0_44, %c0_45] : memref<108x128xbf16, #tpu.memory_space<vmem>>, vector<108x128xbf16>
    %cst_46 = arith.constant dense<0.000000e+00> : vector<64x128xf32>
    %398 = tpu.matmul %396, %397, %cst_46 {dimension_numbers = #tpu.dot_dimension_numbers<[1], [0], [0], [1], [0, 0, 1, 1], [], []>} : vector<64x108xbf16>, vector<108x128xbf16>, vector<64x128xf32> -> vector<64x128xf32>
    %c0_47 = arith.constant 0 : index
    %c0_48 = arith.constant 0 : index
    %399 = vector.load %arg3[%c0_47, %c0_48] : memref<1x128xf32, #tpu.memory_space<vmem>>, vector<1x128xf32>
    %400 = vector.broadcast %399 : vector<1x128xf32> to vector<64x128xf32>
    %401 = arith.addf %398, %400 : vector<64x128xf32>
    %cst_49 = arith.constant 0.000000e+00 : f32
    %402 = vector.broadcast %cst_49 : f32 to vector<64x128xf32>
    %403 = arith.cmpf ogt, %401, %402 : vector<64x128xf32>
    %cst_50 = arith.constant 1.000000e-01 : f32
    %404 = vector.broadcast %cst_50 : f32 to vector<64x128xf32>
    %405 = arith.mulf %404, %401 : vector<64x128xf32>
    %406 = arith.select %403, %401, %405 : vector<64x128xi1>, vector<64x128xf32>
    %407 = vector.shape_cast %406 : vector<64x128xf32> to vector<1x64x128xf32>
    %c0_51 = arith.constant 0 : index
    %408 = arith.index_cast %c3_i32 : i32 to index
    %c0_52 = arith.constant 0 : index
    %c0_53 = arith.constant 0 : index
    %409 = vector.load %arg4[%c0_51, %408, %c0_52, %c0_53] : memref<1x4x64x128xf32, #tpu.memory_space<vmem>>, vector<1x1x64x128xf32>
    %410 = vector.shape_cast %409 : vector<1x1x64x128xf32> to vector<1x64x128xf32>
    %411 = vector.shape_cast %407 : vector<1x64x128xf32> to vector<1x1x64x128xf32>
    tpu.vector_store %arg4[%c0_51, %408, %c0_52, %c0_53], %411 {strides = array<i32>} : memref<1x4x64x128xf32, #tpu.memory_space<vmem>>, vector<1x1x64x128xf32>,
    %c4_i32 = arith.constant 4 : i32
    return
  }
  func.func @transform_0(%arg0: i32) -> (i32, i32, i32, i32, i32) {
    %c0_i32 = arith.constant 0 : i32
    %c0_i32_0 = arith.constant 0 : i32
    %c0_i32_1 = arith.constant 0 : i32
    %c0_i32_2 = arith.constant 0 : i32
    %c0_i32_3 = arith.constant 0 : i32
    return %arg0, %c0_i32, %c0_i32_0, %c0_i32_1, %c0_i32_2 : i32, i32, i32, i32, i32
  }
  func.func @transform_1(%arg0: i32) -> (i32, i32) {
    %c0_i32 = arith.constant 0 : i32
    %c0_i32_0 = arith.constant 0 : i32
    %c0_i32_1 = arith.constant 0 : i32
    return %c0_i32, %c0_i32_0 : i32, i32
  }
  func.func @transform_2(%arg0: i32) -> (i32, i32) {
    %c0_i32 = arith.constant 0 : i32
    %c0_i32_0 = arith.constant 0 : i32
    %c0_i32_1 = arith.constant 0 : i32
    return %c0_i32, %c0_i32_0 : i32, i32
  }
  func.func @transform_3(%arg0: i32) -> (i32, i32, i32, i32) {
    %c0_i32 = arith.constant 0 : i32
    %c0_i32_0 = arith.constant 0 : i32
    %c0_i32_1 = arith.constant 0 : i32
    %c0_i32_2 = arith.constant 0 : i32
    return %arg0, %c0_i32, %c0_i32_0, %c0_i32_1 : i32, i32, i32, i32
  }
}

</mosaic_0001>

<llo_original>
// kernel: tpu_custom_call.1
$region0: #{tpu_custom_call.1}
  #allocation0 [shape = 'u32[]', space=smem, size = 0x4, offset = 0x4, fixed_abs, tag = 'smem constant byte address 0x4 - core index']
  #allocation1 [shape = 'u32[144,128]{1,0:T(1,128)}', space=vmem, size = 0x12000, scoped, tag = 'internal scratch']
  %s0 = inlined_call_operand.vmem [shape: f32[2,6,10,10,4], index: 0, kind: input, shape index: {}]
  %s1 = inlined_call_operand.vmem [shape: bf16[108,128], index: 1, kind: input, shape index: {}]
  %s2 = inlined_call_operand.vmem [shape: f32[1,128], index: 2, kind: input, shape index: {}]
  %s3 = inlined_call_operand.hbm [shape: f32[2,4,64,128], index: 3, kind: output, shape index: {}]
  %s4 = sld [smem:[#allocation0]]
  $region45: #{tpu_custom_call.1} parent=0
    _
  %s6 = ssub.s32 1, %s4
  %s7 = scalar_select 0, %s6, %s4
  $region1: #{tpu_custom_call.1} parent=0
    #allocation2 [shape = 'u8[262144]{0}', space=vmem, size = 0x40000, scoped, tag = 'output window, operand 0']
    #allocation3 [shape = 's32[2]{0}', space=sflag, size = 0x8, scoped, tag = 'scoped memory for tpu_custom_call.1']
    %8 = vsyncpa [#allocation3], 0
    %s9 = scalar_lea.sflag [#allocation3], 1
    %10 = vsyncpa %s9, 0
    loop: start=0, step=1, limit=4
    $region2: #{tpu_custom_call.1} parent=1 // loop_pre_header
      _
    $region3: #{tpu_custom_call.1} parent=1 // loop_header
      %s12 = sphi 0, %s16
      %p13 = scmp.ge.s32.totalorder %s12, 4
      %s22 = sphi 0, %s24
      %s25 = sphi 0, %s22
      %s26 = sphi 0, %s25
      %s42 = sphi 0, %s26
      %s46 = sphi 0, %s46
      %s48 = sphi 0, %s46
      %s49 = sphi 0, %s48
      %s63 = sphi 0, %s49
      %s67 = sphi 0, %s67
      %s69 = sphi 0, %s67
      %s70 = sphi 0, %s69
      %s84 = sphi 0, %s70
      %s90 = sphi 0, %s92
      %s93 = sphi 0, %s90
      %s94 = sphi 0, %s93
      %s110 = sphi 0, %s94
    $region4: #{tpu_custom_call.1} parent=1 // loop_header_branch
      %15 = sbr.rel (%p13) target = $region8
    $region5: #{tpu_custom_call.1} parent=1 // loop_body
      %s17 = ssub.s32 %s12, 1
      %s18 = ssub.s32 %s12, 2
      %s19 = sadd.s32 %s12, 1
      %s20 = ssub.s32 %s12, %s19
      %p21 = scmp.eq.s32.totalorder %s20, 0
      %s23 = sadd.s32 %s22, 1
      %s24 = scalar_select %p21, %s22, %s23
      %p27 = pneg %p21
      %p28 = scmp.eq.s32.totalorder %s12, 1
      %p29 = por %p27, %p28
      %p30 = scmp.ne.s32.totalorder %s22, %s25
      %p31 = scmp.eq.s32.totalorder %s12, 0
      %p32 = por %p30, %p31
      %p33 = scmp.ne.s32.totalorder %s22, %s25
      %p34 = scmp.eq.s32.totalorder %s17, 1
      %p35 = por %p33, %p34
      %p36 = scmp.ne.s32.totalorder %s25, %s26
      %p37 = scmp.eq.s32.totalorder %s17, 0
      %p38 = por %p36, %p37
      %p39 = scmp.ne.s32.totalorder %s25, %s26
      %p40 = scmp.eq.s32.totalorder %s18, 1
      %p41 = por %p39, %p40
      %p43 = scmp.ne.s32.totalorder %s26, %s42
      %p44 = scmp.eq.s32.totalorder %s18, 0
      %p45 = por %p43, %p44
      %s47 = sadd.s32 %s46, 1
      %p50 = scmp.eq.s32.totalorder %s12, 1
      %p51 = scmp.ne.s32.totalorder %s46, %s48
      %p52 = scmp.eq.s32.totalorder %s12, 0
      %p53 = por %p51, %p52
      %p54 = scmp.ne.s32.totalorder %s46, %s48
      %p55 = scmp.eq.s32.totalorder %s17, 1
      %p56 = por %p54, %p55
      %p57 = scmp.ne.s32.totalorder %s48, %s49
      %p58 = scmp.eq.s32.totalorder %s17, 0
      %p59 = por %p57, %p58
      %p60 = scmp.ne.s32.totalorder %s48, %s49
      %p61 = scmp.eq.s32.totalorder %s18, 1
      %p62 = por %p60, %p61
      %p64 = scmp.ne.s32.totalorder %s49, %s63
      %p65 = scmp.eq.s32.totalorder %s18, 0
      %p66 = por %p64, %p65
      %s68 = sadd.s32 %s67, 1
      %p71 = scmp.eq.s32.totalorder %s12, 1
      %p72 = scmp.ne.s32.totalorder %s67, %s69
      %p73 = scmp.eq.s32.totalorder %s12, 0
      %p74 = por %p72, %p73
      %p75 = scmp.ne.s32.totalorder %s67, %s69
      %p76 = scmp.eq.s32.totalorder %s17, 1
      %p77 = por %p75, %p76
      %p78 = scmp.ne.s32.totalorder %s69, %s70
      %p79 = scmp.eq.s32.totalorder %s17, 0
      %p80 = por %p78, %p79
      %p81 = scmp.ne.s32.totalorder %s69, %s70
      %p82 = scmp.eq.s32.totalorder %s18, 1
      %p83 = por %p81, %p82
      %p85 = scmp.ne.s32.totalorder %s70, %s84
      %p86 = scmp.eq.s32.totalorder %s18, 0
      %p87 = por %p85, %p86
      %s88 = ssub.s32 %s12, %s19
      %p89 = scmp.eq.s32.totalorder %s88, 0
      %s91 = sadd.s32 %s90, 1
      %s92 = scalar_select %p89, %s90, %s91
      %p95 = pneg %p89
      %p96 = scmp.eq.s32.totalorder %s12, 1
      %p97 = por %p95, %p96
      %p98 = scmp.ne.s32.totalorder %s90, %s93
      %p99 = scmp.eq.s32.totalorder %s12, 0
      %p100 = por %p98, %p99
      %p101 = scmp.ne.s32.totalorder %s90, %s93
      %p102 = scmp.eq.s32.totalorder %s17, 1
      %p103 = por %p101, %p102
      %p104 = scmp.ne.s32.totalorder %s93, %s94
      %p105 = scmp.eq.s32.totalorder %s17, 0
      %p106 = por %p104, %p105
      %p107 = scmp.ne.s32.totalorder %s93, %s94
      %p108 = scmp.eq.s32.totalorder %s18, 1
      %p109 = por %p107, %p108
      %p111 = scmp.ne.s32.totalorder %s94, %s110
      %p112 = scmp.eq.s32.totalorder %s18, 0
      %p113 = por %p111, %p112
      %p114 = scmp.le.s32.totalorder 1, %s12
      %p115 = scmp.lt.s32.totalorder %s12, 3
      %p116 = pnand %p114, %p115
      %p117 = pneg %p116
      // Predicated region
      $region9: #{tpu_custom_call.1} parent=5 // pred_check
        _
      $region10: #{tpu_custom_call.1} parent=5 // pred_check_branch
        %119 = sbr.rel (%p116) target = $region12
      $region11: #{tpu_custom_call.1} parent=5 // pred_region
        %s120 = ssub.s32 %s12, 1
        // Predicated region
        $region13: #{tpu_custom_call.1} parent=11 // pred_check
          %p121 = pneg %p59
        $region14: #{tpu_custom_call.1} parent=11 // pred_check_branch
          %123 = sbr.rel (%p121) target = $region16
        $region15: #{tpu_custom_call.1} parent=11 // pred_region
          _
        $region16: #{tpu_custom_call.1} parent=11 // pred_fallthru
          _
        // Predicated region
        $region17: #{tpu_custom_call.1} parent=11 // pred_check
          %p124 = pneg %p80
        $region18: #{tpu_custom_call.1} parent=11 // pred_check_branch
          %126 = sbr.rel (%p124) target = $region20
        $region19: #{tpu_custom_call.1} parent=11 // pred_region
          _
        $region20: #{tpu_custom_call.1} parent=11 // pred_fallthru
          _
      $region12: #{tpu_custom_call.1} parent=5 // pred_fallthru
        _
      %p127 = scmp.lt.s32.totalorder %s12, 2
      // Predicated region
      $region21: #{tpu_custom_call.1} parent=5 // pred_check
        %p128 = pneg %p127
      $region22: #{tpu_custom_call.1} parent=5 // pred_check_branch
        %130 = sbr.rel (%p128) target = $region24
      $region23: #{tpu_custom_call.1} parent=5 // pred_region
        // Predicated region
        $region25: #{tpu_custom_call.1} parent=23 // pred_check
          %p131 = pneg %p32
        $region26: #{tpu_custom_call.1} parent=23 // pred_check_branch
          %133 = sbr.rel (%p131) target = $region28
        $region27: #{tpu_custom_call.1} parent=23 // pred_region
          %p134 = scmp.lt.s32.totalorder %s12, 1
          %s135 = scalar_select %p134, %s12, 1
          %s136 = smul.addr %s135, 120
          %s137 = smul.addr %s136, 8
          %s138 = scalar_lea.vmem %s0, %s137
        $region28: #{tpu_custom_call.1} parent=23 // pred_fallthru
          _
      $region24: #{tpu_custom_call.1} parent=5 // pred_fallthru
        _
      %p139 = scmp.le.s32.totalorder 1, %s12
      %p140 = scmp.lt.s32.totalorder %s12, 3
      %p141 = pnand %p139, %p140
      %p142 = pneg %p141
      // Predicated region
      $region29: #{tpu_custom_call.1} parent=5 // pred_check
        _
      $region30: #{tpu_custom_call.1} parent=5 // pred_check_branch
        %144 = sbr.rel (%p141) target = $region32
      $region31: #{tpu_custom_call.1} parent=5 // pred_region
        %s145 = ssub.s32 %s12, 1
        %p146 = scmp.lt.s32.totalorder %s17, 1
        %s147 = scalar_select %p146, %s17, 1
        %s148 = smul.addr %s147, 120
        %s149 = smul.addr %s148, 8
        %s150 = scalar_lea.vmem %s0, %s149
        %p151 = pneg %p38
        %p152 = pneg %p35
        %p153 = pneg %p59
        %p154 = pneg %p56
        %p155 = pneg %p80
        %p156 = pneg %p77
        %p157 = pneg %p106
        %p158 = pneg %p103
        %s159 = sand.u32 %s93, 1
        %s160 = scalar_lea.sflag [#allocation3], %s159
        %s161 = sand.u32 %s93, 1
        %s162 = smul.addr %s161, 256
        %s163 = scalar_lea.vmem [#allocation2], %s162
        %p164 = scmp.lt.s32.totalorder %s17, 1
        %s165 = scalar_select %p164, %s17, 1
        %s166 = smul.addr %s165, 120
        %s167 = smul.addr %s166, 8
        %s168 = scalar_lea.vmem %s0, %s167
        %v170 = vld [vmem:[%s168] sm:$0xff]
        %v171 = vld [vmem:[%s168 + $0x8] sm:$0x3]
        %v172 = vld [vmem:[%s168 + $0x10] sm:$0xff]
        %v173 = vld [vmem:[%s168 + $0x18] sm:$0x3]
        %v174 = vld [vmem:[%s168 + $0x20] sm:$0xff]
        %v175 = vld [vmem:[%s168 + $0x28] sm:$0x3]
        %v176 = vld [vmem:[%s168 + $0x30] sm:$0xff]
        %v177 = vld [vmem:[%s168 + $0x38] sm:$0x3]
        %v178 = vld [vmem:[%s168 + $0x40] sm:$0xff]
        %v179 = vld [vmem:[%s168 + $0x48] sm:$0x3]
        %v180 = vld [vmem:[%s168 + $0x50] sm:$0xff]
        %v181 = vld [vmem:[%s168 + $0x58] sm:$0x3]
        %v182 = vld [vmem:[%s168 + $0x60] sm:$0xff]
        %v183 = vld [vmem:[%s168 + $0x68] sm:$0x3]
        %v184 = vld [vmem:[%s168 + $0x70] sm:$0xff]
        %v185 = vld [vmem:[%s168 + $0x78] sm:$0x3]
        %v186 = vld [vmem:[%s168 + $0x80] sm:$0xff]
        %v187 = vld [vmem:[%s168 + $0x88] sm:$0x3]
        %v188 = vld [vmem:[%s168 + $0x90] sm:$0xff]
        %v189 = vld [vmem:[%s168 + $0x98] sm:$0x3]
        %v190 = vld [vmem:[%s168 + $0xa0] sm:$0xff]
        %v191 = vld [vmem:[%s168 + $0xa8] sm:$0x3]
        %v192 = vld [vmem:[%s168 + $0xb0] sm:$0xff]
        %v193 = vld [vmem:[%s168 + $0xb8] sm:$0x3]
        %v194 = vld [vmem:[%s168 + $0xc0] sm:$0xff]
        %v195 = vld [vmem:[%s168 + $0xc8] sm:$0x3]
        %v196 = vld [vmem:[%s168 + $0xd0] sm:$0xff]
        %v197 = vld [vmem:[%s168 + $0xd8] sm:$0x3]
        %v198 = vld [vmem:[%s168 + $0xe0] sm:$0xff]
        %v199 = vld [vmem:[%s168 + $0xe8] sm:$0x3]
        %v200 = vld [vmem:[%s168 + $0xf0] sm:$0xff]
        %v201 = vld [vmem:[%s168 + $0xf8] sm:$0x3]
        %v202 = vld [vmem:[%s168 + $0x100] sm:$0xff]
        %v203 = vld [vmem:[%s168 + $0x108] sm:$0x3]
        %v204 = vld [vmem:[%s168 + $0x110] sm:$0xff]
        %v205 = vld [vmem:[%s168 + $0x118] sm:$0x3]
        %v206 = vld [vmem:[%s168 + $0x120] sm:$0xff]
        %v207 = vld [vmem:[%s168 + $0x128] sm:$0x3]
        %v208 = vld [vmem:[%s168 + $0x130] sm:$0xff]
        %v209 = vld [vmem:[%s168 + $0x138] sm:$0x3]
        %v210 = vld [vmem:[%s168 + $0x140] sm:$0xff]
        %v211 = vld [vmem:[%s168 + $0x148] sm:$0x3]
        %v212 = vld [vmem:[%s168 + $0x150] sm:$0xff]
        %v213 = vld [vmem:[%s168 + $0x158] sm:$0x3]
        %v214 = vld [vmem:[%s168 + $0x160] sm:$0xff]
        %v215 = vld [vmem:[%s168 + $0x168] sm:$0x3]
        %v216 = vld [vmem:[%s168 + $0x170] sm:$0xff]
        %v217 = vld [vmem:[%s168 + $0x178] sm:$0x3]
        %v218 = vld [vmem:[%s168 + $0x180] sm:$0xff]
        %v219 = vld [vmem:[%s168 + $0x188] sm:$0x3]
        %v220 = vld [vmem:[%s168 + $0x190] sm:$0xff]
        %v221 = vld [vmem:[%s168 + $0x198] sm:$0x3]
        %v222 = vld [vmem:[%s168 + $0x1a0] sm:$0xff]
        %v223 = vld [vmem:[%s168 + $0x1a8] sm:$0x3]
        %v224 = vld [vmem:[%s168 + $0x1b0] sm:$0xff]
        %v225 = vld [vmem:[%s168 + $0x1b8] sm:$0x3]
        %v226 = vld [vmem:[%s168 + $0x1c0] sm:$0xff]
        %v227 = vld [vmem:[%s168 + $0x1c8] sm:$0x3]
        %v228 = vld [vmem:[%s168 + $0x1d0] sm:$0xff]
        %v229 = vld [vmem:[%s168 + $0x1d8] sm:$0x3]
        %vm246 = vcmask 1046528
        %v247 = vrot.slane %v170, 1
        %v248 = vrot.slane %v171, 1
        %v249 = vsel %vm246, %v247, %v248
        %v250 = vrot.slane %v172, 1
        %v251 = vrot.slane %v173, 1
        %v252 = vsel %vm246, %v250, %v251
        %v253 = vrot.slane %v174, 1
        %v254 = vrot.slane %v175, 1
        %v255 = vsel %vm246, %v253, %v254
        %v256 = vrot.slane %v176, 1
        %v257 = vrot.slane %v177, 1
        %v258 = vsel %vm246, %v256, %v257
        %v259 = vrot.slane %v178, 1
        %v260 = vrot.slane %v179, 1
        %v261 = vsel %vm246, %v259, %v260
        %v262 = vrot.slane %v180, 1
        %v263 = vrot.slane %v181, 1
        %v264 = vsel %vm246, %v262, %v263
        %v265 = vrot.slane %v182, 1
        %v266 = vrot.slane %v183, 1
        %v267 = vsel %vm246, %v265, %v266
        %v268 = vrot.slane %v184, 1
        %v269 = vrot.slane %v185, 1
        %v270 = vsel %vm246, %v268, %v269
        %vm271 = vcmask 1045504
        %v272 = vrot.slane %v170, 2
        %v273 = vrot.slane %v171, 2
        %v274 = vsel %vm271, %v272, %v273
        %v275 = vrot.slane %v172, 2
        %v276 = vrot.slane %v173, 2
        %v277 = vsel %vm271, %v275, %v276
        %v278 = vrot.slane %v174, 2
        %v279 = vrot.slane %v175, 2
        %v280 = vsel %vm271, %v278, %v279
        %v281 = vrot.slane %v176, 2
        %v282 = vrot.slane %v177, 2
        %v283 = vsel %vm271, %v281, %v282
        %v284 = vrot.slane %v178, 2
        %v285 = vrot.slane %v179, 2
        %v286 = vsel %vm271, %v284, %v285
        %v287 = vrot.slane %v180, 2
        %v288 = vrot.slane %v181, 2
        %v289 = vsel %vm271, %v287, %v288
        %v290 = vrot.slane %v182, 2
        %v291 = vrot.slane %v183, 2
        %v292 = vsel %vm271, %v290, %v291
        %v293 = vrot.slane %v184, 2
        %v294 = vrot.slane %v185, 2
        %v295 = vsel %vm271, %v293, %v294
        %v298 = vrot.slane %v186, 1
        %v299 = vrot.slane %v187, 1
        %v300 = vsel %vm246, %v298, %v299
        %v301 = vrot.slane %v186, 2
        %v302 = vrot.slane %v187, 2
        %v303 = vsel %vm271, %v301, %v302
        %v306 = vrot.slane %v188, 1
        %v307 = vrot.slane %v189, 1
        %v308 = vsel %vm246, %v306, %v307
        %v309 = vrot.slane %v188, 2
        %v310 = vrot.slane %v189, 2
        %v311 = vsel %vm271, %v309, %v310
        %v328 = vrot.slane %v190, 1
        %v329 = vrot.slane %v191, 1
        %v330 = vsel %vm246, %v328, %v329
        %v331 = vrot.slane %v192, 1
        %v332 = vrot.slane %v193, 1
        %v333 = vsel %vm246, %v331, %v332
        %v334 = vrot.slane %v194, 1
        %v335 = vrot.slane %v195, 1
        %v336 = vsel %vm246, %v334, %v335
        %v337 = vrot.slane %v196, 1
        %v338 = vrot.slane %v197, 1
        %v339 = vsel %vm246, %v337, %v338
        %v340 = vrot.slane %v198, 1
        %v341 = vrot.slane %v199, 1
        %v342 = vsel %vm246, %v340, %v341
        %v343 = vrot.slane %v200, 1
        %v344 = vrot.slane %v201, 1
        %v345 = vsel %vm246, %v343, %v344
        %v346 = vrot.slane %v202, 1
        %v347 = vrot.slane %v203, 1
        %v348 = vsel %vm246, %v346, %v347
        %v349 = vrot.slane %v204, 1
        %v350 = vrot.slane %v205, 1
        %v351 = vsel %vm246, %v349, %v350
        %v352 = vrot.slane %v190, 2
        %v353 = vrot.slane %v191, 2
        %v354 = vsel %vm271, %v352, %v353
        %v355 = vrot.slane %v192, 2
        %v356 = vrot.slane %v193, 2
        %v357 = vsel %vm271, %v355, %v356
        %v358 = vrot.slane %v194, 2
        %v359 = vrot.slane %v195, 2
        %v360 = vsel %vm271, %v358, %v359
        %v361 = vrot.slane %v196, 2
        %v362 = vrot.slane %v197, 2
        %v363 = vsel %vm271, %v361, %v362
        %v364 = vrot.slane %v198, 2
        %v365 = vrot.slane %v199, 2
        %v366 = vsel %vm271, %v364, %v365
        %v367 = vrot.slane %v200, 2
        %v368 = vrot.slane %v201, 2
        %v369 = vsel %vm271, %v367, %v368
        %v370 = vrot.slane %v202, 2
        %v371 = vrot.slane %v203, 2
        %v372 = vsel %vm271, %v370, %v371
        %v373 = vrot.slane %v204, 2
        %v374 = vrot.slane %v205, 2
        %v375 = vsel %vm271, %v373, %v374
        %v378 = vrot.slane %v206, 1
        %v379 = vrot.slane %v207, 1
        %v380 = vsel %vm246, %v378, %v379
        %v381 = vrot.slane %v206, 2
        %v382 = vrot.slane %v207, 2
        %v383 = vsel %vm271, %v381, %v382
        %v386 = vrot.slane %v208, 1
        %v387 = vrot.slane %v209, 1
        %v388 = vsel %vm246, %v386, %v387
        %v397 = vrot.slane %v208, 2
        %v398 = vrot.slane %v209, 2
        %v399 = vsel %vm271, %v397, %v398
        %v416 = vrot.slane %v210, 1
        %v417 = vrot.slane %v211, 1
        %v418 = vsel %vm246, %v416, %v417
        %v419 = vrot.slane %v212, 1
        %v420 = vrot.slane %v213, 1
        %v421 = vsel %vm246, %v419, %v420
        %v422 = vrot.slane %v214, 1
        %v423 = vrot.slane %v215, 1
        %v424 = vsel %vm246, %v422, %v423
        %v425 = vrot.slane %v216, 1
        %v426 = vrot.slane %v217, 1
        %v427 = vsel %vm246, %v425, %v426
        %v428 = vrot.slane %v218, 1
        %v429 = vrot.slane %v219, 1
        %v430 = vsel %vm246, %v428, %v429
        %v431 = vrot.slane %v220, 1
        %v432 = vrot.slane %v221, 1
        %v433 = vsel %vm246, %v431, %v432
        %v434 = vrot.slane %v222, 1
        %v435 = vrot.slane %v223, 1
        %v436 = vsel %vm246, %v434, %v435
        %v437 = vrot.slane %v224, 1
        %v438 = vrot.slane %v225, 1
        %v439 = vsel %vm246, %v437, %v438
        %v440 = vrot.slane %v210, 2
        %v441 = vrot.slane %v211, 2
        %v442 = vsel %vm271, %v440, %v441
        %v443 = vrot.slane %v212, 2
        %v444 = vrot.slane %v213, 2
        %v445 = vsel %vm271, %v443, %v444
        %v446 = vrot.slane %v214, 2
        %v447 = vrot.slane %v215, 2
        %v448 = vsel %vm271, %v446, %v447
        %v449 = vrot.slane %v216, 2
        %v450 = vrot.slane %v217, 2
        %v451 = vsel %vm271, %v449, %v450
        %v452 = vrot.slane %v218, 2
        %v453 = vrot.slane %v219, 2
        %v454 = vsel %vm271, %v452, %v453
        %v455 = vrot.slane %v220, 2
        %v456 = vrot.slane %v221, 2
        %v457 = vsel %vm271, %v455, %v456
        %v458 = vrot.slane %v222, 2
        %v459 = vrot.slane %v223, 2
        %v460 = vsel %vm271, %v458, %v459
        %v461 = vrot.slane %v224, 2
        %v462 = vrot.slane %v225, 2
        %v463 = vsel %vm271, %v461, %v462
        %v466 = vrot.slane %v226, 1
        %v467 = vrot.slane %v227, 1
        %v468 = vsel %vm246, %v466, %v467
        %v469 = vrot.slane %v226, 2
        %v470 = vrot.slane %v227, 2
        %v471 = vsel %vm271, %v469, %v470
        %v474 = vrot.slane %v228, 1
        %v475 = vrot.slane %v229, 1
        %v476 = vsel %vm246, %v474, %v475
        %v477 = vrot.slane %v228, 2
        %v478 = vrot.slane %v229, 2
        %v479 = vsel %vm271, %v477, %v478
        %480 = vrot.lane.b32.xlu0 %v249, 4
        %v481 = vpop.permute.xlu0 %480
        %482 = vrot.lane.b32.xlu0 %v252, 4
        %v483 = vpop.permute.xlu0 %482
        %484 = vrot.lane.b32.xlu0 %v255, 4
        %v485 = vpop.permute.xlu0 %484
        %486 = vrot.lane.b32.xlu0 %v258, 4
        %v487 = vpop.permute.xlu0 %486
        %488 = vrot.lane.b32.xlu0 %v261, 4
        %v489 = vpop.permute.xlu0 %488
        %490 = vrot.lane.b32.xlu0 %v264, 4
        %v491 = vpop.permute.xlu0 %490
        %492 = vrot.lane.b32.xlu0 %v267, 4
        %v493 = vpop.permute.xlu0 %492
        %494 = vrot.lane.b32.xlu0 %v270, 4
        %v495 = vpop.permute.xlu0 %494
        %504 = vrot.lane.b32.xlu0 %v274, 8
        %v505 = vpop.permute.xlu0 %504
        %506 = vrot.lane.b32.xlu0 %v277, 8
        %v507 = vpop.permute.xlu0 %506
        %508 = vrot.lane.b32.xlu0 %v280, 8
        %v509 = vpop.permute.xlu0 %508
        %510 = vrot.lane.b32.xlu0 %v283, 8
        %v511 = vpop.permute.xlu0 %510
        %512 = vrot.lane.b32.xlu0 %v286, 8
        %v513 = vpop.permute.xlu0 %512
        %514 = vrot.lane.b32.xlu0 %v289, 8
        %v515 = vpop.permute.xlu0 %514
        %516 = vrot.lane.b32.xlu0 %v292, 8
        %v517 = vpop.permute.xlu0 %516
        %518 = vrot.lane.b32.xlu0 %v295, 8
        %v519 = vpop.permute.xlu0 %518
        %528 = vrot.lane.b32.xlu0 %v172, 12
        %v529 = vpop.permute.xlu0 %528
        %530 = vrot.lane.b32.xlu0 %v174, 12
        %v531 = vpop.permute.xlu0 %530
        %532 = vrot.lane.b32.xlu0 %v176, 12
        %v533 = vpop.permute.xlu0 %532
        %534 = vrot.lane.b32.xlu0 %v178, 12
        %v535 = vpop.permute.xlu0 %534
        %536 = vrot.lane.b32.xlu0 %v180, 12
        %v537 = vpop.permute.xlu0 %536
        %538 = vrot.lane.b32.xlu0 %v182, 12
        %v539 = vpop.permute.xlu0 %538
        %540 = vrot.lane.b32.xlu0 %v184, 12
        %v541 = vpop.permute.xlu0 %540
        %542 = vrot.lane.b32.xlu0 %v186, 12
        %v543 = vpop.permute.xlu0 %542
        %552 = vrot.lane.b32.xlu0 %v252, 16
        %v553 = vpop.permute.xlu0 %552
        %554 = vrot.lane.b32.xlu0 %v255, 16
        %v555 = vpop.permute.xlu0 %554
        %556 = vrot.lane.b32.xlu0 %v258, 16
        %v557 = vpop.permute.xlu0 %556
        %558 = vrot.lane.b32.xlu0 %v261, 16
        %v559 = vpop.permute.xlu0 %558
        %560 = vrot.lane.b32.xlu0 %v264, 16
        %v561 = vpop.permute.xlu0 %560
        %562 = vrot.lane.b32.xlu0 %v267, 16
        %v563 = vpop.permute.xlu0 %562
        %564 = vrot.lane.b32.xlu0 %v270, 16
        %v565 = vpop.permute.xlu0 %564
        %566 = vrot.lane.b32.xlu0 %v300, 16
        %v567 = vpop.permute.xlu0 %566
        %576 = vrot.lane.b32.xlu0 %v277, 20
        %v577 = vpop.permute.xlu0 %576
        %578 = vrot.lane.b32.xlu0 %v280, 20
        %v579 = vpop.permute.xlu0 %578
        %580 = vrot.lane.b32.xlu0 %v283, 20
        %v581 = vpop.permute.xlu0 %580
        %582 = vrot.lane.b32.xlu0 %v286, 20
        %v583 = vpop.permute.xlu0 %582
        %584 = vrot.lane.b32.xlu0 %v289, 20
        %v585 = vpop.permute.xlu0 %584
        %586 = vrot.lane.b32.xlu0 %v292, 20
        %v587 = vpop.permute.xlu0 %586
        %588 = vrot.lane.b32.xlu0 %v295, 20
        %v589 = vpop.permute.xlu0 %588
        %590 = vrot.lane.b32.xlu0 %v303, 20
        %v591 = vpop.permute.xlu0 %590
        %600 = vrot.lane.b32.xlu0 %v174, 24
        %v601 = vpop.permute.xlu0 %600
        %602 = vrot.lane.b32.xlu0 %v176, 24
        %v603 = vpop.permute.xlu0 %602
        %604 = vrot.lane.b32.xlu0 %v178, 24
        %v605 = vpop.permute.xlu0 %604
        %606 = vrot.lane.b32.xlu0 %v180, 24
        %v607 = vpop.permute.xlu0 %606
        %608 = vrot.lane.b32.xlu0 %v182, 24
        %v609 = vpop.permute.xlu0 %608
        %610 = vrot.lane.b32.xlu0 %v184, 24
        %v611 = vpop.permute.xlu0 %610
        %612 = vrot.lane.b32.xlu0 %v186, 24
        %v613 = vpop.permute.xlu0 %612
        %614 = vrot.lane.b32.xlu0 %v188, 24
        %v615 = vpop.permute.xlu0 %614
        %624 = vrot.lane.b32.xlu0 %v255, 28
        %v625 = vpop.permute.xlu0 %624
        %626 = vrot.lane.b32.xlu0 %v258, 28
        %v627 = vpop.permute.xlu0 %626
        %628 = vrot.lane.b32.xlu0 %v261, 28
        %v629 = vpop.permute.xlu0 %628
        %630 = vrot.lane.b32.xlu0 %v264, 28
        %v631 = vpop.permute.xlu0 %630
        %632 = vrot.lane.b32.xlu0 %v267, 28
        %v633 = vpop.permute.xlu0 %632
        %634 = vrot.lane.b32.xlu0 %v270, 28
        %v635 = vpop.permute.xlu0 %634
        %636 = vrot.lane.b32.xlu0 %v300, 28
        %v637 = vpop.permute.xlu0 %636
        %638 = vrot.lane.b32.xlu0 %v308, 28
        %v639 = vpop.permute.xlu0 %638
        %648 = vrot.lane.b32.xlu0 %v280, 32
        %v649 = vpop.permute.xlu0 %648
        %650 = vrot.lane.b32.xlu0 %v283, 32
        %v651 = vpop.permute.xlu0 %650
        %652 = vrot.lane.b32.xlu0 %v286, 32
        %v653 = vpop.permute.xlu0 %652
        %654 = vrot.lane.b32.xlu0 %v289, 32
        %v655 = vpop.permute.xlu0 %654
        %656 = vrot.lane.b32.xlu0 %v292, 32
        %v657 = vpop.permute.xlu0 %656
        %658 = vrot.lane.b32.xlu0 %v295, 32
        %v659 = vpop.permute.xlu0 %658
        %660 = vrot.lane.b32.xlu0 %v303, 32
        %v661 = vpop.permute.xlu0 %660
        %662 = vrot.lane.b32.xlu0 %v311, 32
        %v663 = vpop.permute.xlu0 %662
        %672 = vrot.lane.b32.xlu0 %v190, 36
        %v673 = vpop.permute.xlu0 %672
        %674 = vrot.lane.b32.xlu0 %v192, 36
        %v675 = vpop.permute.xlu0 %674
        %676 = vrot.lane.b32.xlu0 %v194, 36
        %v677 = vpop.permute.xlu0 %676
        %678 = vrot.lane.b32.xlu0 %v196, 36
        %v679 = vpop.permute.xlu0 %678
        %680 = vrot.lane.b32.xlu0 %v198, 36
        %v681 = vpop.permute.xlu0 %680
        %682 = vrot.lane.b32.xlu0 %v200, 36
        %v683 = vpop.permute.xlu0 %682
        %684 = vrot.lane.b32.xlu0 %v202, 36
        %v685 = vpop.permute.xlu0 %684
        %686 = vrot.lane.b32.xlu0 %v204, 36
        %v687 = vpop.permute.xlu0 %686
        %696 = vrot.lane.b32.xlu0 %v330, 40
        %v697 = vpop.permute.xlu0 %696
        %698 = vrot.lane.b32.xlu0 %v333, 40
        %v699 = vpop.permute.xlu0 %698
        %700 = vrot.lane.b32.xlu0 %v336, 40
        %v701 = vpop.permute.xlu0 %700
        %702 = vrot.lane.b32.xlu0 %v339, 40
        %v703 = vpop.permute.xlu0 %702
        %704 = vrot.lane.b32.xlu0 %v342, 40
        %v705 = vpop.permute.xlu0 %704
        %706 = vrot.lane.b32.xlu0 %v345, 40
        %v707 = vpop.permute.xlu0 %706
        %708 = vrot.lane.b32.xlu0 %v348, 40
        %v709 = vpop.permute.xlu0 %708
        %710 = vrot.lane.b32.xlu0 %v351, 40
        %v711 = vpop.permute.xlu0 %710
        %720 = vrot.lane.b32.xlu0 %v354, 44
        %v721 = vpop.permute.xlu0 %720
        %722 = vrot.lane.b32.xlu0 %v357, 44
        %v723 = vpop.permute.xlu0 %722
        %724 = vrot.lane.b32.xlu0 %v360, 44
        %v725 = vpop.permute.xlu0 %724
        %726 = vrot.lane.b32.xlu0 %v363, 44
        %v727 = vpop.permute.xlu0 %726
        %728 = vrot.lane.b32.xlu0 %v366, 44
        %v729 = vpop.permute.xlu0 %728
        %730 = vrot.lane.b32.xlu0 %v369, 44
        %v731 = vpop.permute.xlu0 %730
        %732 = vrot.lane.b32.xlu0 %v372, 44
        %v733 = vpop.permute.xlu0 %732
        %734 = vrot.lane.b32.xlu0 %v375, 44
        %v735 = vpop.permute.xlu0 %734
        %744 = vrot.lane.b32.xlu0 %v192, 48
        %v745 = vpop.permute.xlu0 %744
        %746 = vrot.lane.b32.xlu0 %v194, 48
        %v747 = vpop.permute.xlu0 %746
        %748 = vrot.lane.b32.xlu0 %v196, 48
        %v749 = vpop.permute.xlu0 %748
        %750 = vrot.lane.b32.xlu0 %v198, 48
        %v751 = vpop.permute.xlu0 %750
        %752 = vrot.lane.b32.xlu0 %v200, 48
        %v753 = vpop.permute.xlu0 %752
        %754 = vrot.lane.b32.xlu0 %v202, 48
        %v755 = vpop.permute.xlu0 %754
        %756 = vrot.lane.b32.xlu0 %v204, 48
        %v757 = vpop.permute.xlu0 %756
        %758 = vrot.lane.b32.xlu0 %v206, 48
        %v759 = vpop.permute.xlu0 %758
        %768 = vrot.lane.b32.xlu0 %v333, 52
        %v769 = vpop.permute.xlu0 %768
        %770 = vrot.lane.b32.xlu0 %v336, 52
        %v771 = vpop.permute.xlu0 %770
        %772 = vrot.lane.b32.xlu0 %v339, 52
        %v773 = vpop.permute.xlu0 %772
        %774 = vrot.lane.b32.xlu0 %v342, 52
        %v775 = vpop.permute.xlu0 %774
        %776 = vrot.lane.b32.xlu0 %v345, 52
        %v777 = vpop.permute.xlu0 %776
        %778 = vrot.lane.b32.xlu0 %v348, 52
        %v779 = vpop.permute.xlu0 %778
        %780 = vrot.lane.b32.xlu0 %v351, 52
        %v781 = vpop.permute.xlu0 %780
        %782 = vrot.lane.b32.xlu0 %v380, 52
        %v783 = vpop.permute.xlu0 %782
        %792 = vrot.lane.b32.xlu0 %v357, 56
        %v793 = vpop.permute.xlu0 %792
        %794 = vrot.lane.b32.xlu0 %v360, 56
        %v795 = vpop.permute.xlu0 %794
        %796 = vrot.lane.b32.xlu0 %v363, 56
        %v797 = vpop.permute.xlu0 %796
        %798 = vrot.lane.b32.xlu0 %v366, 56
        %v799 = vpop.permute.xlu0 %798
        %800 = vrot.lane.b32.xlu0 %v369, 56
        %v801 = vpop.permute.xlu0 %800
        %802 = vrot.lane.b32.xlu0 %v372, 56
        %v803 = vpop.permute.xlu0 %802
        %804 = vrot.lane.b32.xlu0 %v375, 56
        %v805 = vpop.permute.xlu0 %804
        %806 = vrot.lane.b32.xlu0 %v383, 56
        %v807 = vpop.permute.xlu0 %806
        %816 = vrot.lane.b32.xlu0 %v194, 60
        %v817 = vpop.permute.xlu0 %816
        %818 = vrot.lane.b32.xlu0 %v196, 60
        %v819 = vpop.permute.xlu0 %818
        %820 = vrot.lane.b32.xlu0 %v198, 60
        %v821 = vpop.permute.xlu0 %820
        %822 = vrot.lane.b32.xlu0 %v200, 60
        %v823 = vpop.permute.xlu0 %822
        %824 = vrot.lane.b32.xlu0 %v202, 60
        %v825 = vpop.permute.xlu0 %824
        %826 = vrot.lane.b32.xlu0 %v204, 60
        %v827 = vpop.permute.xlu0 %826
        %828 = vrot.lane.b32.xlu0 %v206, 60
        %v829 = vpop.permute.xlu0 %828
        %830 = vrot.lane.b32.xlu0 %v208, 60
        %v831 = vpop.permute.xlu0 %830
        %vm840 = vcmask 31744
        %v841 = vsel %vm840, %v170, %v481
        %v842 = vsel %vm840, %v172, %v483
        %v843 = vsel %vm840, %v174, %v485
        %v844 = vsel %vm840, %v176, %v487
        %v845 = vsel %vm840, %v178, %v489
        %v846 = vsel %vm840, %v180, %v491
        %v847 = vsel %vm840, %v182, %v493
        %v848 = vsel %vm840, %v184, %v495
        %vm849 = vcmask 64512
        %v850 = vsel %vm849, %v841, %v505
        %v851 = vsel %vm849, %v842, %v507
        %v852 = vsel %vm849, %v843, %v509
        %v853 = vsel %vm849, %v844, %v511
        %v854 = vsel %vm849, %v845, %v513
        %v855 = vsel %vm849, %v846, %v515
        %v856 = vsel %vm849, %v847, %v517
        %v857 = vsel %vm849, %v848, %v519
        %vm858 = vcmask 97280
        %v859 = vsel %vm858, %v850, %v529
        %v860 = vsel %vm858, %v851, %v531
        %v861 = vsel %vm858, %v852, %v533
        %v862 = vsel %vm858, %v853, %v535
        %v863 = vsel %vm858, %v854, %v537
        %v864 = vsel %vm858, %v855, %v539
        %v865 = vsel %vm858, %v856, %v541
        %v866 = vsel %vm858, %v857, %v543
        %vm867 = vcmask 130048
        %v868 = vsel %vm867, %v859, %v553
        %v869 = vsel %vm867, %v860, %v555
        %v870 = vsel %vm867, %v861, %v557
        %v871 = vsel %vm867, %v862, %v559
        %v872 = vsel %vm867, %v863, %v561
        %v873 = vsel %vm867, %v864, %v563
        %v874 = vsel %vm867, %v865, %v565
        %v875 = vsel %vm867, %v866, %v567
        %vm876 = vcmask 162816
        %v877 = vsel %vm876, %v868, %v577
        %v878 = vsel %vm876, %v869, %v579
        %v879 = vsel %vm876, %v870, %v581
        %v880 = vsel %vm876, %v871, %v583
        %v881 = vsel %vm876, %v872, %v585
        %v882 = vsel %vm876, %v873, %v587
        %v883 = vsel %vm876, %v874, %v589
        %v884 = vsel %vm876, %v875, %v591
        %vm885 = vcmask 195584
        %v886 = vsel %vm885, %v877, %v601
        %v887 = vsel %vm885, %v878, %v603
        %v888 = vsel %vm885, %v879, %v605
        %v889 = vsel %vm885, %v880, %v607
        %v890 = vsel %vm885, %v881, %v609
        %v891 = vsel %vm885, %v882, %v611
        %v892 = vsel %vm885, %v883, %v613
        %v893 = vsel %vm885, %v884, %v615
        %vm894 = vcmask 228352
        %v895 = vsel %vm894, %v886, %v625
        %v896 = vsel %vm894, %v887, %v627
        %v897 = vsel %vm894, %v888, %v629
        %v898 = vsel %vm894, %v889, %v631
        %v899 = vsel %vm894, %v890, %v633
        %v900 = vsel %vm894, %v891, %v635
        %v901 = vsel %vm894, %v892, %v637
        %v902 = vsel %vm894, %v893, %v639
        %vm903 = vcmask 261120
        %v904 = vsel %vm903, %v895, %v649
        %v905 = vsel %vm903, %v896, %v651
        %v906 = vsel %vm903, %v897, %v653
        %v907 = vsel %vm903, %v898, %v655
        %v908 = vsel %vm903, %v899, %v657
        %v909 = vsel %vm903, %v900, %v659
        %v910 = vsel %vm903, %v901, %v661
        %v911 = vsel %vm903, %v902, %v663
        %vm912 = vcmask 293888
        %v913 = vsel %vm912, %v904, %v673
        %v914 = vsel %vm912, %v905, %v675
        %v915 = vsel %vm912, %v906, %v677
        %v916 = vsel %vm912, %v907, %v679
        %v917 = vsel %vm912, %v908, %v681
        %v918 = vsel %vm912, %v909, %v683
        %v919 = vsel %vm912, %v910, %v685
        %v920 = vsel %vm912, %v911, %v687
        %vm921 = vcmask 326656
        %v922 = vsel %vm921, %v913, %v697
        %v923 = vsel %vm921, %v914, %v699
        %v924 = vsel %vm921, %v915, %v701
        %v925 = vsel %vm921, %v916, %v703
        %v926 = vsel %vm921, %v917, %v705
        %v927 = vsel %vm921, %v918, %v707
        %v928 = vsel %vm921, %v919, %v709
        %v929 = vsel %vm921, %v920, %v711
        %vm930 = vcmask 359424
        %v931 = vsel %vm930, %v922, %v721
        %v932 = vsel %vm930, %v923, %v723
        %v933 = vsel %vm930, %v924, %v725
        %v934 = vsel %vm930, %v925, %v727
        %v935 = vsel %vm930, %v926, %v729
        %v936 = vsel %vm930, %v927, %v731
        %v937 = vsel %vm930, %v928, %v733
        %v938 = vsel %vm930, %v929, %v735
        %vm939 = vcmask 392192
        %v940 = vsel %vm939, %v931, %v745
        %v941 = vsel %vm939, %v932, %v747
        %v942 = vsel %vm939, %v933, %v749
        %v943 = vsel %vm939, %v934, %v751
        %v944 = vsel %vm939, %v935, %v753
        %v945 = vsel %vm939, %v936, %v755
        %v946 = vsel %vm939, %v937, %v757
        %v947 = vsel %vm939, %v938, %v759
        %vm948 = vcmask 424960
        %v949 = vsel %vm948, %v940, %v769
        %v950 = vsel %vm948, %v941, %v771
        %v951 = vsel %vm948, %v942, %v773
        %v952 = vsel %vm948, %v943, %v775
        %v953 = vsel %vm948, %v944, %v777
        %v954 = vsel %vm948, %v945, %v779
        %v955 = vsel %vm948, %v946, %v781
        %v956 = vsel %vm948, %v947, %v783
        %vm957 = vcmask 457728
        %v958 = vsel %vm957, %v949, %v793
        %v959 = vsel %vm957, %v950, %v795
        %v960 = vsel %vm957, %v951, %v797
        %v961 = vsel %vm957, %v952, %v799
        %v962 = vsel %vm957, %v953, %v801
        %v963 = vsel %vm957, %v954, %v803
        %v964 = vsel %vm957, %v955, %v805
        %v965 = vsel %vm957, %v956, %v807
        %vm966 = vcmask 490496
        %v967 = vsel %vm966, %v958, %v817
        %v968 = vsel %vm966, %v959, %v819
        %v969 = vsel %vm966, %v960, %v821
        %v970 = vsel %vm966, %v961, %v823
        %v971 = vsel %vm966, %v962, %v825
        %v972 = vsel %vm966, %v963, %v827
        %v973 = vsel %vm966, %v964, %v829
        %v974 = vsel %vm966, %v965, %v831
        %975 = vrot.lane.b32.xlu0 %v360, 4
        %v976 = vpop.permute.xlu0 %975
        %977 = vrot.lane.b32.xlu0 %v363, 4
        %v978 = vpop.permute.xlu0 %977
        %979 = vrot.lane.b32.xlu0 %v366, 4
        %v980 = vpop.permute.xlu0 %979
        %981 = vrot.lane.b32.xlu0 %v369, 4
        %v982 = vpop.permute.xlu0 %981
        %983 = vrot.lane.b32.xlu0 %v372, 4
        %v984 = vpop.permute.xlu0 %983
        %985 = vrot.lane.b32.xlu0 %v375, 4
        %v986 = vpop.permute.xlu0 %985
        %987 = vrot.lane.b32.xlu0 %v383, 4
        %v988 = vpop.permute.xlu0 %987
        %989 = vrot.lane.b32.xlu0 %v399, 4
        %v990 = vpop.permute.xlu0 %989
        %999 = vrot.lane.b32.xlu0 %v210, 8
        %v1000 = vpop.permute.xlu0 %999
        %1001 = vrot.lane.b32.xlu0 %v212, 8
        %v1002 = vpop.permute.xlu0 %1001
        %1003 = vrot.lane.b32.xlu0 %v214, 8
        %v1004 = vpop.permute.xlu0 %1003
        %1005 = vrot.lane.b32.xlu0 %v216, 8
        %v1006 = vpop.permute.xlu0 %1005
        %1007 = vrot.lane.b32.xlu0 %v218, 8
        %v1008 = vpop.permute.xlu0 %1007
        %1009 = vrot.lane.b32.xlu0 %v220, 8
        %v1010 = vpop.permute.xlu0 %1009
        %1011 = vrot.lane.b32.xlu0 %v222, 8
        %v1012 = vpop.permute.xlu0 %1011
        %1013 = vrot.lane.b32.xlu0 %v224, 8
        %v1014 = vpop.permute.xlu0 %1013
        %1023 = vrot.lane.b32.xlu0 %v418, 12
        %v1024 = vpop.permute.xlu0 %1023
        %1025 = vrot.lane.b32.xlu0 %v421, 12
        %v1026 = vpop.permute.xlu0 %1025
        %1027 = vrot.lane.b32.xlu0 %v424, 12
        %v1028 = vpop.permute.xlu0 %1027
        %1029 = vrot.lane.b32.xlu0 %v427, 12
        %v1030 = vpop.permute.xlu0 %1029
        %1031 = vrot.lane.b32.xlu0 %v430, 12
        %v1032 = vpop.permute.xlu0 %1031
        %1033 = vrot.lane.b32.xlu0 %v433, 12
        %v1034 = vpop.permute.xlu0 %1033
        %1035 = vrot.lane.b32.xlu0 %v436, 12
        %v1036 = vpop.permute.xlu0 %1035
        %1037 = vrot.lane.b32.xlu0 %v439, 12
        %v1038 = vpop.permute.xlu0 %1037
        %1047 = vrot.lane.b32.xlu0 %v442, 16
        %v1048 = vpop.permute.xlu0 %1047
        %1049 = vrot.lane.b32.xlu0 %v445, 16
        %v1050 = vpop.permute.xlu0 %1049
        %1051 = vrot.lane.b32.xlu0 %v448, 16
        %v1052 = vpop.permute.xlu0 %1051
        %1053 = vrot.lane.b32.xlu0 %v451, 16
        %v1054 = vpop.permute.xlu0 %1053
        %1055 = vrot.lane.b32.xlu0 %v454, 16
        %v1056 = vpop.permute.xlu0 %1055
        %1057 = vrot.lane.b32.xlu0 %v457, 16
        %v1058 = vpop.permute.xlu0 %1057
        %1059 = vrot.lane.b32.xlu0 %v460, 16
        %v1060 = vpop.permute.xlu0 %1059
        %1061 = vrot.lane.b32.xlu0 %v463, 16
        %v1062 = vpop.permute.xlu0 %1061
        %1071 = vrot.lane.b32.xlu0 %v212, 20
        %v1072 = vpop.permute.xlu0 %1071
        %1073 = vrot.lane.b32.xlu0 %v214, 20
        %v1074 = vpop.permute.xlu0 %1073
        %1075 = vrot.lane.b32.xlu0 %v216, 20
        %v1076 = vpop.permute.xlu0 %1075
        %1077 = vrot.lane.b32.xlu0 %v218, 20
        %v1078 = vpop.permute.xlu0 %1077
        %1079 = vrot.lane.b32.xlu0 %v220, 20
        %v1080 = vpop.permute.xlu0 %1079
        %1081 = vrot.lane.b32.xlu0 %v222, 20
        %v1082 = vpop.permute.xlu0 %1081
        %1083 = vrot.lane.b32.xlu0 %v224, 20
        %v1084 = vpop.permute.xlu0 %1083
        %1085 = vrot.lane.b32.xlu0 %v226, 20
        %v1086 = vpop.permute.xlu0 %1085
        %1095 = vrot.lane.b32.xlu0 %v421, 24
        %v1096 = vpop.permute.xlu0 %1095
        %1097 = vrot.lane.b32.xlu0 %v424, 24
        %v1098 = vpop.permute.xlu0 %1097
        %1099 = vrot.lane.b32.xlu0 %v427, 24
        %v1100 = vpop.permute.xlu0 %1099
        %1101 = vrot.lane.b32.xlu0 %v430, 24
        %v1102 = vpop.permute.xlu0 %1101
        %1103 = vrot.lane.b32.xlu0 %v433, 24
        %v1104 = vpop.permute.xlu0 %1103
        %1105 = vrot.lane.b32.xlu0 %v436, 24
        %v1106 = vpop.permute.xlu0 %1105
        %1107 = vrot.lane.b32.xlu0 %v439, 24
        %v1108 = vpop.permute.xlu0 %1107
        %1109 = vrot.lane.b32.xlu0 %v468, 24
        %v1110 = vpop.permute.xlu0 %1109
        %1119 = vrot.lane.b32.xlu0 %v445, 28
        %v1120 = vpop.permute.xlu0 %1119
        %1121 = vrot.lane.b32.xlu0 %v448, 28
        %v1122 = vpop.permute.xlu0 %1121
        %1123 = vrot.lane.b32.xlu0 %v451, 28
        %v1124 = vpop.permute.xlu0 %1123
        %1125 = vrot.lane.b32.xlu0 %v454, 28
        %v1126 = vpop.permute.xlu0 %1125
        %1127 = vrot.lane.b32.xlu0 %v457, 28
        %v1128 = vpop.permute.xlu0 %1127
        %1129 = vrot.lane.b32.xlu0 %v460, 28
        %v1130 = vpop.permute.xlu0 %1129
        %1131 = vrot.lane.b32.xlu0 %v463, 28
        %v1132 = vpop.permute.xlu0 %1131
        %1133 = vrot.lane.b32.xlu0 %v471, 28
        %v1134 = vpop.permute.xlu0 %1133
        %1143 = vrot.lane.b32.xlu0 %v214, 32
        %v1144 = vpop.permute.xlu0 %1143
        %1145 = vrot.lane.b32.xlu0 %v216, 32
        %v1146 = vpop.permute.xlu0 %1145
        %1147 = vrot.lane.b32.xlu0 %v218, 32
        %v1148 = vpop.permute.xlu0 %1147
        %1149 = vrot.lane.b32.xlu0 %v220, 32
        %v1150 = vpop.permute.xlu0 %1149
        %1151 = vrot.lane.b32.xlu0 %v222, 32
        %v1152 = vpop.permute.xlu0 %1151
        %1153 = vrot.lane.b32.xlu0 %v224, 32
        %v1154 = vpop.permute.xlu0 %1153
        %1155 = vrot.lane.b32.xlu0 %v226, 32
        %v1156 = vpop.permute.xlu0 %1155
        %1157 = vrot.lane.b32.xlu0 %v228, 32
        %v1158 = vpop.permute.xlu0 %1157
        %1167 = vrot.lane.b32.xlu0 %v424, 36
        %v1168 = vpop.permute.xlu0 %1167
        %1169 = vrot.lane.b32.xlu0 %v427, 36
        %v1170 = vpop.permute.xlu0 %1169
        %1171 = vrot.lane.b32.xlu0 %v430, 36
        %v1172 = vpop.permute.xlu0 %1171
        %1173 = vrot.lane.b32.xlu0 %v433, 36
        %v1174 = vpop.permute.xlu0 %1173
        %1175 = vrot.lane.b32.xlu0 %v436, 36
        %v1176 = vpop.permute.xlu0 %1175
        %1177 = vrot.lane.b32.xlu0 %v439, 36
        %v1178 = vpop.permute.xlu0 %1177
        %1179 = vrot.lane.b32.xlu0 %v468, 36
        %v1180 = vpop.permute.xlu0 %1179
        %1181 = vrot.lane.b32.xlu0 %v476, 36
        %v1182 = vpop.permute.xlu0 %1181
        %1191 = vrot.lane.b32.xlu0 %v448, 40
        %v1192 = vpop.permute.xlu0 %1191
        %1193 = vrot.lane.b32.xlu0 %v451, 40
        %v1194 = vpop.permute.xlu0 %1193
        %1195 = vrot.lane.b32.xlu0 %v454, 40
        %v1196 = vpop.permute.xlu0 %1195
        %1197 = vrot.lane.b32.xlu0 %v457, 40
        %v1198 = vpop.permute.xlu0 %1197
        %1199 = vrot.lane.b32.xlu0 %v460, 40
        %v1200 = vpop.permute.xlu0 %1199
        %1201 = vrot.lane.b32.xlu0 %v463, 40
        %v1202 = vpop.permute.xlu0 %1201
        %1203 = vrot.lane.b32.xlu0 %v471, 40
        %v1204 = vpop.permute.xlu0 %1203
        %1205 = vrot.lane.b32.xlu0 %v479, 40
        %v1206 = vpop.permute.xlu0 %1205
        %v1215 = vsel %vm840, %v336, %v976
        %v1216 = vsel %vm840, %v339, %v978
        %v1217 = vsel %vm840, %v342, %v980
        %v1218 = vsel %vm840, %v345, %v982
        %v1219 = vsel %vm840, %v348, %v984
        %v1220 = vsel %vm840, %v351, %v986
        %v1221 = vsel %vm840, %v380, %v988
        %v1222 = vsel %vm840, %v388, %v990
        %v1223 = vsel %vm849, %v1215, %v1000
        %v1224 = vsel %vm849, %v1216, %v1002
        %v1225 = vsel %vm849, %v1217, %v1004
        %v1226 = vsel %vm849, %v1218, %v1006
        %v1227 = vsel %vm849, %v1219, %v1008
        %v1228 = vsel %vm849, %v1220, %v1010
        %v1229 = vsel %vm849, %v1221, %v1012
        %v1230 = vsel %vm849, %v1222, %v1014
        %v1231 = vsel %vm858, %v1223, %v1024
        %v1232 = vsel %vm858, %v1224, %v1026
        %v1233 = vsel %vm858, %v1225, %v1028
        %v1234 = vsel %vm858, %v1226, %v1030
        %v1235 = vsel %vm858, %v1227, %v1032
        %v1236 = vsel %vm858, %v1228, %v1034
        %v1237 = vsel %vm858, %v1229, %v1036
        %v1238 = vsel %vm858, %v1230, %v1038
        %v1239 = vsel %vm867, %v1231, %v1048
        %v1240 = vsel %vm867, %v1232, %v1050
        %v1241 = vsel %vm867, %v1233, %v1052
        %v1242 = vsel %vm867, %v1234, %v1054
        %v1243 = vsel %vm867, %v1235, %v1056
        %v1244 = vsel %vm867, %v1236, %v1058
        %v1245 = vsel %vm867, %v1237, %v1060
        %v1246 = vsel %vm867, %v1238, %v1062
        %v1247 = vsel %vm876, %v1239, %v1072
        %v1248 = vsel %vm876, %v1240, %v1074
        %v1249 = vsel %vm876, %v1241, %v1076
        %v1250 = vsel %vm876, %v1242, %v1078
        %v1251 = vsel %vm876, %v1243, %v1080
        %v1252 = vsel %vm876, %v1244, %v1082
        %v1253 = vsel %vm876, %v1245, %v1084
        %v1254 = vsel %vm876, %v1246, %v1086
        %v1255 = vsel %vm885, %v1247, %v1096
        %v1256 = vsel %vm885, %v1248, %v1098
        %v1257 = vsel %vm885, %v1249, %v1100
        %v1258 = vsel %vm885, %v1250, %v1102
        %v1259 = vsel %vm885, %v1251, %v1104
        %v1260 = vsel %vm885, %v1252, %v1106
        %v1261 = vsel %vm885, %v1253, %v1108
        %v1262 = vsel %vm885, %v1254, %v1110
        %v1263 = vsel %vm894, %v1255, %v1120
        %v1264 = vsel %vm894, %v1256, %v1122
        %v1265 = vsel %vm894, %v1257, %v1124
        %v1266 = vsel %vm894, %v1258, %v1126
        %v1267 = vsel %vm894, %v1259, %v1128
        %v1268 = vsel %vm894, %v1260, %v1130
        %v1269 = vsel %vm894, %v1261, %v1132
        %v1270 = vsel %vm894, %v1262, %v1134
        %v1271 = vsel %vm903, %v1263, %v1144
        %v1272 = vsel %vm903, %v1264, %v1146
        %v1273 = vsel %vm903, %v1265, %v1148
        %v1274 = vsel %vm903, %v1266, %v1150
        %v1275 = vsel %vm903, %v1267, %v1152
        %v1276 = vsel %vm903, %v1268, %v1154
        %v1277 = vsel %vm903, %v1269, %v1156
        %v1278 = vsel %vm903, %v1270, %v1158
        %v1279 = vsel %vm912, %v1271, %v1168
        %v1280 = vsel %vm912, %v1272, %v1170
        %v1281 = vsel %vm912, %v1273, %v1172
        %v1282 = vsel %vm912, %v1274, %v1174
        %v1283 = vsel %vm912, %v1275, %v1176
        %v1284 = vsel %vm912, %v1276, %v1178
        %v1285 = vsel %vm912, %v1277, %v1180
        %v1286 = vsel %vm912, %v1278, %v1182
        %v1287 = vsel %vm921, %v1279, %v1192
        %v1288 = vsel %vm921, %v1280, %v1194
        %v1289 = vsel %vm921, %v1281, %v1196
        %v1290 = vsel %vm921, %v1282, %v1198
        %v1291 = vsel %vm921, %v1283, %v1200
        %v1292 = vsel %vm921, %v1284, %v1202
        %v1293 = vsel %vm921, %v1285, %v1204
        %v1294 = vsel %vm921, %v1286, %v1206
        %1303 = vrot.lane.b32.xlu0 %v1287, 64
        %v1304 = vpop.permute.xlu0 %1303
        %1305 = vrot.lane.b32.xlu0 %v1288, 64
        %v1306 = vpop.permute.xlu0 %1305
        %1307 = vrot.lane.b32.xlu0 %v1289, 64
        %v1308 = vpop.permute.xlu0 %1307
        %1309 = vrot.lane.b32.xlu0 %v1290, 64
        %v1310 = vpop.permute.xlu0 %1309
        %1311 = vrot.lane.b32.xlu0 %v1291, 64
        %v1312 = vpop.permute.xlu0 %1311
        %1313 = vrot.lane.b32.xlu0 %v1292, 64
        %v1314 = vpop.permute.xlu0 %1313
        %1315 = vrot.lane.b32.xlu0 %v1293, 64
        %v1316 = vpop.permute.xlu0 %1315
        %1317 = vrot.lane.b32.xlu0 %v1294, 64
        %v1318 = vpop.permute.xlu0 %1317
        %vm1327 = vcmask 523264
        %v1328 = vsel %vm1327, %v967, %v1304
        %v1329 = vsel %vm1327, %v968, %v1306
        %v1330 = vsel %vm1327, %v969, %v1308
        %v1331 = vsel %vm1327, %v970, %v1310
        %v1332 = vsel %vm1327, %v971, %v1312
        %v1333 = vsel %vm1327, %v972, %v1314
        %v1334 = vsel %vm1327, %v973, %v1316
        %v1335 = vsel %vm1327, %v974, %v1318
        %v1336 = vpack.c.bf16 %v1329, %v1328
        %v1337 = vpack.c.bf16 %v1331, %v1330
        %v1338 = vpack.c.bf16 %v1333, %v1332
        %v1339 = vpack.c.bf16 %v1335, %v1334
        %v1340 = vld [vmem:[%s1] sm:$0xf]
        %v1341 = vld [vmem:[%s1 + $0x4] sm:$0xf]
        %v1342 = vld [vmem:[%s1 + $0x8] sm:$0xf]
        %v1343 = vld [vmem:[%s1 + $0xc] sm:$0xf]
        %v1344 = vld [vmem:[%s1 + $0x10] sm:$0xf]
        %v1345 = vld [vmem:[%s1 + $0x14] sm:$0xf]
        %v1346 = vld [vmem:[%s1 + $0x18] sm:$0xf]
        %v1347 = vld [vmem:[%s1 + $0x1c] sm:$0xf]
        %v1348 = vld [vmem:[%s1 + $0x20] sm:$0xf]
        %v1349 = vld [vmem:[%s1 + $0x24] sm:$0xf]
        %v1350 = vld [vmem:[%s1 + $0x28] sm:$0xf]
        %v1351 = vld [vmem:[%s1 + $0x2c] sm:$0xf]
        %v1352 = vld [vmem:[%s1 + $0x30] sm:$0xf]
        %v1353 = vld [vmem:[%s1 + $0x34] sm:$0x3]
        %v1354 = vld [vmem:[%s2] sm:$0x1]
        %v1356 = vlaneseq
        %v1357 = vshrl.u32 %v1356, 7
        %v1358 = vsub.s32 0, %v1357
        %v1359 = vrot.slane %v1354, %v1358
        %v1375 = vunpack.c.l.b16 %v1340
        %v1376 = vunpack.c.l.b16 %v1341
        %v1377 = vunpack.c.l.b16 %v1342
        %v1378 = vunpack.c.l.b16 %v1343
        %v1379 = vunpack.c.l.b16 %v1344
        %v1380 = vunpack.c.l.b16 %v1345
        %v1381 = vunpack.c.l.b16 %v1346
        %v1382 = vunpack.c.l.b16 %v1347
        %v1383 = vunpack.c.l.b16 %v1348
        %v1384 = vunpack.c.l.b16 %v1349
        %v1385 = vunpack.c.l.b16 %v1350
        %v1386 = vunpack.c.l.b16 %v1351
        %v1387 = vunpack.c.l.b16 %v1352
        %v1388 = vunpack.c.l.b16 %v1353
        %v1389 = vpack.c.b16 %v1376, %v1375
        %v1390 = vpack.c.b16 %v1378, %v1377
        %v1391 = vpack.c.b16 %v1380, %v1379
        %v1392 = vpack.c.b16 %v1382, %v1381
        %v1393 = vpack.c.b16 %v1384, %v1383
        %v1394 = vpack.c.b16 %v1386, %v1385
        %v1395 = vpack.c.b16 %v1388, %v1387
        %vm1402 = vcmask 883712
        %v1404 = vsel %vm1402, %v1336, 0
        %v1407 = vsel %vm1402, %v1337, 0
        %v1410 = vsel %vm1402, %v1338, 0
        %v1413 = vsel %vm1402, %v1339, 0
        %v1416 = vsel %vm271, %v1395, 0
        %1418 = vmatprep.subr.bf16.mxu0 0
        %1419 = vmatpush1.bf16.msra.mxu0 0
        %1420 = vmatprep.subr.bf16.mxu0 0
        %1421 = vmatpush1.bf16.msra.mxu0 %v1416
        %1422 = vmatprep.subr.bf16.mxu0 0
        %1423 = vmatpush1.bf16.msra.mxu0 %v1394
        %1424 = vmatprep.subr.bf16.mxu0 0
        %1425 = vmatpush1.bf16.msra.mxu0 %v1393
        %1426 = vmatprep.subr.bf16.mxu0 0
        %1427 = vmatpush1.bf16.msra.mxu0 %v1392
        %1428 = vmatprep.subr.bf16.mxu0 0
        %1429 = vmatpush1.bf16.msra.mxu0 %v1391
        %1430 = vmatprep.subr.bf16.mxu0 0
        %1431 = vmatpush1.bf16.msra.mxu0 %v1390
        %1432 = vmatprep.subr.bf16.mxu0 0
        %1433 = vmatpush1.bf16.msra.mxu0 %v1389
        %1434 = vmatprep.subr.bf16.mxu0 0
        %1435 = vmatpush2.bf16.msra.mxu0 0
        %1436 = vmatprep.subr.bf16.mxu0 0
        %1437 = vmatpush2.bf16.msra.mxu0 0
        %1438 = vmatprep.subr.bf16.mxu0 0
        %1439 = vmatpush2.bf16.msra.mxu0 0
        %1440 = vmatprep.subr.bf16.mxu0 0
        %1441 = vmatpush2.bf16.msra.mxu0 0
        %1442 = vmatprep.subr.bf16.mxu0 0
        %1443 = vmatpush2.bf16.msra.mxu0 0
        %1444 = vmatprep.subr.bf16.mxu0 0
        %1445 = vmatpush2.bf16.msra.mxu0 0
        %1446 = vmatprep.subr.bf16.mxu0 0
        %1447 = vmatpush2.bf16.msra.mxu0 0
        %1448 = vmatprep.subr.bf16.mxu0 0
        %1449 = vmatpush2.bf16.msra.mxu0 0
        %1450 = vmatprep.mubr.bf16.mxu0 0
        %1451 = vmatmul.mubr.bf16.gmra.mxu0 %v1404
        %v1452 = vpop.f32.mrf.mxu0
        %v1453 = vadd.f32 %v1359, %v1452
        %v1454 = vpop.f32.mrf.mxu0
        %v1455 = vpop.f32.mrf.mxu0
        %v1456 = vadd.f32 %v1359, %v1455
        %v1457 = vpop.f32.mrf.mxu0
        %1458 = vmatprep.mubr.bf16.mxu0 0
        %1459 = vmatmul.mubr.bf16.gmra.mxu0 %v1407
        %v1460 = vpop.f32.mrf.mxu0
        %v1461 = vadd.f32 %v1359, %v1460
        %v1462 = vpop.f32.mrf.mxu0
        %v1463 = vpop.f32.mrf.mxu0
        %v1464 = vadd.f32 %v1359, %v1463
        %v1465 = vpop.f32.mrf.mxu0
        %1466 = vmatprep.mubr.bf16.mxu0 0
        %1467 = vmatmul.mubr.bf16.gmra.mxu0 %v1410
        %v1468 = vpop.f32.mrf.mxu0
        %v1469 = vadd.f32 %v1359, %v1468
        %v1470 = vpop.f32.mrf.mxu0
        %v1471 = vpop.f32.mrf.mxu0
        %v1472 = vadd.f32 %v1359, %v1471
        %v1473 = vpop.f32.mrf.mxu0
        %1474 = vmatprep.mubr.bf16.mxu0 0
        %1475 = vmatmul.mubr.bf16.gmra.mxu0 %v1413
        %v1476 = vpop.f32.mrf.mxu0
        %v1477 = vadd.f32 %v1359, %v1476
        %v1478 = vpop.f32.mrf.mxu0
        %v1479 = vpop.f32.mrf.mxu0
        %v1480 = vadd.f32 %v1359, %v1479
        %v1481 = vpop.f32.mrf.mxu0
        %1482 = vdwg.mxu0
        %vm1483 = vcmp.gt.f32.partialorder %v1453, 0.0
        %vm1484 = vcmp.gt.f32.partialorder %v1456, 0.0
        %vm1485 = vcmp.gt.f32.partialorder %v1461, 0.0
        %vm1486 = vcmp.gt.f32.partialorder %v1464, 0.0
        %vm1487 = vcmp.gt.f32.partialorder %v1469, 0.0
        %vm1488 = vcmp.gt.f32.partialorder %v1472, 0.0
        %vm1489 = vcmp.gt.f32.partialorder %v1477, 0.0
        %vm1490 = vcmp.gt.f32.partialorder %v1480, 0.0
        %v1491 = vmul.f32 %v1453, 0.1
        %v1492 = vmul.f32 %v1456, 0.1
        %v1493 = vmul.f32 %v1461, 0.1
        %v1494 = vmul.f32 %v1464, 0.1
        %v1495 = vmul.f32 %v1469, 0.1
        %v1496 = vmul.f32 %v1472, 0.1
        %v1497 = vmul.f32 %v1477, 0.1
        %v1498 = vmul.f32 %v1480, 0.1
        %v1499 = vsel %vm1483, %v1453, %v1491
        %v1500 = vsel %vm1484, %v1456, %v1492
        %v1501 = vsel %vm1485, %v1461, %v1493
        %v1502 = vsel %vm1486, %v1464, %v1494
        %v1503 = vsel %vm1487, %v1469, %v1495
        %v1504 = vsel %vm1488, %v1472, %v1496
        %v1505 = vsel %vm1489, %v1477, %v1497
        %v1506 = vsel %vm1490, %v1480, %v1498
        %1507 = vst [vmem:[%s163] sm:$0xff] %v1499
        %1508 = vst [vmem:[%s163 + $0x8] sm:$0xff] %v1500
        %1509 = vst [vmem:[%s163 + $0x10] sm:$0xff] %v1501
        %1510 = vst [vmem:[%s163 + $0x18] sm:$0xff] %v1502
        %1511 = vst [vmem:[%s163 + $0x20] sm:$0xff] %v1503
        %1512 = vst [vmem:[%s163 + $0x28] sm:$0xff] %v1504
        %1513 = vst [vmem:[%s163 + $0x30] sm:$0xff] %v1505
        %1514 = vst [vmem:[%s163 + $0x38] sm:$0xff] %v1506
        %s1515 = scalar_lea.vmem %s168, 160
        %v1516 = vld [vmem:[%s1515] sm:$0xff]
        %v1517 = vld [vmem:[%s1515 + $0x8] sm:$0x3]
        %v1518 = vld [vmem:[%s1515 + $0x10] sm:$0xff]
        %v1519 = vld [vmem:[%s1515 + $0x18] sm:$0x3]
        %v1520 = vld [vmem:[%s1515 + $0x20] sm:$0xff]
        %v1521 = vld [vmem:[%s1515 + $0x28] sm:$0x3]
        %v1522 = vld [vmem:[%s1515 + $0x30] sm:$0xff]
        %v1523 = vld [vmem:[%s1515 + $0x38] sm:$0x3]
        %v1524 = vld [vmem:[%s1515 + $0x40] sm:$0xff]
        %v1525 = vld [vmem:[%s1515 + $0x48] sm:$0x3]
        %v1526 = vld [vmem:[%s1515 + $0x50] sm:$0xff]
        %v1527 = vld [vmem:[%s1515 + $0x58] sm:$0x3]
        %v1528 = vld [vmem:[%s1515 + $0x60] sm:$0xff]
        %v1529 = vld [vmem:[%s1515 + $0x68] sm:$0x3]
        %v1530 = vld [vmem:[%s1515 + $0x70] sm:$0xff]
        %v1531 = vld [vmem:[%s1515 + $0x78] sm:$0x3]
        %v1532 = vld [vmem:[%s1515 + $0x80] sm:$0xff]
        %v1533 = vld [vmem:[%s1515 + $0x88] sm:$0x3]
        %v1534 = vld [vmem:[%s1515 + $0x90] sm:$0xff]
        %v1535 = vld [vmem:[%s1515 + $0x98] sm:$0x3]
        %v1536 = vld [vmem:[%s1515 + $0xa0] sm:$0xff]
        %v1537 = vld [vmem:[%s1515 + $0xa8] sm:$0x3]
        %v1538 = vld [vmem:[%s1515 + $0xb0] sm:$0xff]
        %v1539 = vld [vmem:[%s1515 + $0xb8] sm:$0x3]
        %v1540 = vld [vmem:[%s1515 + $0xc0] sm:$0xff]
        %v1541 = vld [vmem:[%s1515 + $0xc8] sm:$0x3]
        %v1542 = vld [vmem:[%s1515 + $0xd0] sm:$0xff]
        %v1543 = vld [vmem:[%s1515 + $0xd8] sm:$0x3]
        %v1544 = vld [vmem:[%s1515 + $0xe0] sm:$0xff]
        %v1545 = vld [vmem:[%s1515 + $0xe8] sm:$0x3]
        %v1546 = vld [vmem:[%s1515 + $0xf0] sm:$0xff]
        %v1547 = vld [vmem:[%s1515 + $0xf8] sm:$0x3]
        %v1548 = vld [vmem:[%s1515 + $0x100] sm:$0xff]
        %v1549 = vld [vmem:[%s1515 + $0x108] sm:$0x3]
        %v1550 = vld [vmem:[%s1515 + $0x110] sm:$0xff]
        %v1551 = vld [vmem:[%s1515 + $0x118] sm:$0x3]
        %v1552 = vld [vmem:[%s1515 + $0x120] sm:$0xff]
        %v1553 = vld [vmem:[%s1515 + $0x128] sm:$0x3]
        %v1554 = vld [vmem:[%s1515 + $0x130] sm:$0xff]
        %v1555 = vld [vmem:[%s1515 + $0x138] sm:$0x3]
        %v1556 = vld [vmem:[%s1515 + $0x140] sm:$0xff]
        %v1557 = vld [vmem:[%s1515 + $0x148] sm:$0x3]
        %v1558 = vld [vmem:[%s1515 + $0x150] sm:$0xff]
        %v1559 = vld [vmem:[%s1515 + $0x158] sm:$0x3]
        %v1560 = vld [vmem:[%s1515 + $0x160] sm:$0xff]
        %v1561 = vld [vmem:[%s1515 + $0x168] sm:$0x3]
        %v1562 = vld [vmem:[%s1515 + $0x170] sm:$0xff]
        %v1563 = vld [vmem:[%s1515 + $0x178] sm:$0x3]
        %v1564 = vld [vmem:[%s1515 + $0x180] sm:$0xff]
        %v1565 = vld [vmem:[%s1515 + $0x188] sm:$0x3]
        %v1566 = vld [vmem:[%s1515 + $0x190] sm:$0xff]
        %v1567 = vld [vmem:[%s1515 + $0x198] sm:$0x3]
        %v1568 = vld [vmem:[%s1515 + $0x1a0] sm:$0xff]
        %v1569 = vld [vmem:[%s1515 + $0x1a8] sm:$0x3]
        %v1570 = vld [vmem:[%s1515 + $0x1b0] sm:$0xff]
        %v1571 = vld [vmem:[%s1515 + $0x1b8] sm:$0x3]
        %v1572 = vld [vmem:[%s1515 + $0x1c0] sm:$0xff]
        %v1573 = vld [vmem:[%s1515 + $0x1c8] sm:$0x3]
        %v1574 = vld [vmem:[%s1515 + $0x1d0] sm:$0xff]
        %v1575 = vld [vmem:[%s1515 + $0x1d8] sm:$0x3]
        %v1592 = vrot.slane %v1516, 1
        %v1593 = vrot.slane %v1517, 1
        %v1594 = vsel %vm246, %v1592, %v1593
        %v1595 = vrot.slane %v1518, 1
        %v1596 = vrot.slane %v1519, 1
        %v1597 = vsel %vm246, %v1595, %v1596
        %v1598 = vrot.slane %v1520, 1
        %v1599 = vrot.slane %v1521, 1
        %v1600 = vsel %vm246, %v1598, %v1599
        %v1601 = vrot.slane %v1522, 1
        %v1602 = vrot.slane %v1523, 1
        %v1603 = vsel %vm246, %v1601, %v1602
        %v1604 = vrot.slane %v1524, 1
        %v1605 = vrot.slane %v1525, 1
        %v1606 = vsel %vm246, %v1604, %v1605
        %v1607 = vrot.slane %v1526, 1
        %v1608 = vrot.slane %v1527, 1
        %v1609 = vsel %vm246, %v1607, %v1608
        %v1610 = vrot.slane %v1528, 1
        %v1611 = vrot.slane %v1529, 1
        %v1612 = vsel %vm246, %v1610, %v1611
        %v1613 = vrot.slane %v1530, 1
        %v1614 = vrot.slane %v1531, 1
        %v1615 = vsel %vm246, %v1613, %v1614
        %v1616 = vrot.slane %v1516, 2
        %v1617 = vrot.slane %v1517, 2
        %v1618 = vsel %vm271, %v1616, %v1617
        %v1619 = vrot.slane %v1518, 2
        %v1620 = vrot.slane %v1519, 2
        %v1621 = vsel %vm271, %v1619, %v1620
        %v1622 = vrot.slane %v1520, 2
        %v1623 = vrot.slane %v1521, 2
        %v1624 = vsel %vm271, %v1622, %v1623
        %v1625 = vrot.slane %v1522, 2
        %v1626 = vrot.slane %v1523, 2
        %v1627 = vsel %vm271, %v1625, %v1626
        %v1628 = vrot.slane %v1524, 2
        %v1629 = vrot.slane %v1525, 2
        %v1630 = vsel %vm271, %v1628, %v1629
        %v1631 = vrot.slane %v1526, 2
        %v1632 = vrot.slane %v1527, 2
        %v1633 = vsel %vm271, %v1631, %v1632
        %v1634 = vrot.slane %v1528, 2
        %v1635 = vrot.slane %v1529, 2
        %v1636 = vsel %vm271, %v1634, %v1635
        %v1637 = vrot.slane %v1530, 2
        %v1638 = vrot.slane %v1531, 2
        %v1639 = vsel %vm271, %v1637, %v1638
        %v1642 = vrot.slane %v1532, 1
        %v1643 = vrot.slane %v1533, 1
        %v1644 = vsel %vm246, %v1642, %v1643
        %v1645 = vrot.slane %v1532, 2
        %v1646 = vrot.slane %v1533, 2
        %v1647 = vsel %vm271, %v1645, %v1646
        %v1650 = vrot.slane %v1534, 1
        %v1651 = vrot.slane %v1535, 1
        %v1652 = vsel %vm246, %v1650, %v1651
        %v1653 = vrot.slane %v1534, 2
        %v1654 = vrot.slane %v1535, 2
        %v1655 = vsel %vm271, %v1653, %v1654
        %v1672 = vrot.slane %v1536, 1
        %v1673 = vrot.slane %v1537, 1
        %v1674 = vsel %vm246, %v1672, %v1673
        %v1675 = vrot.slane %v1538, 1
        %v1676 = vrot.slane %v1539, 1
        %v1677 = vsel %vm246, %v1675, %v1676
        %v1678 = vrot.slane %v1540, 1
        %v1679 = vrot.slane %v1541, 1
        %v1680 = vsel %vm246, %v1678, %v1679
        %v1681 = vrot.slane %v1542, 1
        %v1682 = vrot.slane %v1543, 1
        %v1683 = vsel %vm246, %v1681, %v1682
        %v1684 = vrot.slane %v1544, 1
        %v1685 = vrot.slane %v1545, 1
        %v1686 = vsel %vm246, %v1684, %v1685
        %v1687 = vrot.slane %v1546, 1
        %v1688 = vrot.slane %v1547, 1
        %v1689 = vsel %vm246, %v1687, %v1688
        %v1690 = vrot.slane %v1548, 1
        %v1691 = vrot.slane %v1549, 1
        %v1692 = vsel %vm246, %v1690, %v1691
        %v1693 = vrot.slane %v1550, 1
        %v1694 = vrot.slane %v1551, 1
        %v1695 = vsel %vm246, %v1693, %v1694
        %v1696 = vrot.slane %v1536, 2
        %v1697 = vrot.slane %v1537, 2
        %v1698 = vsel %vm271, %v1696, %v1697
        %v1699 = vrot.slane %v1538, 2
        %v1700 = vrot.slane %v1539, 2
        %v1701 = vsel %vm271, %v1699, %v1700
        %v1702 = vrot.slane %v1540, 2
        %v1703 = vrot.slane %v1541, 2
        %v1704 = vsel %vm271, %v1702, %v1703
        %v1705 = vrot.slane %v1542, 2
        %v1706 = vrot.slane %v1543, 2
        %v1707 = vsel %vm271, %v1705, %v1706
        %v1708 = vrot.slane %v1544, 2
        %v1709 = vrot.slane %v1545, 2
        %v1710 = vsel %vm271, %v1708, %v1709
        %v1711 = vrot.slane %v1546, 2
        %v1712 = vrot.slane %v1547, 2
        %v1713 = vsel %vm271, %v1711, %v1712
        %v1714 = vrot.slane %v1548, 2
        %v1715 = vrot.slane %v1549, 2
        %v1716 = vsel %vm271, %v1714, %v1715
        %v1717 = vrot.slane %v1550, 2
        %v1718 = vrot.slane %v1551, 2
        %v1719 = vsel %vm271, %v1717, %v1718
        %v1722 = vrot.slane %v1552, 1
        %v1723 = vrot.slane %v1553, 1
        %v1724 = vsel %vm246, %v1722, %v1723
        %v1725 = vrot.slane %v1552, 2
        %v1726 = vrot.slane %v1553, 2
        %v1727 = vsel %vm271, %v1725, %v1726
        %v1730 = vrot.slane %v1554, 1
        %v1731 = vrot.slane %v1555, 1
        %v1732 = vsel %vm246, %v1730, %v1731
        %v1741 = vrot.slane %v1554, 2
        %v1742 = vrot.slane %v1555, 2
        %v1743 = vsel %vm271, %v1741, %v1742
        %v1760 = vrot.slane %v1556, 1
        %v1761 = vrot.slane %v1557, 1
        %v1762 = vsel %vm246, %v1760, %v1761
        %v1763 = vrot.slane %v1558, 1
        %v1764 = vrot.slane %v1559, 1
        %v1765 = vsel %vm246, %v1763, %v1764
        %v1766 = vrot.slane %v1560, 1
        %v1767 = vrot.slane %v1561, 1
        %v1768 = vsel %vm246, %v1766, %v1767
        %v1769 = vrot.slane %v1562, 1
        %v1770 = vrot.slane %v1563, 1
        %v1771 = vsel %vm246, %v1769, %v1770
        %v1772 = vrot.slane %v1564, 1
        %v1773 = vrot.slane %v1565, 1
        %v1774 = vsel %vm246, %v1772, %v1773
        %v1775 = vrot.slane %v1566, 1
        %v1776 = vrot.slane %v1567, 1
        %v1777 = vsel %vm246, %v1775, %v1776
        %v1778 = vrot.slane %v1568, 1
        %v1779 = vrot.slane %v1569, 1
        %v1780 = vsel %vm246, %v1778, %v1779
        %v1781 = vrot.slane %v1570, 1
        %v1782 = vrot.slane %v1571, 1
        %v1783 = vsel %vm246, %v1781, %v1782
        %v1784 = vrot.slane %v1556, 2
        %v1785 = vrot.slane %v1557, 2
        %v1786 = vsel %vm271, %v1784, %v1785
        %v1787 = vrot.slane %v1558, 2
        %v1788 = vrot.slane %v1559, 2
        %v1789 = vsel %vm271, %v1787, %v1788
        %v1790 = vrot.slane %v1560, 2
        %v1791 = vrot.slane %v1561, 2
        %v1792 = vsel %vm271, %v1790, %v1791
        %v1793 = vrot.slane %v1562, 2
        %v1794 = vrot.slane %v1563, 2
        %v1795 = vsel %vm271, %v1793, %v1794
        %v1796 = vrot.slane %v1564, 2
        %v1797 = vrot.slane %v1565, 2
        %v1798 = vsel %vm271, %v1796, %v1797
        %v1799 = vrot.slane %v1566, 2
        %v1800 = vrot.slane %v1567, 2
        %v1801 = vsel %vm271, %v1799, %v1800
        %v1802 = vrot.slane %v1568, 2
        %v1803 = vrot.slane %v1569, 2
        %v1804 = vsel %vm271, %v1802, %v1803
        %v1805 = vrot.slane %v1570, 2
        %v1806 = vrot.slane %v1571, 2
        %v1807 = vsel %vm271, %v1805, %v1806
        %v1810 = vrot.slane %v1572, 1
        %v1811 = vrot.slane %v1573, 1
        %v1812 = vsel %vm246, %v1810, %v1811
        %v1813 = vrot.slane %v1572, 2
        %v1814 = vrot.slane %v1573, 2
        %v1815 = vsel %vm271, %v1813, %v1814
        %v1818 = vrot.slane %v1574, 1
        %v1819 = vrot.slane %v1575, 1
        %v1820 = vsel %vm246, %v1818, %v1819
        %v1821 = vrot.slane %v1574, 2
        %v1822 = vrot.slane %v1575, 2
        %v1823 = vsel %vm271, %v1821, %v1822
        %1824 = vrot.lane.b32.xlu0 %v1594, 4
        %v1825 = vpop.permute.xlu0 %1824
        %1826 = vrot.lane.b32.xlu0 %v1597, 4
        %v1827 = vpop.permute.xlu0 %1826
        %1828 = vrot.lane.b32.xlu0 %v1600, 4
        %v1829 = vpop.permute.xlu0 %1828
        %1830 = vrot.lane.b32.xlu0 %v1603, 4
        %v1831 = vpop.permute.xlu0 %1830
        %1832 = vrot.lane.b32.xlu0 %v1606, 4
        %v1833 = vpop.permute.xlu0 %1832
        %1834 = vrot.lane.b32.xlu0 %v1609, 4
        %v1835 = vpop.permute.xlu0 %1834
        %1836 = vrot.lane.b32.xlu0 %v1612, 4
        %v1837 = vpop.permute.xlu0 %1836
        %1838 = vrot.lane.b32.xlu0 %v1615, 4
        %v1839 = vpop.permute.xlu0 %1838
        %1848 = vrot.lane.b32.xlu0 %v1618, 8
        %v1849 = vpop.permute.xlu0 %1848
        %1850 = vrot.lane.b32.xlu0 %v1621, 8
        %v1851 = vpop.permute.xlu0 %1850
        %1852 = vrot.lane.b32.xlu0 %v1624, 8
        %v1853 = vpop.permute.xlu0 %1852
        %1854 = vrot.lane.b32.xlu0 %v1627, 8
        %v1855 = vpop.permute.xlu0 %1854
        %1856 = vrot.lane.b32.xlu0 %v1630, 8
        %v1857 = vpop.permute.xlu0 %1856
        %1858 = vrot.lane.b32.xlu0 %v1633, 8
        %v1859 = vpop.permute.xlu0 %1858
        %1860 = vrot.lane.b32.xlu0 %v1636, 8
        %v1861 = vpop.permute.xlu0 %1860
        %1862 = vrot.lane.b32.xlu0 %v1639, 8
        %v1863 = vpop.permute.xlu0 %1862
        %1872 = vrot.lane.b32.xlu0 %v1518, 12
        %v1873 = vpop.permute.xlu0 %1872
        %1874 = vrot.lane.b32.xlu0 %v1520, 12
        %v1875 = vpop.permute.xlu0 %1874
        %1876 = vrot.lane.b32.xlu0 %v1522, 12
        %v1877 = vpop.permute.xlu0 %1876
        %1878 = vrot.lane.b32.xlu0 %v1524, 12
        %v1879 = vpop.permute.xlu0 %1878
        %1880 = vrot.lane.b32.xlu0 %v1526, 12
        %v1881 = vpop.permute.xlu0 %1880
        %1882 = vrot.lane.b32.xlu0 %v1528, 12
        %v1883 = vpop.permute.xlu0 %1882
        %1884 = vrot.lane.b32.xlu0 %v1530, 12
        %v1885 = vpop.permute.xlu0 %1884
        %1886 = vrot.lane.b32.xlu0 %v1532, 12
        %v1887 = vpop.permute.xlu0 %1886
        %1896 = vrot.lane.b32.xlu0 %v1597, 16
        %v1897 = vpop.permute.xlu0 %1896
        %1898 = vrot.lane.b32.xlu0 %v1600, 16
        %v1899 = vpop.permute.xlu0 %1898
        %1900 = vrot.lane.b32.xlu0 %v1603, 16
        %v1901 = vpop.permute.xlu0 %1900
        %1902 = vrot.lane.b32.xlu0 %v1606, 16
        %v1903 = vpop.permute.xlu0 %1902
        %1904 = vrot.lane.b32.xlu0 %v1609, 16
        %v1905 = vpop.permute.xlu0 %1904
        %1906 = vrot.lane.b32.xlu0 %v1612, 16
        %v1907 = vpop.permute.xlu0 %1906
        %1908 = vrot.lane.b32.xlu0 %v1615, 16
        %v1909 = vpop.permute.xlu0 %1908
        %1910 = vrot.lane.b32.xlu0 %v1644, 16
        %v1911 = vpop.permute.xlu0 %1910
        %1920 = vrot.lane.b32.xlu0 %v1621, 20
        %v1921 = vpop.permute.xlu0 %1920
        %1922 = vrot.lane.b32.xlu0 %v1624, 20
        %v1923 = vpop.permute.xlu0 %1922
        %1924 = vrot.lane.b32.xlu0 %v1627, 20
        %v1925 = vpop.permute.xlu0 %1924
        %1926 = vrot.lane.b32.xlu0 %v1630, 20
        %v1927 = vpop.permute.xlu0 %1926
        %1928 = vrot.lane.b32.xlu0 %v1633, 20
        %v1929 = vpop.permute.xlu0 %1928
        %1930 = vrot.lane.b32.xlu0 %v1636, 20
        %v1931 = vpop.permute.xlu0 %1930
        %1932 = vrot.lane.b32.xlu0 %v1639, 20
        %v1933 = vpop.permute.xlu0 %1932
        %1934 = vrot.lane.b32.xlu0 %v1647, 20
        %v1935 = vpop.permute.xlu0 %1934
        %1944 = vrot.lane.b32.xlu0 %v1520, 24
        %v1945 = vpop.permute.xlu0 %1944
        %1946 = vrot.lane.b32.xlu0 %v1522, 24
        %v1947 = vpop.permute.xlu0 %1946
        %1948 = vrot.lane.b32.xlu0 %v1524, 24
        %v1949 = vpop.permute.xlu0 %1948
        %1950 = vrot.lane.b32.xlu0 %v1526, 24
        %v1951 = vpop.permute.xlu0 %1950
        %1952 = vrot.lane.b32.xlu0 %v1528, 24
        %v1953 = vpop.permute.xlu0 %1952
        %1954 = vrot.lane.b32.xlu0 %v1530, 24
        %v1955 = vpop.permute.xlu0 %1954
        %1956 = vrot.lane.b32.xlu0 %v1532, 24
        %v1957 = vpop.permute.xlu0 %1956
        %1958 = vrot.lane.b32.xlu0 %v1534, 24
        %v1959 = vpop.permute.xlu0 %1958
        %1968 = vrot.lane.b32.xlu0 %v1600, 28
        %v1969 = vpop.permute.xlu0 %1968
        %1970 = vrot.lane.b32.xlu0 %v1603, 28
        %v1971 = vpop.permute.xlu0 %1970
        %1972 = vrot.lane.b32.xlu0 %v1606, 28
        %v1973 = vpop.permute.xlu0 %1972
        %1974 = vrot.lane.b32.xlu0 %v1609, 28
        %v1975 = vpop.permute.xlu0 %1974
        %1976 = vrot.lane.b32.xlu0 %v1612, 28
        %v1977 = vpop.permute.xlu0 %1976
        %1978 = vrot.lane.b32.xlu0 %v1615, 28
        %v1979 = vpop.permute.xlu0 %1978
        %1980 = vrot.lane.b32.xlu0 %v1644, 28
        %v1981 = vpop.permute.xlu0 %1980
        %1982 = vrot.lane.b32.xlu0 %v1652, 28
        %v1983 = vpop.permute.xlu0 %1982
        %1992 = vrot.lane.b32.xlu0 %v1624, 32
        %v1993 = vpop.permute.xlu0 %1992
        %1994 = vrot.lane.b32.xlu0 %v1627, 32
        %v1995 = vpop.permute.xlu0 %1994
        %1996 = vrot.lane.b32.xlu0 %v1630, 32
        %v1997 = vpop.permute.xlu0 %1996
        %1998 = vrot.lane.b32.xlu0 %v1633, 32
        %v1999 = vpop.permute.xlu0 %1998
        %2000 = vrot.lane.b32.xlu0 %v1636, 32
        %v2001 = vpop.permute.xlu0 %2000
        %2002 = vrot.lane.b32.xlu0 %v1639, 32
        %v2003 = vpop.permute.xlu0 %2002
        %2004 = vrot.lane.b32.xlu0 %v1647, 32
        %v2005 = vpop.permute.xlu0 %2004
        %2006 = vrot.lane.b32.xlu0 %v1655, 32
        %v2007 = vpop.permute.xlu0 %2006
        %2016 = vrot.lane.b32.xlu0 %v1536, 36
        %v2017 = vpop.permute.xlu0 %2016
        %2018 = vrot.lane.b32.xlu0 %v1538, 36
        %v2019 = vpop.permute.xlu0 %2018
        %2020 = vrot.lane.b32.xlu0 %v1540, 36
        %v2021 = vpop.permute.xlu0 %2020
        %2022 = vrot.lane.b32.xlu0 %v1542, 36
        %v2023 = vpop.permute.xlu0 %2022
        %2024 = vrot.lane.b32.xlu0 %v1544, 36
        %v2025 = vpop.permute.xlu0 %2024
        %2026 = vrot.lane.b32.xlu0 %v1546, 36
        %v2027 = vpop.permute.xlu0 %2026
        %2028 = vrot.lane.b32.xlu0 %v1548, 36
        %v2029 = vpop.permute.xlu0 %2028
        %2030 = vrot.lane.b32.xlu0 %v1550, 36
        %v2031 = vpop.permute.xlu0 %2030
        %2040 = vrot.lane.b32.xlu0 %v1674, 40
        %v2041 = vpop.permute.xlu0 %2040
        %2042 = vrot.lane.b32.xlu0 %v1677, 40
        %v2043 = vpop.permute.xlu0 %2042
        %2044 = vrot.lane.b32.xlu0 %v1680, 40
        %v2045 = vpop.permute.xlu0 %2044
        %2046 = vrot.lane.b32.xlu0 %v1683, 40
        %v2047 = vpop.permute.xlu0 %2046
        %2048 = vrot.lane.b32.xlu0 %v1686, 40
        %v2049 = vpop.permute.xlu0 %2048
        %2050 = vrot.lane.b32.xlu0 %v1689, 40
        %v2051 = vpop.permute.xlu0 %2050
        %2052 = vrot.lane.b32.xlu0 %v1692, 40
        %v2053 = vpop.permute.xlu0 %2052
        %2054 = vrot.lane.b32.xlu0 %v1695, 40
        %v2055 = vpop.permute.xlu0 %2054
        %2064 = vrot.lane.b32.xlu0 %v1698, 44
        %v2065 = vpop.permute.xlu0 %2064
        %2066 = vrot.lane.b32.xlu0 %v1701, 44
        %v2067 = vpop.permute.xlu0 %2066
        %2068 = vrot.lane.b32.xlu0 %v1704, 44
        %v2069 = vpop.permute.xlu0 %2068
        %2070 = vrot.lane.b32.xlu0 %v1707, 44
        %v2071 = vpop.permute.xlu0 %2070
        %2072 = vrot.lane.b32.xlu0 %v1710, 44
        %v2073 = vpop.permute.xlu0 %2072
        %2074 = vrot.lane.b32.xlu0 %v1713, 44
        %v2075 = vpop.permute.xlu0 %2074
        %2076 = vrot.lane.b32.xlu0 %v1716, 44
        %v2077 = vpop.permute.xlu0 %2076
        %2078 = vrot.lane.b32.xlu0 %v1719, 44
        %v2079 = vpop.permute.xlu0 %2078
        %2088 = vrot.lane.b32.xlu0 %v1538, 48
        %v2089 = vpop.permute.xlu0 %2088
        %2090 = vrot.lane.b32.xlu0 %v1540, 48
        %v2091 = vpop.permute.xlu0 %2090
        %2092 = vrot.lane.b32.xlu0 %v1542, 48
        %v2093 = vpop.permute.xlu0 %2092
        %2094 = vrot.lane.b32.xlu0 %v1544, 48
        %v2095 = vpop.permute.xlu0 %2094
        %2096 = vrot.lane.b32.xlu0 %v1546, 48
        %v2097 = vpop.permute.xlu0 %2096
        %2098 = vrot.lane.b32.xlu0 %v1548, 48
        %v2099 = vpop.permute.xlu0 %2098
        %2100 = vrot.lane.b32.xlu0 %v1550, 48
        %v2101 = vpop.permute.xlu0 %2100
        %2102 = vrot.lane.b32.xlu0 %v1552, 48
        %v2103 = vpop.permute.xlu0 %2102
        %2112 = vrot.lane.b32.xlu0 %v1677, 52
        %v2113 = vpop.permute.xlu0 %2112
        %2114 = vrot.lane.b32.xlu0 %v1680, 52
        %v2115 = vpop.permute.xlu0 %2114
        %2116 = vrot.lane.b32.xlu0 %v1683, 52
        %v2117 = vpop.permute.xlu0 %2116
        %2118 = vrot.lane.b32.xlu0 %v1686, 52
        %v2119 = vpop.permute.xlu0 %2118
        %2120 = vrot.lane.b32.xlu0 %v1689, 52
        %v2121 = vpop.permute.xlu0 %2120
        %2122 = vrot.lane.b32.xlu0 %v1692, 52
        %v2123 = vpop.permute.xlu0 %2122
        %2124 = vrot.lane.b32.xlu0 %v1695, 52
        %v2125 = vpop.permute.xlu0 %2124
        %2126 = vrot.lane.b32.xlu0 %v1724, 52
        %v2127 = vpop.permute.xlu0 %2126
        %2136 = vrot.lane.b32.xlu0 %v1701, 56
        %v2137 = vpop.permute.xlu0 %2136
        %2138 = vrot.lane.b32.xlu0 %v1704, 56
        %v2139 = vpop.permute.xlu0 %2138
        %2140 = vrot.lane.b32.xlu0 %v1707, 56
        %v2141 = vpop.permute.xlu0 %2140
        %2142 = vrot.lane.b32.xlu0 %v1710, 56
        %v2143 = vpop.permute.xlu0 %2142
        %2144 = vrot.lane.b32.xlu0 %v1713, 56
        %v2145 = vpop.permute.xlu0 %2144
        %2146 = vrot.lane.b32.xlu0 %v1716, 56
        %v2147 = vpop.permute.xlu0 %2146
        %2148 = vrot.lane.b32.xlu0 %v1719, 56
        %v2149 = vpop.permute.xlu0 %2148
        %2150 = vrot.lane.b32.xlu0 %v1727, 56
        %v2151 = vpop.permute.xlu0 %2150
        %2160 = vrot.lane.b32.xlu0 %v1540, 60
        %v2161 = vpop.permute.xlu0 %2160
        %2162 = vrot.lane.b32.xlu0 %v1542, 60
        %v2163 = vpop.permute.xlu0 %2162
        %2164 = vrot.lane.b32.xlu0 %v1544, 60
        %v2165 = vpop.permute.xlu0 %2164
        %2166 = vrot.lane.b32.xlu0 %v1546, 60
        %v2167 = vpop.permute.xlu0 %2166
        %2168 = vrot.lane.b32.xlu0 %v1548, 60
        %v2169 = vpop.permute.xlu0 %2168
        %2170 = vrot.lane.b32.xlu0 %v1550, 60
        %v2171 = vpop.permute.xlu0 %2170
        %2172 = vrot.lane.b32.xlu0 %v1552, 60
        %v2173 = vpop.permute.xlu0 %2172
        %2174 = vrot.lane.b32.xlu0 %v1554, 60
        %v2175 = vpop.permute.xlu0 %2174
        %v2184 = vsel %vm840, %v1516, %v1825
        %v2185 = vsel %vm840, %v1518, %v1827
        %v2186 = vsel %vm840, %v1520, %v1829
        %v2187 = vsel %vm840, %v1522, %v1831
        %v2188 = vsel %vm840, %v1524, %v1833
        %v2189 = vsel %vm840, %v1526, %v1835
        %v2190 = vsel %vm840, %v1528, %v1837
        %v2191 = vsel %vm840, %v1530, %v1839
        %v2192 = vsel %vm849, %v2184, %v1849
        %v2193 = vsel %vm849, %v2185, %v1851
        %v2194 = vsel %vm849, %v2186, %v1853
        %v2195 = vsel %vm849, %v2187, %v1855
        %v2196 = vsel %vm849, %v2188, %v1857
        %v2197 = vsel %vm849, %v2189, %v1859
        %v2198 = vsel %vm849, %v2190, %v1861
        %v2199 = vsel %vm849, %v2191, %v1863
        %v2200 = vsel %vm858, %v2192, %v1873
        %v2201 = vsel %vm858, %v2193, %v1875
        %v2202 = vsel %vm858, %v2194, %v1877
        %v2203 = vsel %vm858, %v2195, %v1879
        %v2204 = vsel %vm858, %v2196, %v1881
        %v2205 = vsel %vm858, %v2197, %v1883
        %v2206 = vsel %vm858, %v2198, %v1885
        %v2207 = vsel %vm858, %v2199, %v1887
        %v2208 = vsel %vm867, %v2200, %v1897
        %v2209 = vsel %vm867, %v2201, %v1899
        %v2210 = vsel %vm867, %v2202, %v1901
        %v2211 = vsel %vm867, %v2203, %v1903
        %v2212 = vsel %vm867, %v2204, %v1905
        %v2213 = vsel %vm867, %v2205, %v1907
        %v2214 = vsel %vm867, %v2206, %v1909
        %v2215 = vsel %vm867, %v2207, %v1911
        %v2216 = vsel %vm876, %v2208, %v1921
        %v2217 = vsel %vm876, %v2209, %v1923
        %v2218 = vsel %vm876, %v2210, %v1925
        %v2219 = vsel %vm876, %v2211, %v1927
        %v2220 = vsel %vm876, %v2212, %v1929
        %v2221 = vsel %vm876, %v2213, %v1931
        %v2222 = vsel %vm876, %v2214, %v1933
        %v2223 = vsel %vm876, %v2215, %v1935
        %v2224 = vsel %vm885, %v2216, %v1945
        %v2225 = vsel %vm885, %v2217, %v1947
        %v2226 = vsel %vm885, %v2218, %v1949
        %v2227 = vsel %vm885, %v2219, %v1951
        %v2228 = vsel %vm885, %v2220, %v1953
        %v2229 = vsel %vm885, %v2221, %v1955
        %v2230 = vsel %vm885, %v2222, %v1957
        %v2231 = vsel %vm885, %v2223, %v1959
        %v2232 = vsel %vm894, %v2224, %v1969
        %v2233 = vsel %vm894, %v2225, %v1971
        %v2234 = vsel %vm894, %v2226, %v1973
        %v2235 = vsel %vm894, %v2227, %v1975
        %v2236 = vsel %vm894, %v2228, %v1977
        %v2237 = vsel %vm894, %v2229, %v1979
        %v2238 = vsel %vm894, %v2230, %v1981
        %v2239 = vsel %vm894, %v2231, %v1983
        %v2240 = vsel %vm903, %v2232, %v1993
        %v2241 = vsel %vm903, %v2233, %v1995
        %v2242 = vsel %vm903, %v2234, %v1997
        %v2243 = vsel %vm903, %v2235, %v1999
        %v2244 = vsel %vm903, %v2236, %v2001
        %v2245 = vsel %vm903, %v2237, %v2003
        %v2246 = vsel %vm903, %v2238, %v2005
        %v2247 = vsel %vm903, %v2239, %v2007
        %v2248 = vsel %vm912, %v2240, %v2017
        %v2249 = vsel %vm912, %v2241, %v2019
        %v2250 = vsel %vm912, %v2242, %v2021
        %v2251 = vsel %vm912, %v2243, %v2023
        %v2252 = vsel %vm912, %v2244, %v2025
        %v2253 = vsel %vm912, %v2245, %v2027
        %v2254 = vsel %vm912, %v2246, %v2029
        %v2255 = vsel %vm912, %v2247, %v2031
        %v2256 = vsel %vm921, %v2248, %v2041
        %v2257 = vsel %vm921, %v2249, %v2043
        %v2258 = vsel %vm921, %v2250, %v2045
        %v2259 = vsel %vm921, %v2251, %v2047
        %v2260 = vsel %vm921, %v2252, %v2049
        %v2261 = vsel %vm921, %v2253, %v2051
        %v2262 = vsel %vm921, %v2254, %v2053
        %v2263 = vsel %vm921, %v2255, %v2055
        %v2264 = vsel %vm930, %v2256, %v2065
        %v2265 = vsel %vm930, %v2257, %v2067
        %v2266 = vsel %vm930, %v2258, %v2069
        %v2267 = vsel %vm930, %v2259, %v2071
        %v2268 = vsel %vm930, %v2260, %v2073
        %v2269 = vsel %vm930, %v2261, %v2075
        %v2270 = vsel %vm930, %v2262, %v2077
        %v2271 = vsel %vm930, %v2263, %v2079
        %v2272 = vsel %vm939, %v2264, %v2089
        %v2273 = vsel %vm939, %v2265, %v2091
        %v2274 = vsel %vm939, %v2266, %v2093
        %v2275 = vsel %vm939, %v2267, %v2095
        %v2276 = vsel %vm939, %v2268, %v2097
        %v2277 = vsel %vm939, %v2269, %v2099
        %v2278 = vsel %vm939, %v2270, %v2101
        %v2279 = vsel %vm939, %v2271, %v2103
        %v2280 = vsel %vm948, %v2272, %v2113
        %v2281 = vsel %vm948, %v2273, %v2115
        %v2282 = vsel %vm948, %v2274, %v2117
        %v2283 = vsel %vm948, %v2275, %v2119
        %v2284 = vsel %vm948, %v2276, %v2121
        %v2285 = vsel %vm948, %v2277, %v2123
        %v2286 = vsel %vm948, %v2278, %v2125
        %v2287 = vsel %vm948, %v2279, %v2127
        %v2288 = vsel %vm957, %v2280, %v2137
        %v2289 = vsel %vm957, %v2281, %v2139
        %v2290 = vsel %vm957, %v2282, %v2141
        %v2291 = vsel %vm957, %v2283, %v2143
        %v2292 = vsel %vm957, %v2284, %v2145
        %v2293 = vsel %vm957, %v2285, %v2147
        %v2294 = vsel %vm957, %v2286, %v2149
        %v2295 = vsel %vm957, %v2287, %v2151
        %v2296 = vsel %vm966, %v2288, %v2161
        %v2297 = vsel %vm966, %v2289, %v2163
        %v2298 = vsel %vm966, %v2290, %v2165
        %v2299 = vsel %vm966, %v2291, %v2167
        %v2300 = vsel %vm966, %v2292, %v2169
        %v2301 = vsel %vm966, %v2293, %v2171
        %v2302 = vsel %vm966, %v2294, %v2173
        %v2303 = vsel %vm966, %v2295, %v2175
        %2304 = vrot.lane.b32.xlu0 %v1704, 4
        %v2305 = vpop.permute.xlu0 %2304
        %2306 = vrot.lane.b32.xlu0 %v1707, 4
        %v2307 = vpop.permute.xlu0 %2306
        %2308 = vrot.lane.b32.xlu0 %v1710, 4
        %v2309 = vpop.permute.xlu0 %2308
        %2310 = vrot.lane.b32.xlu0 %v1713, 4
        %v2311 = vpop.permute.xlu0 %2310
        %2312 = vrot.lane.b32.xlu0 %v1716, 4
        %v2313 = vpop.permute.xlu0 %2312
        %2314 = vrot.lane.b32.xlu0 %v1719, 4
        %v2315 = vpop.permute.xlu0 %2314
        %2316 = vrot.lane.b32.xlu0 %v1727, 4
        %v2317 = vpop.permute.xlu0 %2316
        %2318 = vrot.lane.b32.xlu0 %v1743, 4
        %v2319 = vpop.permute.xlu0 %2318
        %2328 = vrot.lane.b32.xlu0 %v1556, 8
        %v2329 = vpop.permute.xlu0 %2328
        %2330 = vrot.lane.b32.xlu0 %v1558, 8
        %v2331 = vpop.permute.xlu0 %2330
        %2332 = vrot.lane.b32.xlu0 %v1560, 8
        %v2333 = vpop.permute.xlu0 %2332
        %2334 = vrot.lane.b32.xlu0 %v1562, 8
        %v2335 = vpop.permute.xlu0 %2334
        %2336 = vrot.lane.b32.xlu0 %v1564, 8
        %v2337 = vpop.permute.xlu0 %2336
        %2338 = vrot.lane.b32.xlu0 %v1566, 8
        %v2339 = vpop.permute.xlu0 %2338
        %2340 = vrot.lane.b32.xlu0 %v1568, 8
        %v2341 = vpop.permute.xlu0 %2340
        %2342 = vrot.lane.b32.xlu0 %v1570, 8
        %v2343 = vpop.permute.xlu0 %2342
        %2352 = vrot.lane.b32.xlu0 %v1762, 12
        %v2353 = vpop.permute.xlu0 %2352
        %2354 = vrot.lane.b32.xlu0 %v1765, 12
        %v2355 = vpop.permute.xlu0 %2354
        %2356 = vrot.lane.b32.xlu0 %v1768, 12
        %v2357 = vpop.permute.xlu0 %2356
        %2358 = vrot.lane.b32.xlu0 %v1771, 12
        %v2359 = vpop.permute.xlu0 %2358
        %2360 = vrot.lane.b32.xlu0 %v1774, 12
        %v2361 = vpop.permute.xlu0 %2360
        %2362 = vrot.lane.b32.xlu0 %v1777, 12
        %v2363 = vpop.permute.xlu0 %2362
        %2364 = vrot.lane.b32.xlu0 %v1780, 12
        %v2365 = vpop.permute.xlu0 %2364
        %2366 = vrot.lane.b32.xlu0 %v1783, 12
        %v2367 = vpop.permute.xlu0 %2366
        %2376 = vrot.lane.b32.xlu0 %v1786, 16
        %v2377 = vpop.permute.xlu0 %2376
        %2378 = vrot.lane.b32.xlu0 %v1789, 16
        %v2379 = vpop.permute.xlu0 %2378
        %2380 = vrot.lane.b32.xlu0 %v1792, 16
        %v2381 = vpop.permute.xlu0 %2380
        %2382 = vrot.lane.b32.xlu0 %v1795, 16
        %v2383 = vpop.permute.xlu0 %2382
        %2384 = vrot.lane.b32.xlu0 %v1798, 16
        %v2385 = vpop.permute.xlu0 %2384
        %2386 = vrot.lane.b32.xlu0 %v1801, 16
        %v2387 = vpop.permute.xlu0 %2386
        %2388 = vrot.lane.b32.xlu0 %v1804, 16
        %v2389 = vpop.permute.xlu0 %2388
        %2390 = vrot.lane.b32.xlu0 %v1807, 16
        %v2391 = vpop.permute.xlu0 %2390
        %2400 = vrot.lane.b32.xlu0 %v1558, 20
        %v2401 = vpop.permute.xlu0 %2400
        %2402 = vrot.lane.b32.xlu0 %v1560, 20
        %v2403 = vpop.permute.xlu0 %2402
        %2404 = vrot.lane.b32.xlu0 %v1562, 20
        %v2405 = vpop.permute.xlu0 %2404
        %2406 = vrot.lane.b32.xlu0 %v1564, 20
        %v2407 = vpop.permute.xlu0 %2406
        %2408 = vrot.lane.b32.xlu0 %v1566, 20
        %v2409 = vpop.permute.xlu0 %2408
        %2410 = vrot.lane.b32.xlu0 %v1568, 20
        %v2411 = vpop.permute.xlu0 %2410
        %2412 = vrot.lane.b32.xlu0 %v1570, 20
        %v2413 = vpop.permute.xlu0 %2412
        %2414 = vrot.lane.b32.xlu0 %v1572, 20
        %v2415 = vpop.permute.xlu0 %2414
        %2424 = vrot.lane.b32.xlu0 %v1765, 24
        %v2425 = vpop.permute.xlu0 %2424
        %2426 = vrot.lane.b32.xlu0 %v1768, 24
        %v2427 = vpop.permute.xlu0 %2426
        %2428 = vrot.lane.b32.xlu0 %v1771, 24
        %v2429 = vpop.permute.xlu0 %2428
        %2430 = vrot.lane.b32.xlu0 %v1774, 24
        %v2431 = vpop.permute.xlu0 %2430
        %2432 = vrot.lane.b32.xlu0 %v1777, 24
        %v2433 = vpop.permute.xlu0 %2432
        %2434 = vrot.lane.b32.xlu0 %v1780, 24
        %v2435 = vpop.permute.xlu0 %2434
        %2436 = vrot.lane.b32.xlu0 %v1783, 24
        %v2437 = vpop.permute.xlu0 %2436
        %2438 = vrot.lane.b32.xlu0 %v1812, 24
        %v2439 = vpop.permute.xlu0 %2438
        %2448 = vrot.lane.b32.xlu0 %v1789, 28
        %v2449 = vpop.permute.xlu0 %2448
        %2450 = vrot.lane.b32.xlu0 %v1792, 28
        %v2451 = vpop.permute.xlu0 %2450
        %2452 = vrot.lane.b32.xlu0 %v1795, 28
        %v2453 = vpop.permute.xlu0 %2452
        %2454 = vrot.lane.b32.xlu0 %v1798, 28
        %v2455 = vpop.permute.xlu0 %2454
        %2456 = vrot.lane.b32.xlu0 %v1801, 28
        %v2457 = vpop.permute.xlu0 %2456
        %2458 = vrot.lane.b32.xlu0 %v1804, 28
        %v2459 = vpop.permute.xlu0 %2458
        %2460 = vrot.lane.b32.xlu0 %v1807, 28
        %v2461 = vpop.permute.xlu0 %2460
        %2462 = vrot.lane.b32.xlu0 %v1815, 28
        %v2463 = vpop.permute.xlu0 %2462
        %2472 = vrot.lane.b32.xlu0 %v1560, 32
        %v2473 = vpop.permute.xlu0 %2472
        %2474 = vrot.lane.b32.xlu0 %v1562, 32
        %v2475 = vpop.permute.xlu0 %2474
        %2476 = vrot.lane.b32.xlu0 %v1564, 32
        %v2477 = vpop.permute.xlu0 %2476
        %2478 = vrot.lane.b32.xlu0 %v1566, 32
        %v2479 = vpop.permute.xlu0 %2478
        %2480 = vrot.lane.b32.xlu0 %v1568, 32
        %v2481 = vpop.permute.xlu0 %2480
        %2482 = vrot.lane.b32.xlu0 %v1570, 32
        %v2483 = vpop.permute.xlu0 %2482
        %2484 = vrot.lane.b32.xlu0 %v1572, 32
        %v2485 = vpop.permute.xlu0 %2484
        %2486 = vrot.lane.b32.xlu0 %v1574, 32
        %v2487 = vpop.permute.xlu0 %2486
        %2496 = vrot.lane.b32.xlu0 %v1768, 36
        %v2497 = vpop.permute.xlu0 %2496
        %2498 = vrot.lane.b32.xlu0 %v1771, 36
        %v2499 = vpop.permute.xlu0 %2498
        %2500 = vrot.lane.b32.xlu0 %v1774, 36
        %v2501 = vpop.permute.xlu0 %2500
        %2502 = vrot.lane.b32.xlu0 %v1777, 36
        %v2503 = vpop.permute.xlu0 %2502
        %2504 = vrot.lane.b32.xlu0 %v1780, 36
        %v2505 = vpop.permute.xlu0 %2504
        %2506 = vrot.lane.b32.xlu0 %v1783, 36
        %v2507 = vpop.permute.xlu0 %2506
        %2508 = vrot.lane.b32.xlu0 %v1812, 36
        %v2509 = vpop.permute.xlu0 %2508
        %2510 = vrot.lane.b32.xlu0 %v1820, 36
        %v2511 = vpop.permute.xlu0 %2510
        %2520 = vrot.lane.b32.xlu0 %v1792, 40
        %v2521 = vpop.permute.xlu0 %2520
        %2522 = vrot.lane.b32.xlu0 %v1795, 40
        %v2523 = vpop.permute.xlu0 %2522
        %2524 = vrot.lane.b32.xlu0 %v1798, 40
        %v2525 = vpop.permute.xlu0 %2524
        %2526 = vrot.lane.b32.xlu0 %v1801, 40
        %v2527 = vpop.permute.xlu0 %2526
        %2528 = vrot.lane.b32.xlu0 %v1804, 40
        %v2529 = vpop.permute.xlu0 %2528
        %2530 = vrot.lane.b32.xlu0 %v1807, 40
        %v2531 = vpop.permute.xlu0 %2530
        %2532 = vrot.lane.b32.xlu0 %v1815, 40
        %v2533 = vpop.permute.xlu0 %2532
        %2534 = vrot.lane.b32.xlu0 %v1823, 40
        %v2535 = vpop.permute.xlu0 %2534
        %v2544 = vsel %vm840, %v1680, %v2305
        %v2545 = vsel %vm840, %v1683, %v2307
        %v2546 = vsel %vm840, %v1686, %v2309
        %v2547 = vsel %vm840, %v1689, %v2311
        %v2548 = vsel %vm840, %v1692, %v2313
        %v2549 = vsel %vm840, %v1695, %v2315
        %v2550 = vsel %vm840, %v1724, %v2317
        %v2551 = vsel %vm840, %v1732, %v2319
        %v2552 = vsel %vm849, %v2544, %v2329
        %v2553 = vsel %vm849, %v2545, %v2331
        %v2554 = vsel %vm849, %v2546, %v2333
        %v2555 = vsel %vm849, %v2547, %v2335
        %v2556 = vsel %vm849, %v2548, %v2337
        %v2557 = vsel %vm849, %v2549, %v2339
        %v2558 = vsel %vm849, %v2550, %v2341
        %v2559 = vsel %vm849, %v2551, %v2343
        %v2560 = vsel %vm858, %v2552, %v2353
        %v2561 = vsel %vm858, %v2553, %v2355
        %v2562 = vsel %vm858, %v2554, %v2357
        %v2563 = vsel %vm858, %v2555, %v2359
        %v2564 = vsel %vm858, %v2556, %v2361
        %v2565 = vsel %vm858, %v2557, %v2363
        %v2566 = vsel %vm858, %v2558, %v2365
        %v2567 = vsel %vm858, %v2559, %v2367
        %v2568 = vsel %vm867, %v2560, %v2377
        %v2569 = vsel %vm867, %v2561, %v2379
        %v2570 = vsel %vm867, %v2562, %v2381
        %v2571 = vsel %vm867, %v2563, %v2383
        %v2572 = vsel %vm867, %v2564, %v2385
        %v2573 = vsel %vm867, %v2565, %v2387
        %v2574 = vsel %vm867, %v2566, %v2389
        %v2575 = vsel %vm867, %v2567, %v2391
        %v2576 = vsel %vm876, %v2568, %v2401
        %v2577 = vsel %vm876, %v2569, %v2403
        %v2578 = vsel %vm876, %v2570, %v2405
        %v2579 = vsel %vm876, %v2571, %v2407
        %v2580 = vsel %vm876, %v2572, %v2409
        %v2581 = vsel %vm876, %v2573, %v2411
        %v2582 = vsel %vm876, %v2574, %v2413
        %v2583 = vsel %vm876, %v2575, %v2415
        %v2584 = vsel %vm885, %v2576, %v2425
        %v2585 = vsel %vm885, %v2577, %v2427
        %v2586 = vsel %vm885, %v2578, %v2429
        %v2587 = vsel %vm885, %v2579, %v2431
        %v2588 = vsel %vm885, %v2580, %v2433
        %v2589 = vsel %vm885, %v2581, %v2435
        %v2590 = vsel %vm885, %v2582, %v2437
        %v2591 = vsel %vm885, %v2583, %v2439
        %v2592 = vsel %vm894, %v2584, %v2449
        %v2593 = vsel %vm894, %v2585, %v2451
        %v2594 = vsel %vm894, %v2586, %v2453
        %v2595 = vsel %vm894, %v2587, %v2455
        %v2596 = vsel %vm894, %v2588, %v2457
        %v2597 = vsel %vm894, %v2589, %v2459
        %v2598 = vsel %vm894, %v2590, %v2461
        %v2599 = vsel %vm894, %v2591, %v2463
        %v2600 = vsel %vm903, %v2592, %v2473
        %v2601 = vsel %vm903, %v2593, %v2475
        %v2602 = vsel %vm903, %v2594, %v2477
        %v2603 = vsel %vm903, %v2595, %v2479
        %v2604 = vsel %vm903, %v2596, %v2481
        %v2605 = vsel %vm903, %v2597, %v2483
        %v2606 = vsel %vm903, %v2598, %v2485
        %v2607 = vsel %vm903, %v2599, %v2487
        %v2608 = vsel %vm912, %v2600, %v2497
        %v2609 = vsel %vm912, %v2601, %v2499
        %v2610 = vsel %vm912, %v2602, %v2501
        %v2611 = vsel %vm912, %v2603, %v2503
        %v2612 = vsel %vm912, %v2604, %v2505
        %v2613 = vsel %vm912, %v2605, %v2507
        %v2614 = vsel %vm912, %v2606, %v2509
        %v2615 = vsel %vm912, %v2607, %v2511
        %v2616 = vsel %vm921, %v2608, %v2521
        %v2617 = vsel %vm921, %v2609, %v2523
        %v2618 = vsel %vm921, %v2610, %v2525
        %v2619 = vsel %vm921, %v2611, %v2527
        %v2620 = vsel %vm921, %v2612, %v2529
        %v2621 = vsel %vm921, %v2613, %v2531
        %v2622 = vsel %vm921, %v2614, %v2533
        %v2623 = vsel %vm921, %v2615, %v2535
        %2632 = vrot.lane.b32.xlu0 %v2616, 64
        %v2633 = vpop.permute.xlu0 %2632
        %2634 = vrot.lane.b32.xlu0 %v2617, 64
        %v2635 = vpop.permute.xlu0 %2634
        %2636 = vrot.lane.b32.xlu0 %v2618, 64
        %v2637 = vpop.permute.xlu0 %2636
        %2638 = vrot.lane.b32.xlu0 %v2619, 64
        %v2639 = vpop.permute.xlu0 %2638
        %2640 = vrot.lane.b32.xlu0 %v2620, 64
        %v2641 = vpop.permute.xlu0 %2640
        %2642 = vrot.lane.b32.xlu0 %v2621, 64
        %v2643 = vpop.permute.xlu0 %2642
        %2644 = vrot.lane.b32.xlu0 %v2622, 64
        %v2645 = vpop.permute.xlu0 %2644
        %2646 = vrot.lane.b32.xlu0 %v2623, 64
        %v2647 = vpop.permute.xlu0 %2646
        %v2656 = vsel %vm1327, %v2296, %v2633
        %v2657 = vsel %vm1327, %v2297, %v2635
        %v2658 = vsel %vm1327, %v2298, %v2637
        %v2659 = vsel %vm1327, %v2299, %v2639
        %v2660 = vsel %vm1327, %v2300, %v2641
        %v2661 = vsel %vm1327, %v2301, %v2643
        %v2662 = vsel %vm1327, %v2302, %v2645
        %v2663 = vsel %vm1327, %v2303, %v2647
        %v2664 = vpack.c.bf16 %v2657, %v2656
        %v2665 = vpack.c.bf16 %v2659, %v2658
        %v2666 = vpack.c.bf16 %v2661, %v2660
        %v2667 = vpack.c.bf16 %v2663, %v2662
        %v2668 = vld [vmem:[%s1] sm:$0xf]
        %v2669 = vld [vmem:[%s1 + $0x4] sm:$0xf]
        %v2670 = vld [vmem:[%s1 + $0x8] sm:$0xf]
        %v2671 = vld [vmem:[%s1 + $0xc] sm:$0xf]
        %v2672 = vld [vmem:[%s1 + $0x10] sm:$0xf]
        %v2673 = vld [vmem:[%s1 + $0x14] sm:$0xf]
        %v2674 = vld [vmem:[%s1 + $0x18] sm:$0xf]
        %v2675 = vld [vmem:[%s1 + $0x1c] sm:$0xf]
        %v2676 = vld [vmem:[%s1 + $0x20] sm:$0xf]
        %v2677 = vld [vmem:[%s1 + $0x24] sm:$0xf]
        %v2678 = vld [vmem:[%s1 + $0x28] sm:$0xf]
        %v2679 = vld [vmem:[%s1 + $0x2c] sm:$0xf]
        %v2680 = vld [vmem:[%s1 + $0x30] sm:$0xf]
        %v2681 = vld [vmem:[%s1 + $0x34] sm:$0x3]
        %v2682 = vld [vmem:[%s2] sm:$0x1]
        %v2684 = vlaneseq
        %v2685 = vshrl.u32 %v2684, 7
        %v2686 = vsub.s32 0, %v2685
        %v2687 = vrot.slane %v2682, %v2686
        %v2703 = vunpack.c.l.b16 %v2668
        %v2704 = vunpack.c.l.b16 %v2669
        %v2705 = vunpack.c.l.b16 %v2670
        %v2706 = vunpack.c.l.b16 %v2671
        %v2707 = vunpack.c.l.b16 %v2672
        %v2708 = vunpack.c.l.b16 %v2673
        %v2709 = vunpack.c.l.b16 %v2674
        %v2710 = vunpack.c.l.b16 %v2675
        %v2711 = vunpack.c.l.b16 %v2676
        %v2712 = vunpack.c.l.b16 %v2677
        %v2713 = vunpack.c.l.b16 %v2678
        %v2714 = vunpack.c.l.b16 %v2679
        %v2715 = vunpack.c.l.b16 %v2680
        %v2716 = vunpack.c.l.b16 %v2681
        %v2717 = vpack.c.b16 %v2704, %v2703
        %v2718 = vpack.c.b16 %v2706, %v2705
        %v2719 = vpack.c.b16 %v2708, %v2707
        %v2720 = vpack.c.b16 %v2710, %v2709
        %v2721 = vpack.c.b16 %v2712, %v2711
        %v2722 = vpack.c.b16 %v2714, %v2713
        %v2723 = vpack.c.b16 %v2716, %v2715
        %v2731 = vsel %vm1402, %v2664, 0
        %v2734 = vsel %vm1402, %v2665, 0
        %v2737 = vsel %vm1402, %v2666, 0
        %v2740 = vsel %vm1402, %v2667, 0
        %v2743 = vsel %vm271, %v2723, 0
        %2745 = vmatprep.subr.bf16.mxu0 0
        %2746 = vmatpush1.bf16.msra.mxu0 0
        %2747 = vmatprep.subr.bf16.mxu0 0
        %2748 = vmatpush1.bf16.msra.mxu0 %v2743
        %2749 = vmatprep.subr.bf16.mxu0 0
        %2750 = vmatpush1.bf16.msra.mxu0 %v2722
        %2751 = vmatprep.subr.bf16.mxu0 0
        %2752 = vmatpush1.bf16.msra.mxu0 %v2721
        %2753 = vmatprep.subr.bf16.mxu0 0
        %2754 = vmatpush1.bf16.msra.mxu0 %v2720
        %2755 = vmatprep.subr.bf16.mxu0 0
        %2756 = vmatpush1.bf16.msra.mxu0 %v2719
        %2757 = vmatprep.subr.bf16.mxu0 0
        %2758 = vmatpush1.bf16.msra.mxu0 %v2718
        %2759 = vmatprep.subr.bf16.mxu0 0
        %2760 = vmatpush1.bf16.msra.mxu0 %v2717
        %2761 = vmatprep.subr.bf16.mxu0 0
        %2762 = vmatpush2.bf16.msra.mxu0 0
        %2763 = vmatprep.subr.bf16.mxu0 0
        %2764 = vmatpush2.bf16.msra.mxu0 0
        %2765 = vmatprep.subr.bf16.mxu0 0
        %2766 = vmatpush2.bf16.msra.mxu0 0
        %2767 = vmatprep.subr.bf16.mxu0 0
        %2768 = vmatpush2.bf16.msra.mxu0 0
        %2769 = vmatprep.subr.bf16.mxu0 0
        %2770 = vmatpush2.bf16.msra.mxu0 0
        %2771 = vmatprep.subr.bf16.mxu0 0
        %2772 = vmatpush2.bf16.msra.mxu0 0
        %2773 = vmatprep.subr.bf16.mxu0 0
        %2774 = vmatpush2.bf16.msra.mxu0 0
        %2775 = vmatprep.subr.bf16.mxu0 0
        %2776 = vmatpush2.bf16.msra.mxu0 0
        %2777 = vmatprep.mubr.bf16.mxu0 0
        %2778 = vmatmul.mubr.bf16.gmra.mxu0 %v2731
        %v2779 = vpop.f32.mrf.mxu0
        %v2780 = vadd.f32 %v2687, %v2779
        %v2781 = vpop.f32.mrf.mxu0
        %v2782 = vpop.f32.mrf.mxu0
        %v2783 = vadd.f32 %v2687, %v2782
        %v2784 = vpop.f32.mrf.mxu0
        %2785 = vmatprep.mubr.bf16.mxu0 0
        %2786 = vmatmul.mubr.bf16.gmra.mxu0 %v2734
        %v2787 = vpop.f32.mrf.mxu0
        %v2788 = vadd.f32 %v2687, %v2787
        %v2789 = vpop.f32.mrf.mxu0
        %v2790 = vpop.f32.mrf.mxu0
        %v2791 = vadd.f32 %v2687, %v2790
        %v2792 = vpop.f32.mrf.mxu0
        %2793 = vmatprep.mubr.bf16.mxu0 0
        %2794 = vmatmul.mubr.bf16.gmra.mxu0 %v2737
        %v2795 = vpop.f32.mrf.mxu0
        %v2796 = vadd.f32 %v2687, %v2795
        %v2797 = vpop.f32.mrf.mxu0
        %v2798 = vpop.f32.mrf.mxu0
        %v2799 = vadd.f32 %v2687, %v2798
        %v2800 = vpop.f32.mrf.mxu0
        %2801 = vmatprep.mubr.bf16.mxu0 0
        %2802 = vmatmul.mubr.bf16.gmra.mxu0 %v2740
        %v2803 = vpop.f32.mrf.mxu0
        %v2804 = vadd.f32 %v2687, %v2803
        %v2805 = vpop.f32.mrf.mxu0
        %v2806 = vpop.f32.mrf.mxu0
        %v2807 = vadd.f32 %v2687, %v2806
        %v2808 = vpop.f32.mrf.mxu0
        %2809 = vdwg.mxu0
        %vm2810 = vcmp.gt.f32.partialorder %v2780, 0.0
        %vm2811 = vcmp.gt.f32.partialorder %v2783, 0.0
        %vm2812 = vcmp.gt.f32.partialorder %v2788, 0.0
        %vm2813 = vcmp.gt.f32.partialorder %v2791, 0.0
        %vm2814 = vcmp.gt.f32.partialorder %v2796, 0.0
        %vm2815 = vcmp.gt.f32.partialorder %v2799, 0.0
        %vm2816 = vcmp.gt.f32.partialorder %v2804, 0.0
        %vm2817 = vcmp.gt.f32.partialorder %v2807, 0.0
        %v2818 = vmul.f32 %v2780, 0.1
        %v2819 = vmul.f32 %v2783, 0.1
        %v2820 = vmul.f32 %v2788, 0.1
        %v2821 = vmul.f32 %v2791, 0.1
        %v2822 = vmul.f32 %v2796, 0.1
        %v2823 = vmul.f32 %v2799, 0.1
        %v2824 = vmul.f32 %v2804, 0.1
        %v2825 = vmul.f32 %v2807, 0.1
        %v2826 = vsel %vm2810, %v2780, %v2818
        %v2827 = vsel %vm2811, %v2783, %v2819
        %v2828 = vsel %vm2812, %v2788, %v2820
        %v2829 = vsel %vm2813, %v2791, %v2821
        %v2830 = vsel %vm2814, %v2796, %v2822
        %v2831 = vsel %vm2815, %v2799, %v2823
        %v2832 = vsel %vm2816, %v2804, %v2824
        %v2833 = vsel %vm2817, %v2807, %v2825
        %s2834 = scalar_lea.vmem %s163, 64 [#allocation2]
        %2835 = vst [vmem:[%s2834] sm:$0xff] %v2826
        %2836 = vst [vmem:[%s2834 + $0x8] sm:$0xff] %v2827
        %2837 = vst [vmem:[%s2834 + $0x10] sm:$0xff] %v2828
        %2838 = vst [vmem:[%s2834 + $0x18] sm:$0xff] %v2829
        %2839 = vst [vmem:[%s2834 + $0x20] sm:$0xff] %v2830
        %2840 = vst [vmem:[%s2834 + $0x28] sm:$0xff] %v2831
        %2841 = vst [vmem:[%s2834 + $0x30] sm:$0xff] %v2832
        %2842 = vst [vmem:[%s2834 + $0x38] sm:$0xff] %v2833
        %s2843 = scalar_lea.vmem %s168, 320
        %v2844 = vld [vmem:[%s2843] sm:$0xff]
        %v2845 = vld [vmem:[%s2843 + $0x8] sm:$0x3]
        %v2846 = vld [vmem:[%s2843 + $0x10] sm:$0xff]
        %v2847 = vld [vmem:[%s2843 + $0x18] sm:$0x3]
        %v2848 = vld [vmem:[%s2843 + $0x20] sm:$0xff]
        %v2849 = vld [vmem:[%s2843 + $0x28] sm:$0x3]
        %v2850 = vld [vmem:[%s2843 + $0x30] sm:$0xff]
        %v2851 = vld [vmem:[%s2843 + $0x38] sm:$0x3]
        %v2852 = vld [vmem:[%s2843 + $0x40] sm:$0xff]
        %v2853 = vld [vmem:[%s2843 + $0x48] sm:$0x3]
        %v2854 = vld [vmem:[%s2843 + $0x50] sm:$0xff]
        %v2855 = vld [vmem:[%s2843 + $0x58] sm:$0x3]
        %v2856 = vld [vmem:[%s2843 + $0x60] sm:$0xff]
        %v2857 = vld [vmem:[%s2843 + $0x68] sm:$0x3]
        %v2858 = vld [vmem:[%s2843 + $0x70] sm:$0xff]
        %v2859 = vld [vmem:[%s2843 + $0x78] sm:$0x3]
        %v2860 = vld [vmem:[%s2843 + $0x80] sm:$0xff]
        %v2861 = vld [vmem:[%s2843 + $0x88] sm:$0x3]
        %v2862 = vld [vmem:[%s2843 + $0x90] sm:$0xff]
        %v2863 = vld [vmem:[%s2843 + $0x98] sm:$0x3]
        %v2864 = vld [vmem:[%s2843 + $0xa0] sm:$0xff]
        %v2865 = vld [vmem:[%s2843 + $0xa8] sm:$0x3]
        %v2866 = vld [vmem:[%s2843 + $0xb0] sm:$0xff]
        %v2867 = vld [vmem:[%s2843 + $0xb8] sm:$0x3]
        %v2868 = vld [vmem:[%s2843 + $0xc0] sm:$0xff]
        %v2869 = vld [vmem:[%s2843 + $0xc8] sm:$0x3]
        %v2870 = vld [vmem:[%s2843 + $0xd0] sm:$0xff]
        %v2871 = vld [vmem:[%s2843 + $0xd8] sm:$0x3]
        %v2872 = vld [vmem:[%s2843 + $0xe0] sm:$0xff]
        %v2873 = vld [vmem:[%s2843 + $0xe8] sm:$0x3]
        %v2874 = vld [vmem:[%s2843 + $0xf0] sm:$0xff]
        %v2875 = vld [vmem:[%s2843 + $0xf8] sm:$0x3]
        %v2876 = vld [vmem:[%s2843 + $0x100] sm:$0xff]
        %v2877 = vld [vmem:[%s2843 + $0x108] sm:$0x3]
        %v2878 = vld [vmem:[%s2843 + $0x110] sm:$0xff]
        %v2879 = vld [vmem:[%s2843 + $0x118] sm:$0x3]
        %v2880 = vld [vmem:[%s2843 + $0x120] sm:$0xff]
        %v2881 = vld [vmem:[%s2843 + $0x128] sm:$0x3]
        %v2882 = vld [vmem:[%s2843 + $0x130] sm:$0xff]
        %v2883 = vld [vmem:[%s2843 + $0x138] sm:$0x3]
        %v2884 = vld [vmem:[%s2843 + $0x140] sm:$0xff]
        %v2885 = vld [vmem:[%s2843 + $0x148] sm:$0x3]
        %v2886 = vld [vmem:[%s2843 + $0x150] sm:$0xff]
        %v2887 = vld [vmem:[%s2843 + $0x158] sm:$0x3]
        %v2888 = vld [vmem:[%s2843 + $0x160] sm:$0xff]
        %v2889 = vld [vmem:[%s2843 + $0x168] sm:$0x3]
        %v2890 = vld [vmem:[%s2843 + $0x170] sm:$0xff]
        %v2891 = vld [vmem:[%s2843 + $0x178] sm:$0x3]
        %v2892 = vld [vmem:[%s2843 + $0x180] sm:$0xff]
        %v2893 = vld [vmem:[%s2843 + $0x188] sm:$0x3]
        %v2894 = vld [vmem:[%s2843 + $0x190] sm:$0xff]
        %v2895 = vld [vmem:[%s2843 + $0x198] sm:$0x3]
        %v2896 = vld [vmem:[%s2843 + $0x1a0] sm:$0xff]
        %v2897 = vld [vmem:[%s2843 + $0x1a8] sm:$0x3]
        %v2898 = vld [vmem:[%s2843 + $0x1b0] sm:$0xff]
        %v2899 = vld [vmem:[%s2843 + $0x1b8] sm:$0x3]
        %v2900 = vld [vmem:[%s2843 + $0x1c0] sm:$0xff]
        %v2901 = vld [vmem:[%s2843 + $0x1c8] sm:$0x3]
        %v2902 = vld [vmem:[%s2843 + $0x1d0] sm:$0xff]
        %v2903 = vld [vmem:[%s2843 + $0x1d8] sm:$0x3]
        %v2920 = vrot.slane %v2844, 1
        %v2921 = vrot.slane %v2845, 1
        %v2922 = vsel %vm246, %v2920, %v2921
        %v2923 = vrot.slane %v2846, 1
        %v2924 = vrot.slane %v2847, 1
        %v2925 = vsel %vm246, %v2923, %v2924
        %v2926 = vrot.slane %v2848, 1
        %v2927 = vrot.slane %v2849, 1
        %v2928 = vsel %vm246, %v2926, %v2927
        %v2929 = vrot.slane %v2850, 1
        %v2930 = vrot.slane %v2851, 1
        %v2931 = vsel %vm246, %v2929, %v2930
        %v2932 = vrot.slane %v2852, 1
        %v2933 = vrot.slane %v2853, 1
        %v2934 = vsel %vm246, %v2932, %v2933
        %v2935 = vrot.slane %v2854, 1
        %v2936 = vrot.slane %v2855, 1
        %v2937 = vsel %vm246, %v2935, %v2936
        %v2938 = vrot.slane %v2856, 1
        %v2939 = vrot.slane %v2857, 1
        %v2940 = vsel %vm246, %v2938, %v2939
        %v2941 = vrot.slane %v2858, 1
        %v2942 = vrot.slane %v2859, 1
        %v2943 = vsel %vm246, %v2941, %v2942
        %v2944 = vrot.slane %v2844, 2
        %v2945 = vrot.slane %v2845, 2
        %v2946 = vsel %vm271, %v2944, %v2945
        %v2947 = vrot.slane %v2846, 2
        %v2948 = vrot.slane %v2847, 2
        %v2949 = vsel %vm271, %v2947, %v2948
        %v2950 = vrot.slane %v2848, 2
        %v2951 = vrot.slane %v2849, 2
        %v2952 = vsel %vm271, %v2950, %v2951
        %v2953 = vrot.slane %v2850, 2
        %v2954 = vrot.slane %v2851, 2
        %v2955 = vsel %vm271, %v2953, %v2954
        %v2956 = vrot.slane %v2852, 2
        %v2957 = vrot.slane %v2853, 2
        %v2958 = vsel %vm271, %v2956, %v2957
        %v2959 = vrot.slane %v2854, 2
        %v2960 = vrot.slane %v2855, 2
        %v2961 = vsel %vm271, %v2959, %v2960
        %v2962 = vrot.slane %v2856, 2
        %v2963 = vrot.slane %v2857, 2
        %v2964 = vsel %vm271, %v2962, %v2963
        %v2965 = vrot.slane %v2858, 2
        %v2966 = vrot.slane %v2859, 2
        %v2967 = vsel %vm271, %v2965, %v2966
        %v2970 = vrot.slane %v2860, 1
        %v2971 = vrot.slane %v2861, 1
        %v2972 = vsel %vm246, %v2970, %v2971
        %v2973 = vrot.slane %v2860, 2
        %v2974 = vrot.slane %v2861, 2
        %v2975 = vsel %vm271, %v2973, %v2974
        %v2978 = vrot.slane %v2862, 1
        %v2979 = vrot.slane %v2863, 1
        %v2980 = vsel %vm246, %v2978, %v2979
        %v2981 = vrot.slane %v2862, 2
        %v2982 = vrot.slane %v2863, 2
        %v2983 = vsel %vm271, %v2981, %v2982
        %v3000 = vrot.slane %v2864, 1
        %v3001 = vrot.slane %v2865, 1
        %v3002 = vsel %vm246, %v3000, %v3001
        %v3003 = vrot.slane %v2866, 1
        %v3004 = vrot.slane %v2867, 1
        %v3005 = vsel %vm246, %v3003, %v3004
        %v3006 = vrot.slane %v2868, 1
        %v3007 = vrot.slane %v2869, 1
        %v3008 = vsel %vm246, %v3006, %v3007
        %v3009 = vrot.slane %v2870, 1
        %v3010 = vrot.slane %v2871, 1
        %v3011 = vsel %vm246, %v3009, %v3010
        %v3012 = vrot.slane %v2872, 1
        %v3013 = vrot.slane %v2873, 1
        %v3014 = vsel %vm246, %v3012, %v3013
        %v3015 = vrot.slane %v2874, 1
        %v3016 = vrot.slane %v2875, 1
        %v3017 = vsel %vm246, %v3015, %v3016
        %v3018 = vrot.slane %v2876, 1
        %v3019 = vrot.slane %v2877, 1
        %v3020 = vsel %vm246, %v3018, %v3019
        %v3021 = vrot.slane %v2878, 1
        %v3022 = vrot.slane %v2879, 1
        %v3023 = vsel %vm246, %v3021, %v3022
        %v3024 = vrot.slane %v2864, 2
        %v3025 = vrot.slane %v2865, 2
        %v3026 = vsel %vm271, %v3024, %v3025
        %v3027 = vrot.slane %v2866, 2
        %v3028 = vrot.slane %v2867, 2
        %v3029 = vsel %vm271, %v3027, %v3028
        %v3030 = vrot.slane %v2868, 2
        %v3031 = vrot.slane %v2869, 2
        %v3032 = vsel %vm271, %v3030, %v3031
        %v3033 = vrot.slane %v2870, 2
        %v3034 = vrot.slane %v2871, 2
        %v3035 = vsel %vm271, %v3033, %v3034
        %v3036 = vrot.slane %v2872, 2
        %v3037 = vrot.slane %v2873, 2
        %v3038 = vsel %vm271, %v3036, %v3037
        %v3039 = vrot.slane %v2874, 2
        %v3040 = vrot.slane %v2875, 2
        %v3041 = vsel %vm271, %v3039, %v3040
        %v3042 = vrot.slane %v2876, 2
        %v3043 = vrot.slane %v2877, 2
        %v3044 = vsel %vm271, %v3042, %v3043
        %v3045 = vrot.slane %v2878, 2
        %v3046 = vrot.slane %v2879, 2
        %v3047 = vsel %vm271, %v3045, %v3046
        %v3050 = vrot.slane %v2880, 1
        %v3051 = vrot.slane %v2881, 1
        %v3052 = vsel %vm246, %v3050, %v3051
        %v3053 = vrot.slane %v2880, 2
        %v3054 = vrot.slane %v2881, 2
        %v3055 = vsel %vm271, %v3053, %v3054
        %v3058 = vrot.slane %v2882, 1
        %v3059 = vrot.slane %v2883, 1
        %v3060 = vsel %vm246, %v3058, %v3059
        %v3069 = vrot.slane %v2882, 2
        %v3070 = vrot.slane %v2883, 2
        %v3071 = vsel %vm271, %v3069, %v3070
        %v3088 = vrot.slane %v2884, 1
        %v3089 = vrot.slane %v2885, 1
        %v3090 = vsel %vm246, %v3088, %v3089
        %v3091 = vrot.slane %v2886, 1
        %v3092 = vrot.slane %v2887, 1
        %v3093 = vsel %vm246, %v3091, %v3092
        %v3094 = vrot.slane %v2888, 1
        %v3095 = vrot.slane %v2889, 1
        %v3096 = vsel %vm246, %v3094, %v3095
        %v3097 = vrot.slane %v2890, 1
        %v3098 = vrot.slane %v2891, 1
        %v3099 = vsel %vm246, %v3097, %v3098
        %v3100 = vrot.slane %v2892, 1
        %v3101 = vrot.slane %v2893, 1
        %v3102 = vsel %vm246, %v3100, %v3101
        %v3103 = vrot.slane %v2894, 1
        %v3104 = vrot.slane %v2895, 1
        %v3105 = vsel %vm246, %v3103, %v3104
        %v3106 = vrot.slane %v2896, 1
        %v3107 = vrot.slane %v2897, 1
        %v3108 = vsel %vm246, %v3106, %v3107
        %v3109 = vrot.slane %v2898, 1
        %v3110 = vrot.slane %v2899, 1
        %v3111 = vsel %vm246, %v3109, %v3110
        %v3112 = vrot.slane %v2884, 2
        %v3113 = vrot.slane %v2885, 2
        %v3114 = vsel %vm271, %v3112, %v3113
        %v3115 = vrot.slane %v2886, 2
        %v3116 = vrot.slane %v2887, 2
        %v3117 = vsel %vm271, %v3115, %v3116
        %v3118 = vrot.slane %v2888, 2
        %v3119 = vrot.slane %v2889, 2
        %v3120 = vsel %vm271, %v3118, %v3119
        %v3121 = vrot.slane %v2890, 2
        %v3122 = vrot.slane %v2891, 2
        %v3123 = vsel %vm271, %v3121, %v3122
        %v3124 = vrot.slane %v2892, 2
        %v3125 = vrot.slane %v2893, 2
        %v3126 = vsel %vm271, %v3124, %v3125
        %v3127 = vrot.slane %v2894, 2
        %v3128 = vrot.slane %v2895, 2
        %v3129 = vsel %vm271, %v3127, %v3128
        %v3130 = vrot.slane %v2896, 2
        %v3131 = vrot.slane %v2897, 2
        %v3132 = vsel %vm271, %v3130, %v3131
        %v3133 = vrot.slane %v2898, 2
        %v3134 = vrot.slane %v2899, 2
        %v3135 = vsel %vm271, %v3133, %v3134
        %v3138 = vrot.slane %v2900, 1
        %v3139 = vrot.slane %v2901, 1
        %v3140 = vsel %vm246, %v3138, %v3139
        %v3141 = vrot.slane %v2900, 2
        %v3142 = vrot.slane %v2901, 2
        %v3143 = vsel %vm271, %v3141, %v3142
        %v3146 = vrot.slane %v2902, 1
        %v3147 = vrot.slane %v2903, 1
        %v3148 = vsel %vm246, %v3146, %v3147
        %v3149 = vrot.slane %v2902, 2
        %v3150 = vrot.slane %v2903, 2
        %v3151 = vsel %vm271, %v3149, %v3150
        %3152 = vrot.lane.b32.xlu0 %v2922, 4
        %v3153 = vpop.permute.xlu0 %3152
        %3154 = vrot.lane.b32.xlu0 %v2925, 4
        %v3155 = vpop.permute.xlu0 %3154
        %3156 = vrot.lane.b32.xlu0 %v2928, 4
        %v3157 = vpop.permute.xlu0 %3156
        %3158 = vrot.lane.b32.xlu0 %v2931, 4
        %v3159 = vpop.permute.xlu0 %3158
        %3160 = vrot.lane.b32.xlu0 %v2934, 4
        %v3161 = vpop.permute.xlu0 %3160
        %3162 = vrot.lane.b32.xlu0 %v2937, 4
        %v3163 = vpop.permute.xlu0 %3162
        %3164 = vrot.lane.b32.xlu0 %v2940, 4
        %v3165 = vpop.permute.xlu0 %3164
        %3166 = vrot.lane.b32.xlu0 %v2943, 4
        %v3167 = vpop.permute.xlu0 %3166
        %3176 = vrot.lane.b32.xlu0 %v2946, 8
        %v3177 = vpop.permute.xlu0 %3176
        %3178 = vrot.lane.b32.xlu0 %v2949, 8
        %v3179 = vpop.permute.xlu0 %3178
        %3180 = vrot.lane.b32.xlu0 %v2952, 8
        %v3181 = vpop.permute.xlu0 %3180
        %3182 = vrot.lane.b32.xlu0 %v2955, 8
        %v3183 = vpop.permute.xlu0 %3182
        %3184 = vrot.lane.b32.xlu0 %v2958, 8
        %v3185 = vpop.permute.xlu0 %3184
        %3186 = vrot.lane.b32.xlu0 %v2961, 8
        %v3187 = vpop.permute.xlu0 %3186
        %3188 = vrot.lane.b32.xlu0 %v2964, 8
        %v3189 = vpop.permute.xlu0 %3188
        %3190 = vrot.lane.b32.xlu0 %v2967, 8
        %v3191 = vpop.permute.xlu0 %3190
        %3200 = vrot.lane.b32.xlu0 %v2846, 12
        %v3201 = vpop.permute.xlu0 %3200
        %3202 = vrot.lane.b32.xlu0 %v2848, 12
        %v3203 = vpop.permute.xlu0 %3202
        %3204 = vrot.lane.b32.xlu0 %v2850, 12
        %v3205 = vpop.permute.xlu0 %3204
        %3206 = vrot.lane.b32.xlu0 %v2852, 12
        %v3207 = vpop.permute.xlu0 %3206
        %3208 = vrot.lane.b32.xlu0 %v2854, 12
        %v3209 = vpop.permute.xlu0 %3208
        %3210 = vrot.lane.b32.xlu0 %v2856, 12
        %v3211 = vpop.permute.xlu0 %3210
        %3212 = vrot.lane.b32.xlu0 %v2858, 12
        %v3213 = vpop.permute.xlu0 %3212
        %3214 = vrot.lane.b32.xlu0 %v2860, 12
        %v3215 = vpop.permute.xlu0 %3214
        %3224 = vrot.lane.b32.xlu0 %v2925, 16
        %v3225 = vpop.permute.xlu0 %3224
        %3226 = vrot.lane.b32.xlu0 %v2928, 16
        %v3227 = vpop.permute.xlu0 %3226
        %3228 = vrot.lane.b32.xlu0 %v2931, 16
        %v3229 = vpop.permute.xlu0 %3228
        %3230 = vrot.lane.b32.xlu0 %v2934, 16
        %v3231 = vpop.permute.xlu0 %3230
        %3232 = vrot.lane.b32.xlu0 %v2937, 16
        %v3233 = vpop.permute.xlu0 %3232
        %3234 = vrot.lane.b32.xlu0 %v2940, 16
        %v3235 = vpop.permute.xlu0 %3234
        %3236 = vrot.lane.b32.xlu0 %v2943, 16
        %v3237 = vpop.permute.xlu0 %3236
        %3238 = vrot.lane.b32.xlu0 %v2972, 16
        %v3239 = vpop.permute.xlu0 %3238
        %3248 = vrot.lane.b32.xlu0 %v2949, 20
        %v3249 = vpop.permute.xlu0 %3248
        %3250 = vrot.lane.b32.xlu0 %v2952, 20
        %v3251 = vpop.permute.xlu0 %3250
        %3252 = vrot.lane.b32.xlu0 %v2955, 20
        %v3253 = vpop.permute.xlu0 %3252
        %3254 = vrot.lane.b32.xlu0 %v2958, 20
        %v3255 = vpop.permute.xlu0 %3254
        %3256 = vrot.lane.b32.xlu0 %v2961, 20
        %v3257 = vpop.permute.xlu0 %3256
        %3258 = vrot.lane.b32.xlu0 %v2964, 20
        %v3259 = vpop.permute.xlu0 %3258
        %3260 = vrot.lane.b32.xlu0 %v2967, 20
        %v3261 = vpop.permute.xlu0 %3260
        %3262 = vrot.lane.b32.xlu0 %v2975, 20
        %v3263 = vpop.permute.xlu0 %3262
        %3272 = vrot.lane.b32.xlu0 %v2848, 24
        %v3273 = vpop.permute.xlu0 %3272
        %3274 = vrot.lane.b32.xlu0 %v2850, 24
        %v3275 = vpop.permute.xlu0 %3274
        %3276 = vrot.lane.b32.xlu0 %v2852, 24
        %v3277 = vpop.permute.xlu0 %3276
        %3278 = vrot.lane.b32.xlu0 %v2854, 24
        %v3279 = vpop.permute.xlu0 %3278
        %3280 = vrot.lane.b32.xlu0 %v2856, 24
        %v3281 = vpop.permute.xlu0 %3280
        %3282 = vrot.lane.b32.xlu0 %v2858, 24
        %v3283 = vpop.permute.xlu0 %3282
        %3284 = vrot.lane.b32.xlu0 %v2860, 24
        %v3285 = vpop.permute.xlu0 %3284
        %3286 = vrot.lane.b32.xlu0 %v2862, 24
        %v3287 = vpop.permute.xlu0 %3286
        %3296 = vrot.lane.b32.xlu0 %v2928, 28
        %v3297 = vpop.permute.xlu0 %3296
        %3298 = vrot.lane.b32.xlu0 %v2931, 28
        %v3299 = vpop.permute.xlu0 %3298
        %3300 = vrot.lane.b32.xlu0 %v2934, 28
        %v3301 = vpop.permute.xlu0 %3300
        %3302 = vrot.lane.b32.xlu0 %v2937, 28
        %v3303 = vpop.permute.xlu0 %3302
        %3304 = vrot.lane.b32.xlu0 %v2940, 28
        %v3305 = vpop.permute.xlu0 %3304
        %3306 = vrot.lane.b32.xlu0 %v2943, 28
        %v3307 = vpop.permute.xlu0 %3306
        %3308 = vrot.lane.b32.xlu0 %v2972, 28
        %v3309 = vpop.permute.xlu0 %3308
        %3310 = vrot.lane.b32.xlu0 %v2980, 28
        %v3311 = vpop.permute.xlu0 %3310
        %3320 = vrot.lane.b32.xlu0 %v2952, 32
        %v3321 = vpop.permute.xlu0 %3320
        %3322 = vrot.lane.b32.xlu0 %v2955, 32
        %v3323 = vpop.permute.xlu0 %3322
        %3324 = vrot.lane.b32.xlu0 %v2958, 32
        %v3325 = vpop.permute.xlu0 %3324
        %3326 = vrot.lane.b32.xlu0 %v2961, 32
        %v3327 = vpop.permute.xlu0 %3326
        %3328 = vrot.lane.b32.xlu0 %v2964, 32
        %v3329 = vpop.permute.xlu0 %3328
        %3330 = vrot.lane.b32.xlu0 %v2967, 32
        %v3331 = vpop.permute.xlu0 %3330
        %3332 = vrot.lane.b32.xlu0 %v2975, 32
        %v3333 = vpop.permute.xlu0 %3332
        %3334 = vrot.lane.b32.xlu0 %v2983, 32
        %v3335 = vpop.permute.xlu0 %3334
        %3344 = vrot.lane.b32.xlu0 %v2864, 36
        %v3345 = vpop.permute.xlu0 %3344
        %3346 = vrot.lane.b32.xlu0 %v2866, 36
        %v3347 = vpop.permute.xlu0 %3346
        %3348 = vrot.lane.b32.xlu0 %v2868, 36
        %v3349 = vpop.permute.xlu0 %3348
        %3350 = vrot.lane.b32.xlu0 %v2870, 36
        %v3351 = vpop.permute.xlu0 %3350
        %3352 = vrot.lane.b32.xlu0 %v2872, 36
        %v3353 = vpop.permute.xlu0 %3352
        %3354 = vrot.lane.b32.xlu0 %v2874, 36
        %v3355 = vpop.permute.xlu0 %3354
        %3356 = vrot.lane.b32.xlu0 %v2876, 36
        %v3357 = vpop.permute.xlu0 %3356
        %3358 = vrot.lane.b32.xlu0 %v2878, 36
        %v3359 = vpop.permute.xlu0 %3358
        %3368 = vrot.lane.b32.xlu0 %v3002, 40
        %v3369 = vpop.permute.xlu0 %3368
        %3370 = vrot.lane.b32.xlu0 %v3005, 40
        %v3371 = vpop.permute.xlu0 %3370
        %3372 = vrot.lane.b32.xlu0 %v3008, 40
        %v3373 = vpop.permute.xlu0 %3372
        %3374 = vrot.lane.b32.xlu0 %v3011, 40
        %v3375 = vpop.permute.xlu0 %3374
        %3376 = vrot.lane.b32.xlu0 %v3014, 40
        %v3377 = vpop.permute.xlu0 %3376
        %3378 = vrot.lane.b32.xlu0 %v3017, 40
        %v3379 = vpop.permute.xlu0 %3378
        %3380 = vrot.lane.b32.xlu0 %v3020, 40
        %v3381 = vpop.permute.xlu0 %3380
        %3382 = vrot.lane.b32.xlu0 %v3023, 40
        %v3383 = vpop.permute.xlu0 %3382
        %3392 = vrot.lane.b32.xlu0 %v3026, 44
        %v3393 = vpop.permute.xlu0 %3392
        %3394 = vrot.lane.b32.xlu0 %v3029, 44
        %v3395 = vpop.permute.xlu0 %3394
        %3396 = vrot.lane.b32.xlu0 %v3032, 44
        %v3397 = vpop.permute.xlu0 %3396
        %3398 = vrot.lane.b32.xlu0 %v3035, 44
        %v3399 = vpop.permute.xlu0 %3398
        %3400 = vrot.lane.b32.xlu0 %v3038, 44
        %v3401 = vpop.permute.xlu0 %3400
        %3402 = vrot.lane.b32.xlu0 %v3041, 44
        %v3403 = vpop.permute.xlu0 %3402
        %3404 = vrot.lane.b32.xlu0 %v3044, 44
        %v3405 = vpop.permute.xlu0 %3404
        %3406 = vrot.lane.b32.xlu0 %v3047, 44
        %v3407 = vpop.permute.xlu0 %3406
        %3416 = vrot.lane.b32.xlu0 %v2866, 48
        %v3417 = vpop.permute.xlu0 %3416
        %3418 = vrot.lane.b32.xlu0 %v2868, 48
        %v3419 = vpop.permute.xlu0 %3418
        %3420 = vrot.lane.b32.xlu0 %v2870, 48
        %v3421 = vpop.permute.xlu0 %3420
        %3422 = vrot.lane.b32.xlu0 %v2872, 48
        %v3423 = vpop.permute.xlu0 %3422
        %3424 = vrot.lane.b32.xlu0 %v2874, 48
        %v3425 = vpop.permute.xlu0 %3424
        %3426 = vrot.lane.b32.xlu0 %v2876, 48
        %v3427 = vpop.permute.xlu0 %3426
        %3428 = vrot.lane.b32.xlu0 %v2878, 48
        %v3429 = vpop.permute.xlu0 %3428
        %3430 = vrot.lane.b32.xlu0 %v2880, 48
        %v3431 = vpop.permute.xlu0 %3430
        %3440 = vrot.lane.b32.xlu0 %v3005, 52
        %v3441 = vpop.permute.xlu0 %3440
        %3442 = vrot.lane.b32.xlu0 %v3008, 52
        %v3443 = vpop.permute.xlu0 %3442
        %3444 = vrot.lane.b32.xlu0 %v3011, 52
        %v3445 = vpop.permute.xlu0 %3444
        %3446 = vrot.lane.b32.xlu0 %v3014, 52
        %v3447 = vpop.permute.xlu0 %3446
        %3448 = vrot.lane.b32.xlu0 %v3017, 52
        %v3449 = vpop.permute.xlu0 %3448
        %3450 = vrot.lane.b32.xlu0 %v3020, 52
        %v3451 = vpop.permute.xlu0 %3450
        %3452 = vrot.lane.b32.xlu0 %v3023, 52
        %v3453 = vpop.permute.xlu0 %3452
        %3454 = vrot.lane.b32.xlu0 %v3052, 52
        %v3455 = vpop.permute.xlu0 %3454
        %3464 = vrot.lane.b32.xlu0 %v3029, 56
        %v3465 = vpop.permute.xlu0 %3464
        %3466 = vrot.lane.b32.xlu0 %v3032, 56
        %v3467 = vpop.permute.xlu0 %3466
        %3468 = vrot.lane.b32.xlu0 %v3035, 56
        %v3469 = vpop.permute.xlu0 %3468
        %3470 = vrot.lane.b32.xlu0 %v3038, 56
        %v3471 = vpop.permute.xlu0 %3470
        %3472 = vrot.lane.b32.xlu0 %v3041, 56
        %v3473 = vpop.permute.xlu0 %3472
        %3474 = vrot.lane.b32.xlu0 %v3044, 56
        %v3475 = vpop.permute.xlu0 %3474
        %3476 = vrot.lane.b32.xlu0 %v3047, 56
        %v3477 = vpop.permute.xlu0 %3476
        %3478 = vrot.lane.b32.xlu0 %v3055, 56
        %v3479 = vpop.permute.xlu0 %3478
        %3488 = vrot.lane.b32.xlu0 %v2868, 60
        %v3489 = vpop.permute.xlu0 %3488
        %3490 = vrot.lane.b32.xlu0 %v2870, 60
        %v3491 = vpop.permute.xlu0 %3490
        %3492 = vrot.lane.b32.xlu0 %v2872, 60
        %v3493 = vpop.permute.xlu0 %3492
        %3494 = vrot.lane.b32.xlu0 %v2874, 60
        %v3495 = vpop.permute.xlu0 %3494
        %3496 = vrot.lane.b32.xlu0 %v2876, 60
        %v3497 = vpop.permute.xlu0 %3496
        %3498 = vrot.lane.b32.xlu0 %v2878, 60
        %v3499 = vpop.permute.xlu0 %3498
        %3500 = vrot.lane.b32.xlu0 %v2880, 60
        %v3501 = vpop.permute.xlu0 %3500
        %3502 = vrot.lane.b32.xlu0 %v2882, 60
        %v3503 = vpop.permute.xlu0 %3502
        %v3512 = vsel %vm840, %v2844, %v3153
        %v3513 = vsel %vm840, %v2846, %v3155
        %v3514 = vsel %vm840, %v2848, %v3157
        %v3515 = vsel %vm840, %v2850, %v3159
        %v3516 = vsel %vm840, %v2852, %v3161
        %v3517 = vsel %vm840, %v2854, %v3163
        %v3518 = vsel %vm840, %v2856, %v3165
        %v3519 = vsel %vm840, %v2858, %v3167
        %v3520 = vsel %vm849, %v3512, %v3177
        %v3521 = vsel %vm849, %v3513, %v3179
        %v3522 = vsel %vm849, %v3514, %v3181
        %v3523 = vsel %vm849, %v3515, %v3183
        %v3524 = vsel %vm849, %v3516, %v3185
        %v3525 = vsel %vm849, %v3517, %v3187
        %v3526 = vsel %vm849, %v3518, %v3189
        %v3527 = vsel %vm849, %v3519, %v3191
        %v3528 = vsel %vm858, %v3520, %v3201
        %v3529 = vsel %vm858, %v3521, %v3203
        %v3530 = vsel %vm858, %v3522, %v3205
        %v3531 = vsel %vm858, %v3523, %v3207
        %v3532 = vsel %vm858, %v3524, %v3209
        %v3533 = vsel %vm858, %v3525, %v3211
        %v3534 = vsel %vm858, %v3526, %v3213
        %v3535 = vsel %vm858, %v3527, %v3215
        %v3536 = vsel %vm867, %v3528, %v3225
        %v3537 = vsel %vm867, %v3529, %v3227
        %v3538 = vsel %vm867, %v3530, %v3229
        %v3539 = vsel %vm867, %v3531, %v3231
        %v3540 = vsel %vm867, %v3532, %v3233
        %v3541 = vsel %vm867, %v3533, %v3235
        %v3542 = vsel %vm867, %v3534, %v3237
        %v3543 = vsel %vm867, %v3535, %v3239
        %v3544 = vsel %vm876, %v3536, %v3249
        %v3545 = vsel %vm876, %v3537, %v3251
        %v3546 = vsel %vm876, %v3538, %v3253
        %v3547 = vsel %vm876, %v3539, %v3255
        %v3548 = vsel %vm876, %v3540, %v3257
        %v3549 = vsel %vm876, %v3541, %v3259
        %v3550 = vsel %vm876, %v3542, %v3261
        %v3551 = vsel %vm876, %v3543, %v3263
        %v3552 = vsel %vm885, %v3544, %v3273
        %v3553 = vsel %vm885, %v3545, %v3275
        %v3554 = vsel %vm885, %v3546, %v3277
        %v3555 = vsel %vm885, %v3547, %v3279
        %v3556 = vsel %vm885, %v3548, %v3281
        %v3557 = vsel %vm885, %v3549, %v3283
        %v3558 = vsel %vm885, %v3550, %v3285
        %v3559 = vsel %vm885, %v3551, %v3287
        %v3560 = vsel %vm894, %v3552, %v3297
        %v3561 = vsel %vm894, %v3553, %v3299
        %v3562 = vsel %vm894, %v3554, %v3301
        %v3563 = vsel %vm894, %v3555, %v3303
        %v3564 = vsel %vm894, %v3556, %v3305
        %v3565 = vsel %vm894, %v3557, %v3307
        %v3566 = vsel %vm894, %v3558, %v3309
        %v3567 = vsel %vm894, %v3559, %v3311
        %v3568 = vsel %vm903, %v3560, %v3321
        %v3569 = vsel %vm903, %v3561, %v3323
        %v3570 = vsel %vm903, %v3562, %v3325
        %v3571 = vsel %vm903, %v3563, %v3327
        %v3572 = vsel %vm903, %v3564, %v3329
        %v3573 = vsel %vm903, %v3565, %v3331
        %v3574 = vsel %vm903, %v3566, %v3333
        %v3575 = vsel %vm903, %v3567, %v3335
        %v3576 = vsel %vm912, %v3568, %v3345
        %v3577 = vsel %vm912, %v3569, %v3347
        %v3578 = vsel %vm912, %v3570, %v3349
        %v3579 = vsel %vm912, %v3571, %v3351
        %v3580 = vsel %vm912, %v3572, %v3353
        %v3581 = vsel %vm912, %v3573, %v3355
        %v3582 = vsel %vm912, %v3574, %v3357
        %v3583 = vsel %vm912, %v3575, %v3359
        %v3584 = vsel %vm921, %v3576, %v3369
        %v3585 = vsel %vm921, %v3577, %v3371
        %v3586 = vsel %vm921, %v3578, %v3373
        %v3587 = vsel %vm921, %v3579, %v3375
        %v3588 = vsel %vm921, %v3580, %v3377
        %v3589 = vsel %vm921, %v3581, %v3379
        %v3590 = vsel %vm921, %v3582, %v3381
        %v3591 = vsel %vm921, %v3583, %v3383
        %v3592 = vsel %vm930, %v3584, %v3393
        %v3593 = vsel %vm930, %v3585, %v3395
        %v3594 = vsel %vm930, %v3586, %v3397
        %v3595 = vsel %vm930, %v3587, %v3399
        %v3596 = vsel %vm930, %v3588, %v3401
        %v3597 = vsel %vm930, %v3589, %v3403
        %v3598 = vsel %vm930, %v3590, %v3405
        %v3599 = vsel %vm930, %v3591, %v3407
        %v3600 = vsel %vm939, %v3592, %v3417
        %v3601 = vsel %vm939, %v3593, %v3419
        %v3602 = vsel %vm939, %v3594, %v3421
        %v3603 = vsel %vm939, %v3595, %v3423
        %v3604 = vsel %vm939, %v3596, %v3425
        %v3605 = vsel %vm939, %v3597, %v3427
        %v3606 = vsel %vm939, %v3598, %v3429
        %v3607 = vsel %vm939, %v3599, %v3431
        %v3608 = vsel %vm948, %v3600, %v3441
        %v3609 = vsel %vm948, %v3601, %v3443
        %v3610 = vsel %vm948, %v3602, %v3445
        %v3611 = vsel %vm948, %v3603, %v3447
        %v3612 = vsel %vm948, %v3604, %v3449
        %v3613 = vsel %vm948, %v3605, %v3451
        %v3614 = vsel %vm948, %v3606, %v3453
        %v3615 = vsel %vm948, %v3607, %v3455
        %v3616 = vsel %vm957, %v3608, %v3465
        %v3617 = vsel %vm957, %v3609, %v3467
        %v3618 = vsel %vm957, %v3610, %v3469
        %v3619 = vsel %vm957, %v3611, %v3471
        %v3620 = vsel %vm957, %v3612, %v3473
        %v3621 = vsel %vm957, %v3613, %v3475
        %v3622 = vsel %vm957, %v3614, %v3477
        %v3623 = vsel %vm957, %v3615, %v3479
        %v3624 = vsel %vm966, %v3616, %v3489
        %v3625 = vsel %vm966, %v3617, %v3491
        %v3626 = vsel %vm966, %v3618, %v3493
        %v3627 = vsel %vm966, %v3619, %v3495
        %v3628 = vsel %vm966, %v3620, %v3497
        %v3629 = vsel %vm966, %v3621, %v3499
        %v3630 = vsel %vm966, %v3622, %v3501
        %v3631 = vsel %vm966, %v3623, %v3503
        %3632 = vrot.lane.b32.xlu0 %v3032, 4
        %v3633 = vpop.permute.xlu0 %3632
        %3634 = vrot.lane.b32.xlu0 %v3035, 4
        %v3635 = vpop.permute.xlu0 %3634
        %3636 = vrot.lane.b32.xlu0 %v3038, 4
        %v3637 = vpop.permute.xlu0 %3636
        %3638 = vrot.lane.b32.xlu0 %v3041, 4
        %v3639 = vpop.permute.xlu0 %3638
        %3640 = vrot.lane.b32.xlu0 %v3044, 4
        %v3641 = vpop.permute.xlu0 %3640
        %3642 = vrot.lane.b32.xlu0 %v3047, 4
        %v3643 = vpop.permute.xlu0 %3642
        %3644 = vrot.lane.b32.xlu0 %v3055, 4
        %v3645 = vpop.permute.xlu0 %3644
        %3646 = vrot.lane.b32.xlu0 %v3071, 4
        %v3647 = vpop.permute.xlu0 %3646
        %3656 = vrot.lane.b32.xlu0 %v2884, 8
        %v3657 = vpop.permute.xlu0 %3656
        %3658 = vrot.lane.b32.xlu0 %v2886, 8
        %v3659 = vpop.permute.xlu0 %3658
        %3660 = vrot.lane.b32.xlu0 %v2888, 8
        %v3661 = vpop.permute.xlu0 %3660
        %3662 = vrot.lane.b32.xlu0 %v2890, 8
        %v3663 = vpop.permute.xlu0 %3662
        %3664 = vrot.lane.b32.xlu0 %v2892, 8
        %v3665 = vpop.permute.xlu0 %3664
        %3666 = vrot.lane.b32.xlu0 %v2894, 8
        %v3667 = vpop.permute.xlu0 %3666
        %3668 = vrot.lane.b32.xlu0 %v2896, 8
        %v3669 = vpop.permute.xlu0 %3668
        %3670 = vrot.lane.b32.xlu0 %v2898, 8
        %v3671 = vpop.permute.xlu0 %3670
        %3680 = vrot.lane.b32.xlu0 %v3090, 12
        %v3681 = vpop.permute.xlu0 %3680
        %3682 = vrot.lane.b32.xlu0 %v3093, 12
        %v3683 = vpop.permute.xlu0 %3682
        %3684 = vrot.lane.b32.xlu0 %v3096, 12
        %v3685 = vpop.permute.xlu0 %3684
        %3686 = vrot.lane.b32.xlu0 %v3099, 12
        %v3687 = vpop.permute.xlu0 %3686
        %3688 = vrot.lane.b32.xlu0 %v3102, 12
        %v3689 = vpop.permute.xlu0 %3688
        %3690 = vrot.lane.b32.xlu0 %v3105, 12
        %v3691 = vpop.permute.xlu0 %3690
        %3692 = vrot.lane.b32.xlu0 %v3108, 12
        %v3693 = vpop.permute.xlu0 %3692
        %3694 = vrot.lane.b32.xlu0 %v3111, 12
        %v3695 = vpop.permute.xlu0 %3694
        %3704 = vrot.lane.b32.xlu0 %v3114, 16
        %v3705 = vpop.permute.xlu0 %3704
        %3706 = vrot.lane.b32.xlu0 %v3117, 16
        %v3707 = vpop.permute.xlu0 %3706
        %3708 = vrot.lane.b32.xlu0 %v3120, 16
        %v3709 = vpop.permute.xlu0 %3708
        %3710 = vrot.lane.b32.xlu0 %v3123, 16
        %v3711 = vpop.permute.xlu0 %3710
        %3712 = vrot.lane.b32.xlu0 %v3126, 16
        %v3713 = vpop.permute.xlu0 %3712
        %3714 = vrot.lane.b32.xlu0 %v3129, 16
        %v3715 = vpop.permute.xlu0 %3714
        %3716 = vrot.lane.b32.xlu0 %v3132, 16
        %v3717 = vpop.permute.xlu0 %3716
        %3718 = vrot.lane.b32.xlu0 %v3135, 16
        %v3719 = vpop.permute.xlu0 %3718
        %3728 = vrot.lane.b32.xlu0 %v2886, 20
        %v3729 = vpop.permute.xlu0 %3728
        %3730 = vrot.lane.b32.xlu0 %v2888, 20
        %v3731 = vpop.permute.xlu0 %3730
        %3732 = vrot.lane.b32.xlu0 %v2890, 20
        %v3733 = vpop.permute.xlu0 %3732
        %3734 = vrot.lane.b32.xlu0 %v2892, 20
        %v3735 = vpop.permute.xlu0 %3734
        %3736 = vrot.lane.b32.xlu0 %v2894, 20
        %v3737 = vpop.permute.xlu0 %3736
        %3738 = vrot.lane.b32.xlu0 %v2896, 20
        %v3739 = vpop.permute.xlu0 %3738
        %3740 = vrot.lane.b32.xlu0 %v2898, 20
        %v3741 = vpop.permute.xlu0 %3740
        %3742 = vrot.lane.b32.xlu0 %v2900, 20
        %v3743 = vpop.permute.xlu0 %3742
        %3752 = vrot.lane.b32.xlu0 %v3093, 24
        %v3753 = vpop.permute.xlu0 %3752
        %3754 = vrot.lane.b32.xlu0 %v3096, 24
        %v3755 = vpop.permute.xlu0 %3754
        %3756 = vrot.lane.b32.xlu0 %v3099, 24
        %v3757 = vpop.permute.xlu0 %3756
        %3758 = vrot.lane.b32.xlu0 %v3102, 24
        %v3759 = vpop.permute.xlu0 %3758
        %3760 = vrot.lane.b32.xlu0 %v3105, 24
        %v3761 = vpop.permute.xlu0 %3760
        %3762 = vrot.lane.b32.xlu0 %v3108, 24
        %v3763 = vpop.permute.xlu0 %3762
        %3764 = vrot.lane.b32.xlu0 %v3111, 24
        %v3765 = vpop.permute.xlu0 %3764
        %3766 = vrot.lane.b32.xlu0 %v3140, 24
        %v3767 = vpop.permute.xlu0 %3766
        %3776 = vrot.lane.b32.xlu0 %v3117, 28
        %v3777 = vpop.permute.xlu0 %3776
        %3778 = vrot.lane.b32.xlu0 %v3120, 28
        %v3779 = vpop.permute.xlu0 %3778
        %3780 = vrot.lane.b32.xlu0 %v3123, 28
        %v3781 = vpop.permute.xlu0 %3780
        %3782 = vrot.lane.b32.xlu0 %v3126, 28
        %v3783 = vpop.permute.xlu0 %3782
        %3784 = vrot.lane.b32.xlu0 %v3129, 28
        %v3785 = vpop.permute.xlu0 %3784
        %3786 = vrot.lane.b32.xlu0 %v3132, 28
        %v3787 = vpop.permute.xlu0 %3786
        %3788 = vrot.lane.b32.xlu0 %v3135, 28
        %v3789 = vpop.permute.xlu0 %3788
        %3790 = vrot.lane.b32.xlu0 %v3143, 28
        %v3791 = vpop.permute.xlu0 %3790
        %3800 = vrot.lane.b32.xlu0 %v2888, 32
        %v3801 = vpop.permute.xlu0 %3800
        %3802 = vrot.lane.b32.xlu0 %v2890, 32
        %v3803 = vpop.permute.xlu0 %3802
        %3804 = vrot.lane.b32.xlu0 %v2892, 32
        %v3805 = vpop.permute.xlu0 %3804
        %3806 = vrot.lane.b32.xlu0 %v2894, 32
        %v3807 = vpop.permute.xlu0 %3806
        %3808 = vrot.lane.b32.xlu0 %v2896, 32
        %v3809 = vpop.permute.xlu0 %3808
        %3810 = vrot.lane.b32.xlu0 %v2898, 32
        %v3811 = vpop.permute.xlu0 %3810
        %3812 = vrot.lane.b32.xlu0 %v2900, 32
        %v3813 = vpop.permute.xlu0 %3812
        %3814 = vrot.lane.b32.xlu0 %v2902, 32
        %v3815 = vpop.permute.xlu0 %3814
        %3824 = vrot.lane.b32.xlu0 %v3096, 36
        %v3825 = vpop.permute.xlu0 %3824
        %3826 = vrot.lane.b32.xlu0 %v3099, 36
        %v3827 = vpop.permute.xlu0 %3826
        %3828 = vrot.lane.b32.xlu0 %v3102, 36
        %v3829 = vpop.permute.xlu0 %3828
        %3830 = vrot.lane.b32.xlu0 %v3105, 36
        %v3831 = vpop.permute.xlu0 %3830
        %3832 = vrot.lane.b32.xlu0 %v3108, 36
        %v3833 = vpop.permute.xlu0 %3832
        %3834 = vrot.lane.b32.xlu0 %v3111, 36
        %v3835 = vpop.permute.xlu0 %3834
        %3836 = vrot.lane.b32.xlu0 %v3140, 36
        %v3837 = vpop.permute.xlu0 %3836
        %3838 = vrot.lane.b32.xlu0 %v3148, 36
        %v3839 = vpop.permute.xlu0 %3838
        %3848 = vrot.lane.b32.xlu0 %v3120, 40
        %v3849 = vpop.permute.xlu0 %3848
        %3850 = vrot.lane.b32.xlu0 %v3123, 40
        %v3851 = vpop.permute.xlu0 %3850
        %3852 = vrot.lane.b32.xlu0 %v3126, 40
        %v3853 = vpop.permute.xlu0 %3852
        %3854 = vrot.lane.b32.xlu0 %v3129, 40
        %v3855 = vpop.permute.xlu0 %3854
        %3856 = vrot.lane.b32.xlu0 %v3132, 40
        %v3857 = vpop.permute.xlu0 %3856
        %3858 = vrot.lane.b32.xlu0 %v3135, 40
        %v3859 = vpop.permute.xlu0 %3858
        %3860 = vrot.lane.b32.xlu0 %v3143, 40
        %v3861 = vpop.permute.xlu0 %3860
        %3862 = vrot.lane.b32.xlu0 %v3151, 40
        %v3863 = vpop.permute.xlu0 %3862
        %v3872 = vsel %vm840, %v3008, %v3633
        %v3873 = vsel %vm840, %v3011, %v3635
        %v3874 = vsel %vm840, %v3014, %v3637
        %v3875 = vsel %vm840, %v3017, %v3639
        %v3876 = vsel %vm840, %v3020, %v3641
        %v3877 = vsel %vm840, %v3023, %v3643
        %v3878 = vsel %vm840, %v3052, %v3645
        %v3879 = vsel %vm840, %v3060, %v3647
        %v3880 = vsel %vm849, %v3872, %v3657
        %v3881 = vsel %vm849, %v3873, %v3659
        %v3882 = vsel %vm849, %v3874, %v3661
        %v3883 = vsel %vm849, %v3875, %v3663
        %v3884 = vsel %vm849, %v3876, %v3665
        %v3885 = vsel %vm849, %v3877, %v3667
        %v3886 = vsel %vm849, %v3878, %v3669
        %v3887 = vsel %vm849, %v3879, %v3671
        %v3888 = vsel %vm858, %v3880, %v3681
        %v3889 = vsel %vm858, %v3881, %v3683
        %v3890 = vsel %vm858, %v3882, %v3685
        %v3891 = vsel %vm858, %v3883, %v3687
        %v3892 = vsel %vm858, %v3884, %v3689
        %v3893 = vsel %vm858, %v3885, %v3691
        %v3894 = vsel %vm858, %v3886, %v3693
        %v3895 = vsel %vm858, %v3887, %v3695
        %v3896 = vsel %vm867, %v3888, %v3705
        %v3897 = vsel %vm867, %v3889, %v3707
        %v3898 = vsel %vm867, %v3890, %v3709
        %v3899 = vsel %vm867, %v3891, %v3711
        %v3900 = vsel %vm867, %v3892, %v3713
        %v3901 = vsel %vm867, %v3893, %v3715
        %v3902 = vsel %vm867, %v3894, %v3717
        %v3903 = vsel %vm867, %v3895, %v3719
        %v3904 = vsel %vm876, %v3896, %v3729
        %v3905 = vsel %vm876, %v3897, %v3731
        %v3906 = vsel %vm876, %v3898, %v3733
        %v3907 = vsel %vm876, %v3899, %v3735
        %v3908 = vsel %vm876, %v3900, %v3737
        %v3909 = vsel %vm876, %v3901, %v3739
        %v3910 = vsel %vm876, %v3902, %v3741
        %v3911 = vsel %vm876, %v3903, %v3743
        %v3912 = vsel %vm885, %v3904, %v3753
        %v3913 = vsel %vm885, %v3905, %v3755
        %v3914 = vsel %vm885, %v3906, %v3757
        %v3915 = vsel %vm885, %v3907, %v3759
        %v3916 = vsel %vm885, %v3908, %v3761
        %v3917 = vsel %vm885, %v3909, %v3763
        %v3918 = vsel %vm885, %v3910, %v3765
        %v3919 = vsel %vm885, %v3911, %v3767
        %v3920 = vsel %vm894, %v3912, %v3777
        %v3921 = vsel %vm894, %v3913, %v3779
        %v3922 = vsel %vm894, %v3914, %v3781
        %v3923 = vsel %vm894, %v3915, %v3783
        %v3924 = vsel %vm894, %v3916, %v3785
        %v3925 = vsel %vm894, %v3917, %v3787
        %v3926 = vsel %vm894, %v3918, %v3789
        %v3927 = vsel %vm894, %v3919, %v3791
        %v3928 = vsel %vm903, %v3920, %v3801
        %v3929 = vsel %vm903, %v3921, %v3803
        %v3930 = vsel %vm903, %v3922, %v3805
        %v3931 = vsel %vm903, %v3923, %v3807
        %v3932 = vsel %vm903, %v3924, %v3809
        %v3933 = vsel %vm903, %v3925, %v3811
        %v3934 = vsel %vm903, %v3926, %v3813
        %v3935 = vsel %vm903, %v3927, %v3815
        %v3936 = vsel %vm912, %v3928, %v3825
        %v3937 = vsel %vm912, %v3929, %v3827
        %v3938 = vsel %vm912, %v3930, %v3829
        %v3939 = vsel %vm912, %v3931, %v3831
        %v3940 = vsel %vm912, %v3932, %v3833
        %v3941 = vsel %vm912, %v3933, %v3835
        %v3942 = vsel %vm912, %v3934, %v3837
        %v3943 = vsel %vm912, %v3935, %v3839
        %v3944 = vsel %vm921, %v3936, %v3849
        %v3945 = vsel %vm921, %v3937, %v3851
        %v3946 = vsel %vm921, %v3938, %v3853
        %v3947 = vsel %vm921, %v3939, %v3855
        %v3948 = vsel %vm921, %v3940, %v3857
        %v3949 = vsel %vm921, %v3941, %v3859
        %v3950 = vsel %vm921, %v3942, %v3861
        %v3951 = vsel %vm921, %v3943, %v3863
        %3960 = vrot.lane.b32.xlu0 %v3944, 64
        %v3961 = vpop.permute.xlu0 %3960
        %3962 = vrot.lane.b32.xlu0 %v3945, 64
        %v3963 = vpop.permute.xlu0 %3962
        %3964 = vrot.lane.b32.xlu0 %v3946, 64
        %v3965 = vpop.permute.xlu0 %3964
        %3966 = vrot.lane.b32.xlu0 %v3947, 64
        %v3967 = vpop.permute.xlu0 %3966
        %3968 = vrot.lane.b32.xlu0 %v3948, 64
        %v3969 = vpop.permute.xlu0 %3968
        %3970 = vrot.lane.b32.xlu0 %v3949, 64
        %v3971 = vpop.permute.xlu0 %3970
        %3972 = vrot.lane.b32.xlu0 %v3950, 64
        %v3973 = vpop.permute.xlu0 %3972
        %3974 = vrot.lane.b32.xlu0 %v3951, 64
        %v3975 = vpop.permute.xlu0 %3974
        %v3984 = vsel %vm1327, %v3624, %v3961
        %v3985 = vsel %vm1327, %v3625, %v3963
        %v3986 = vsel %vm1327, %v3626, %v3965
        %v3987 = vsel %vm1327, %v3627, %v3967
        %v3988 = vsel %vm1327, %v3628, %v3969
        %v3989 = vsel %vm1327, %v3629, %v3971
        %v3990 = vsel %vm1327, %v3630, %v3973
        %v3991 = vsel %vm1327, %v3631, %v3975
        %v3992 = vpack.c.bf16 %v3985, %v3984
        %v3993 = vpack.c.bf16 %v3987, %v3986
        %v3994 = vpack.c.bf16 %v3989, %v3988
        %v3995 = vpack.c.bf16 %v3991, %v3990
        %v3996 = vld [vmem:[%s1] sm:$0xf]
        %v3997 = vld [vmem:[%s1 + $0x4] sm:$0xf]
        %v3998 = vld [vmem:[%s1 + $0x8] sm:$0xf]
        %v3999 = vld [vmem:[%s1 + $0xc] sm:$0xf]
        %v4000 = vld [vmem:[%s1 + $0x10] sm:$0xf]
        %v4001 = vld [vmem:[%s1 + $0x14] sm:$0xf]
        %v4002 = vld [vmem:[%s1 + $0x18] sm:$0xf]
        %v4003 = vld [vmem:[%s1 + $0x1c] sm:$0xf]
        %v4004 = vld [vmem:[%s1 + $0x20] sm:$0xf]
        %v4005 = vld [vmem:[%s1 + $0x24] sm:$0xf]
        %v4006 = vld [vmem:[%s1 + $0x28] sm:$0xf]
        %v4007 = vld [vmem:[%s1 + $0x2c] sm:$0xf]
        %v4008 = vld [vmem:[%s1 + $0x30] sm:$0xf]
        %v4009 = vld [vmem:[%s1 + $0x34] sm:$0x3]
        %v4010 = vld [vmem:[%s2] sm:$0x1]
        %v4012 = vlaneseq
        %v4013 = vshrl.u32 %v4012, 7
        %v4014 = vsub.s32 0, %v4013
        %v4015 = vrot.slane %v4010, %v4014
        %v4031 = vunpack.c.l.b16 %v3996
        %v4032 = vunpack.c.l.b16 %v3997
        %v4033 = vunpack.c.l.b16 %v3998
        %v4034 = vunpack.c.l.b16 %v3999
        %v4035 = vunpack.c.l.b16 %v4000
        %v4036 = vunpack.c.l.b16 %v4001
        %v4037 = vunpack.c.l.b16 %v4002
        %v4038 = vunpack.c.l.b16 %v4003
        %v4039 = vunpack.c.l.b16 %v4004
        %v4040 = vunpack.c.l.b16 %v4005
        %v4041 = vunpack.c.l.b16 %v4006
        %v4042 = vunpack.c.l.b16 %v4007
        %v4043 = vunpack.c.l.b16 %v4008
        %v4044 = vunpack.c.l.b16 %v4009
        %v4045 = vpack.c.b16 %v4032, %v4031
        %v4046 = vpack.c.b16 %v4034, %v4033
        %v4047 = vpack.c.b16 %v4036, %v4035
        %v4048 = vpack.c.b16 %v4038, %v4037
        %v4049 = vpack.c.b16 %v4040, %v4039
        %v4050 = vpack.c.b16 %v4042, %v4041
        %v4051 = vpack.c.b16 %v4044, %v4043
        %v4059 = vsel %vm1402, %v3992, 0
        %v4062 = vsel %vm1402, %v3993, 0
        %v4065 = vsel %vm1402, %v3994, 0
        %v4068 = vsel %vm1402, %v3995, 0
        %v4071 = vsel %vm271, %v4051, 0
        %4073 = vmatprep.subr.bf16.mxu0 0
        %4074 = vmatpush1.bf16.msra.mxu0 0
        %4075 = vmatprep.subr.bf16.mxu0 0
        %4076 = vmatpush1.bf16.msra.mxu0 %v4071
        %4077 = vmatprep.subr.bf16.mxu0 0
        %4078 = vmatpush1.bf16.msra.mxu0 %v4050
        %4079 = vmatprep.subr.bf16.mxu0 0
        %4080 = vmatpush1.bf16.msra.mxu0 %v4049
        %4081 = vmatprep.subr.bf16.mxu0 0
        %4082 = vmatpush1.bf16.msra.mxu0 %v4048
        %4083 = vmatprep.subr.bf16.mxu0 0
        %4084 = vmatpush1.bf16.msra.mxu0 %v4047
        %4085 = vmatprep.subr.bf16.mxu0 0
        %4086 = vmatpush1.bf16.msra.mxu0 %v4046
        %4087 = vmatprep.subr.bf16.mxu0 0
        %4088 = vmatpush1.bf16.msra.mxu0 %v4045
        %4089 = vmatprep.subr.bf16.mxu0 0
        %4090 = vmatpush2.bf16.msra.mxu0 0
        %4091 = vmatprep.subr.bf16.mxu0 0
        %4092 = vmatpush2.bf16.msra.mxu0 0
        %4093 = vmatprep.subr.bf16.mxu0 0
        %4094 = vmatpush2.bf16.msra.mxu0 0
        %4095 = vmatprep.subr.bf16.mxu0 0
        %4096 = vmatpush2.bf16.msra.mxu0 0
        %4097 = vmatprep.subr.bf16.mxu0 0
        %4098 = vmatpush2.bf16.msra.mxu0 0
        %4099 = vmatprep.subr.bf16.mxu0 0
        %4100 = vmatpush2.bf16.msra.mxu0 0
        %4101 = vmatprep.subr.bf16.mxu0 0
        %4102 = vmatpush2.bf16.msra.mxu0 0
        %4103 = vmatprep.subr.bf16.mxu0 0
        %4104 = vmatpush2.bf16.msra.mxu0 0
        %4105 = vmatprep.mubr.bf16.mxu0 0
        %4106 = vmatmul.mubr.bf16.gmra.mxu0 %v4059
        %v4107 = vpop.f32.mrf.mxu0
        %v4108 = vadd.f32 %v4015, %v4107
        %v4109 = vpop.f32.mrf.mxu0
        %v4110 = vpop.f32.mrf.mxu0
        %v4111 = vadd.f32 %v4015, %v4110
        %v4112 = vpop.f32.mrf.mxu0
        %4113 = vmatprep.mubr.bf16.mxu0 0
        %4114 = vmatmul.mubr.bf16.gmra.mxu0 %v4062
        %v4115 = vpop.f32.mrf.mxu0
        %v4116 = vadd.f32 %v4015, %v4115
        %v4117 = vpop.f32.mrf.mxu0
        %v4118 = vpop.f32.mrf.mxu0
        %v4119 = vadd.f32 %v4015, %v4118
        %v4120 = vpop.f32.mrf.mxu0
        %4121 = vmatprep.mubr.bf16.mxu0 0
        %4122 = vmatmul.mubr.bf16.gmra.mxu0 %v4065
        %v4123 = vpop.f32.mrf.mxu0
        %v4124 = vadd.f32 %v4015, %v4123
        %v4125 = vpop.f32.mrf.mxu0
        %v4126 = vpop.f32.mrf.mxu0
        %v4127 = vadd.f32 %v4015, %v4126
        %v4128 = vpop.f32.mrf.mxu0
        %4129 = vmatprep.mubr.bf16.mxu0 0
        %4130 = vmatmul.mubr.bf16.gmra.mxu0 %v4068
        %v4131 = vpop.f32.mrf.mxu0
        %v4132 = vadd.f32 %v4015, %v4131
        %v4133 = vpop.f32.mrf.mxu0
        %v4134 = vpop.f32.mrf.mxu0
        %v4135 = vadd.f32 %v4015, %v4134
        %v4136 = vpop.f32.mrf.mxu0
        %4137 = vdwg.mxu0
        %vm4138 = vcmp.gt.f32.partialorder %v4108, 0.0
        %vm4139 = vcmp.gt.f32.partialorder %v4111, 0.0
        %vm4140 = vcmp.gt.f32.partialorder %v4116, 0.0
        %vm4141 = vcmp.gt.f32.partialorder %v4119, 0.0
        %vm4142 = vcmp.gt.f32.partialorder %v4124, 0.0
        %vm4143 = vcmp.gt.f32.partialorder %v4127, 0.0
        %vm4144 = vcmp.gt.f32.partialorder %v4132, 0.0
        %vm4145 = vcmp.gt.f32.partialorder %v4135, 0.0
        %v4146 = vmul.f32 %v4108, 0.1
        %v4147 = vmul.f32 %v4111, 0.1
        %v4148 = vmul.f32 %v4116, 0.1
        %v4149 = vmul.f32 %v4119, 0.1
        %v4150 = vmul.f32 %v4124, 0.1
        %v4151 = vmul.f32 %v4127, 0.1
        %v4152 = vmul.f32 %v4132, 0.1
        %v4153 = vmul.f32 %v4135, 0.1
        %v4154 = vsel %vm4138, %v4108, %v4146
        %v4155 = vsel %vm4139, %v4111, %v4147
        %v4156 = vsel %vm4140, %v4116, %v4148
        %v4157 = vsel %vm4141, %v4119, %v4149
        %v4158 = vsel %vm4142, %v4124, %v4150
        %v4159 = vsel %vm4143, %v4127, %v4151
        %v4160 = vsel %vm4144, %v4132, %v4152
        %v4161 = vsel %vm4145, %v4135, %v4153
        %s4162 = scalar_lea.vmem %s163, 128 [#allocation2]
        %4163 = vst [vmem:[%s4162] sm:$0xff] %v4154
        %4164 = vst [vmem:[%s4162 + $0x8] sm:$0xff] %v4155
        %4165 = vst [vmem:[%s4162 + $0x10] sm:$0xff] %v4156
        %4166 = vst [vmem:[%s4162 + $0x18] sm:$0xff] %v4157
        %4167 = vst [vmem:[%s4162 + $0x20] sm:$0xff] %v4158
        %4168 = vst [vmem:[%s4162 + $0x28] sm:$0xff] %v4159
        %4169 = vst [vmem:[%s4162 + $0x30] sm:$0xff] %v4160
        %4170 = vst [vmem:[%s4162 + $0x38] sm:$0xff] %v4161
        %s4171 = scalar_lea.vmem %s168, 480
        %v4172 = vld [vmem:[%s4171] sm:$0xff]
        %v4173 = vld [vmem:[%s4171 + $0x8] sm:$0x3]
        %v4174 = vld [vmem:[%s4171 + $0x10] sm:$0xff]
        %v4175 = vld [vmem:[%s4171 + $0x18] sm:$0x3]
        %v4176 = vld [vmem:[%s4171 + $0x20] sm:$0xff]
        %v4177 = vld [vmem:[%s4171 + $0x28] sm:$0x3]
        %v4178 = vld [vmem:[%s4171 + $0x30] sm:$0xff]
        %v4179 = vld [vmem:[%s4171 + $0x38] sm:$0x3]
        %v4180 = vld [vmem:[%s4171 + $0x40] sm:$0xff]
        %v4181 = vld [vmem:[%s4171 + $0x48] sm:$0x3]
        %v4182 = vld [vmem:[%s4171 + $0x50] sm:$0xff]
        %v4183 = vld [vmem:[%s4171 + $0x58] sm:$0x3]
        %v4184 = vld [vmem:[%s4171 + $0x60] sm:$0xff]
        %v4185 = vld [vmem:[%s4171 + $0x68] sm:$0x3]
        %v4186 = vld [vmem:[%s4171 + $0x70] sm:$0xff]
        %v4187 = vld [vmem:[%s4171 + $0x78] sm:$0x3]
        %v4188 = vld [vmem:[%s4171 + $0x80] sm:$0xff]
        %v4189 = vld [vmem:[%s4171 + $0x88] sm:$0x3]
        %v4190 = vld [vmem:[%s4171 + $0x90] sm:$0xff]
        %v4191 = vld [vmem:[%s4171 + $0x98] sm:$0x3]
        %v4192 = vld [vmem:[%s4171 + $0xa0] sm:$0xff]
        %v4193 = vld [vmem:[%s4171 + $0xa8] sm:$0x3]
        %v4194 = vld [vmem:[%s4171 + $0xb0] sm:$0xff]
        %v4195 = vld [vmem:[%s4171 + $0xb8] sm:$0x3]
        %v4196 = vld [vmem:[%s4171 + $0xc0] sm:$0xff]
        %v4197 = vld [vmem:[%s4171 + $0xc8] sm:$0x3]
        %v4198 = vld [vmem:[%s4171 + $0xd0] sm:$0xff]
        %v4199 = vld [vmem:[%s4171 + $0xd8] sm:$0x3]
        %v4200 = vld [vmem:[%s4171 + $0xe0] sm:$0xff]
        %v4201 = vld [vmem:[%s4171 + $0xe8] sm:$0x3]
        %v4202 = vld [vmem:[%s4171 + $0xf0] sm:$0xff]
        %v4203 = vld [vmem:[%s4171 + $0xf8] sm:$0x3]
        %v4204 = vld [vmem:[%s4171 + $0x100] sm:$0xff]
        %v4205 = vld [vmem:[%s4171 + $0x108] sm:$0x3]
        %v4206 = vld [vmem:[%s4171 + $0x110] sm:$0xff]
        %v4207 = vld [vmem:[%s4171 + $0x118] sm:$0x3]
        %v4208 = vld [vmem:[%s4171 + $0x120] sm:$0xff]
        %v4209 = vld [vmem:[%s4171 + $0x128] sm:$0x3]
        %v4210 = vld [vmem:[%s4171 + $0x130] sm:$0xff]
        %v4211 = vld [vmem:[%s4171 + $0x138] sm:$0x3]
        %v4212 = vld [vmem:[%s4171 + $0x140] sm:$0xff]
        %v4213 = vld [vmem:[%s4171 + $0x148] sm:$0x3]
        %v4214 = vld [vmem:[%s4171 + $0x150] sm:$0xff]
        %v4215 = vld [vmem:[%s4171 + $0x158] sm:$0x3]
        %v4216 = vld [vmem:[%s4171 + $0x160] sm:$0xff]
        %v4217 = vld [vmem:[%s4171 + $0x168] sm:$0x3]
        %v4218 = vld [vmem:[%s4171 + $0x170] sm:$0xff]
        %v4219 = vld [vmem:[%s4171 + $0x178] sm:$0x3]
        %v4220 = vld [vmem:[%s4171 + $0x180] sm:$0xff]
        %v4221 = vld [vmem:[%s4171 + $0x188] sm:$0x3]
        %v4222 = vld [vmem:[%s4171 + $0x190] sm:$0xff]
        %v4223 = vld [vmem:[%s4171 + $0x198] sm:$0x3]
        %v4224 = vld [vmem:[%s4171 + $0x1a0] sm:$0xff]
        %v4225 = vld [vmem:[%s4171 + $0x1a8] sm:$0x3]
        %v4226 = vld [vmem:[%s4171 + $0x1b0] sm:$0xff]
        %v4227 = vld [vmem:[%s4171 + $0x1b8] sm:$0x3]
        %v4228 = vld [vmem:[%s4171 + $0x1c0] sm:$0xff]
        %v4229 = vld [vmem:[%s4171 + $0x1c8] sm:$0x3]
        %v4230 = vld [vmem:[%s4171 + $0x1d0] sm:$0xff]
        %v4231 = vld [vmem:[%s4171 + $0x1d8] sm:$0x3]
        %v4248 = vrot.slane %v4172, 1
        %v4249 = vrot.slane %v4173, 1
        %v4250 = vsel %vm246, %v4248, %v4249
        %v4251 = vrot.slane %v4174, 1
        %v4252 = vrot.slane %v4175, 1
        %v4253 = vsel %vm246, %v4251, %v4252
        %v4254 = vrot.slane %v4176, 1
        %v4255 = vrot.slane %v4177, 1
        %v4256 = vsel %vm246, %v4254, %v4255
        %v4257 = vrot.slane %v4178, 1
        %v4258 = vrot.slane %v4179, 1
        %v4259 = vsel %vm246, %v4257, %v4258
        %v4260 = vrot.slane %v4180, 1
        %v4261 = vrot.slane %v4181, 1
        %v4262 = vsel %vm246, %v4260, %v4261
        %v4263 = vrot.slane %v4182, 1
        %v4264 = vrot.slane %v4183, 1
        %v4265 = vsel %vm246, %v4263, %v4264
        %v4266 = vrot.slane %v4184, 1
        %v4267 = vrot.slane %v4185, 1
        %v4268 = vsel %vm246, %v4266, %v4267
        %v4269 = vrot.slane %v4186, 1
        %v4270 = vrot.slane %v4187, 1
        %v4271 = vsel %vm246, %v4269, %v4270
        %v4272 = vrot.slane %v4172, 2
        %v4273 = vrot.slane %v4173, 2
        %v4274 = vsel %vm271, %v4272, %v4273
        %v4275 = vrot.slane %v4174, 2
        %v4276 = vrot.slane %v4175, 2
        %v4277 = vsel %vm271, %v4275, %v4276
        %v4278 = vrot.slane %v4176, 2
        %v4279 = vrot.slane %v4177, 2
        %v4280 = vsel %vm271, %v4278, %v4279
        %v4281 = vrot.slane %v4178, 2
        %v4282 = vrot.slane %v4179, 2
        %v4283 = vsel %vm271, %v4281, %v4282
        %v4284 = vrot.slane %v4180, 2
        %v4285 = vrot.slane %v4181, 2
        %v4286 = vsel %vm271, %v4284, %v4285
        %v4287 = vrot.slane %v4182, 2
        %v4288 = vrot.slane %v4183, 2
        %v4289 = vsel %vm271, %v4287, %v4288
        %v4290 = vrot.slane %v4184, 2
        %v4291 = vrot.slane %v4185, 2
        %v4292 = vsel %vm271, %v4290, %v4291
        %v4293 = vrot.slane %v4186, 2
        %v4294 = vrot.slane %v4187, 2
        %v4295 = vsel %vm271, %v4293, %v4294
        %v4298 = vrot.slane %v4188, 1
        %v4299 = vrot.slane %v4189, 1
        %v4300 = vsel %vm246, %v4298, %v4299
        %v4301 = vrot.slane %v4188, 2
        %v4302 = vrot.slane %v4189, 2
        %v4303 = vsel %vm271, %v4301, %v4302
        %v4306 = vrot.slane %v4190, 1
        %v4307 = vrot.slane %v4191, 1
        %v4308 = vsel %vm246, %v4306, %v4307
        %v4309 = vrot.slane %v4190, 2
        %v4310 = vrot.slane %v4191, 2
        %v4311 = vsel %vm271, %v4309, %v4310
        %v4328 = vrot.slane %v4192, 1
        %v4329 = vrot.slane %v4193, 1
        %v4330 = vsel %vm246, %v4328, %v4329
        %v4331 = vrot.slane %v4194, 1
        %v4332 = vrot.slane %v4195, 1
        %v4333 = vsel %vm246, %v4331, %v4332
        %v4334 = vrot.slane %v4196, 1
        %v4335 = vrot.slane %v4197, 1
        %v4336 = vsel %vm246, %v4334, %v4335
        %v4337 = vrot.slane %v4198, 1
        %v4338 = vrot.slane %v4199, 1
        %v4339 = vsel %vm246, %v4337, %v4338
        %v4340 = vrot.slane %v4200, 1
        %v4341 = vrot.slane %v4201, 1
        %v4342 = vsel %vm246, %v4340, %v4341
        %v4343 = vrot.slane %v4202, 1
        %v4344 = vrot.slane %v4203, 1
        %v4345 = vsel %vm246, %v4343, %v4344
        %v4346 = vrot.slane %v4204, 1
        %v4347 = vrot.slane %v4205, 1
        %v4348 = vsel %vm246, %v4346, %v4347
        %v4349 = vrot.slane %v4206, 1
        %v4350 = vrot.slane %v4207, 1
        %v4351 = vsel %vm246, %v4349, %v4350
        %v4352 = vrot.slane %v4192, 2
        %v4353 = vrot.slane %v4193, 2
        %v4354 = vsel %vm271, %v4352, %v4353
        %v4355 = vrot.slane %v4194, 2
        %v4356 = vrot.slane %v4195, 2
        %v4357 = vsel %vm271, %v4355, %v4356
        %v4358 = vrot.slane %v4196, 2
        %v4359 = vrot.slane %v4197, 2
        %v4360 = vsel %vm271, %v4358, %v4359
        %v4361 = vrot.slane %v4198, 2
        %v4362 = vrot.slane %v4199, 2
        %v4363 = vsel %vm271, %v4361, %v4362
        %v4364 = vrot.slane %v4200, 2
        %v4365 = vrot.slane %v4201, 2
        %v4366 = vsel %vm271, %v4364, %v4365
        %v4367 = vrot.slane %v4202, 2
        %v4368 = vrot.slane %v4203, 2
        %v4369 = vsel %vm271, %v4367, %v4368
        %v4370 = vrot.slane %v4204, 2
        %v4371 = vrot.slane %v4205, 2
        %v4372 = vsel %vm271, %v4370, %v4371
        %v4373 = vrot.slane %v4206, 2
        %v4374 = vrot.slane %v4207, 2
        %v4375 = vsel %vm271, %v4373, %v4374
        %v4378 = vrot.slane %v4208, 1
        %v4379 = vrot.slane %v4209, 1
        %v4380 = vsel %vm246, %v4378, %v4379
        %v4381 = vrot.slane %v4208, 2
        %v4382 = vrot.slane %v4209, 2
        %v4383 = vsel %vm271, %v4381, %v4382
        %v4386 = vrot.slane %v4210, 1
        %v4387 = vrot.slane %v4211, 1
        %v4388 = vsel %vm246, %v4386, %v4387
        %v4397 = vrot.slane %v4210, 2
        %v4398 = vrot.slane %v4211, 2
        %v4399 = vsel %vm271, %v4397, %v4398
        %v4416 = vrot.slane %v4212, 1
        %v4417 = vrot.slane %v4213, 1
        %v4418 = vsel %vm246, %v4416, %v4417
        %v4419 = vrot.slane %v4214, 1
        %v4420 = vrot.slane %v4215, 1
        %v4421 = vsel %vm246, %v4419, %v4420
        %v4422 = vrot.slane %v4216, 1
        %v4423 = vrot.slane %v4217, 1
        %v4424 = vsel %vm246, %v4422, %v4423
        %v4425 = vrot.slane %v4218, 1
        %v4426 = vrot.slane %v4219, 1
        %v4427 = vsel %vm246, %v4425, %v4426
        %v4428 = vrot.slane %v4220, 1
        %v4429 = vrot.slane %v4221, 1
        %v4430 = vsel %vm246, %v4428, %v4429
        %v4431 = vrot.slane %v4222, 1
        %v4432 = vrot.slane %v4223, 1
        %v4433 = vsel %vm246, %v4431, %v4432
        %v4434 = vrot.slane %v4224, 1
        %v4435 = vrot.slane %v4225, 1
        %v4436 = vsel %vm246, %v4434, %v4435
        %v4437 = vrot.slane %v4226, 1
        %v4438 = vrot.slane %v4227, 1
        %v4439 = vsel %vm246, %v4437, %v4438
        %v4440 = vrot.slane %v4212, 2
        %v4441 = vrot.slane %v4213, 2
        %v4442 = vsel %vm271, %v4440, %v4441
        %v4443 = vrot.slane %v4214, 2
        %v4444 = vrot.slane %v4215, 2
        %v4445 = vsel %vm271, %v4443, %v4444
        %v4446 = vrot.slane %v4216, 2
        %v4447 = vrot.slane %v4217, 2
        %v4448 = vsel %vm271, %v4446, %v4447
        %v4449 = vrot.slane %v4218, 2
        %v4450 = vrot.slane %v4219, 2
        %v4451 = vsel %vm271, %v4449, %v4450
        %v4452 = vrot.slane %v4220, 2
        %v4453 = vrot.slane %v4221, 2
        %v4454 = vsel %vm271, %v4452, %v4453
        %v4455 = vrot.slane %v4222, 2
        %v4456 = vrot.slane %v4223, 2
        %v4457 = vsel %vm271, %v4455, %v4456
        %v4458 = vrot.slane %v4224, 2
        %v4459 = vrot.slane %v4225, 2
        %v4460 = vsel %vm271, %v4458, %v4459
        %v4461 = vrot.slane %v4226, 2
        %v4462 = vrot.slane %v4227, 2
        %v4463 = vsel %vm271, %v4461, %v4462
        %v4466 = vrot.slane %v4228, 1
        %v4467 = vrot.slane %v4229, 1
        %v4468 = vsel %vm246, %v4466, %v4467
        %v4469 = vrot.slane %v4228, 2
        %v4470 = vrot.slane %v4229, 2
        %v4471 = vsel %vm271, %v4469, %v4470
        %v4474 = vrot.slane %v4230, 1
        %v4475 = vrot.slane %v4231, 1
        %v4476 = vsel %vm246, %v4474, %v4475
        %v4477 = vrot.slane %v4230, 2
        %v4478 = vrot.slane %v4231, 2
        %v4479 = vsel %vm271, %v4477, %v4478
        %4480 = vrot.lane.b32.xlu0 %v4250, 4
        %v4481 = vpop.permute.xlu0 %4480
        %4482 = vrot.lane.b32.xlu0 %v4253, 4
        %v4483 = vpop.permute.xlu0 %4482
        %4484 = vrot.lane.b32.xlu0 %v4256, 4
        %v4485 = vpop.permute.xlu0 %4484
        %4486 = vrot.lane.b32.xlu0 %v4259, 4
        %v4487 = vpop.permute.xlu0 %4486
        %4488 = vrot.lane.b32.xlu0 %v4262, 4
        %v4489 = vpop.permute.xlu0 %4488
        %4490 = vrot.lane.b32.xlu0 %v4265, 4
        %v4491 = vpop.permute.xlu0 %4490
        %4492 = vrot.lane.b32.xlu0 %v4268, 4
        %v4493 = vpop.permute.xlu0 %4492
        %4494 = vrot.lane.b32.xlu0 %v4271, 4
        %v4495 = vpop.permute.xlu0 %4494
        %4504 = vrot.lane.b32.xlu0 %v4274, 8
        %v4505 = vpop.permute.xlu0 %4504
        %4506 = vrot.lane.b32.xlu0 %v4277, 8
        %v4507 = vpop.permute.xlu0 %4506
        %4508 = vrot.lane.b32.xlu0 %v4280, 8
        %v4509 = vpop.permute.xlu0 %4508
        %4510 = vrot.lane.b32.xlu0 %v4283, 8
        %v4511 = vpop.permute.xlu0 %4510
        %4512 = vrot.lane.b32.xlu0 %v4286, 8
        %v4513 = vpop.permute.xlu0 %4512
        %4514 = vrot.lane.b32.xlu0 %v4289, 8
        %v4515 = vpop.permute.xlu0 %4514
        %4516 = vrot.lane.b32.xlu0 %v4292, 8
        %v4517 = vpop.permute.xlu0 %4516
        %4518 = vrot.lane.b32.xlu0 %v4295, 8
        %v4519 = vpop.permute.xlu0 %4518
        %4528 = vrot.lane.b32.xlu0 %v4174, 12
        %v4529 = vpop.permute.xlu0 %4528
        %4530 = vrot.lane.b32.xlu0 %v4176, 12
        %v4531 = vpop.permute.xlu0 %4530
        %4532 = vrot.lane.b32.xlu0 %v4178, 12
        %v4533 = vpop.permute.xlu0 %4532
        %4534 = vrot.lane.b32.xlu0 %v4180, 12
        %v4535 = vpop.permute.xlu0 %4534
        %4536 = vrot.lane.b32.xlu0 %v4182, 12
        %v4537 = vpop.permute.xlu0 %4536
        %4538 = vrot.lane.b32.xlu0 %v4184, 12
        %v4539 = vpop.permute.xlu0 %4538
        %4540 = vrot.lane.b32.xlu0 %v4186, 12
        %v4541 = vpop.permute.xlu0 %4540
        %4542 = vrot.lane.b32.xlu0 %v4188, 12
        %v4543 = vpop.permute.xlu0 %4542
        %4552 = vrot.lane.b32.xlu0 %v4253, 16
        %v4553 = vpop.permute.xlu0 %4552
        %4554 = vrot.lane.b32.xlu0 %v4256, 16
        %v4555 = vpop.permute.xlu0 %4554
        %4556 = vrot.lane.b32.xlu0 %v4259, 16
        %v4557 = vpop.permute.xlu0 %4556
        %4558 = vrot.lane.b32.xlu0 %v4262, 16
        %v4559 = vpop.permute.xlu0 %4558
        %4560 = vrot.lane.b32.xlu0 %v4265, 16
        %v4561 = vpop.permute.xlu0 %4560
        %4562 = vrot.lane.b32.xlu0 %v4268, 16
        %v4563 = vpop.permute.xlu0 %4562
        %4564 = vrot.lane.b32.xlu0 %v4271, 16
        %v4565 = vpop.permute.xlu0 %4564
        %4566 = vrot.lane.b32.xlu0 %v4300, 16
        %v4567 = vpop.permute.xlu0 %4566
        %4576 = vrot.lane.b32.xlu0 %v4277, 20
        %v4577 = vpop.permute.xlu0 %4576
        %4578 = vrot.lane.b32.xlu0 %v4280, 20
        %v4579 = vpop.permute.xlu0 %4578
        %4580 = vrot.lane.b32.xlu0 %v4283, 20
        %v4581 = vpop.permute.xlu0 %4580
        %4582 = vrot.lane.b32.xlu0 %v4286, 20
        %v4583 = vpop.permute.xlu0 %4582
        %4584 = vrot.lane.b32.xlu0 %v4289, 20
        %v4585 = vpop.permute.xlu0 %4584
        %4586 = vrot.lane.b32.xlu0 %v4292, 20
        %v4587 = vpop.permute.xlu0 %4586
        %4588 = vrot.lane.b32.xlu0 %v4295, 20
        %v4589 = vpop.permute.xlu0 %4588
        %4590 = vrot.lane.b32.xlu0 %v4303, 20
        %v4591 = vpop.permute.xlu0 %4590
        %4600 = vrot.lane.b32.xlu0 %v4176, 24
        %v4601 = vpop.permute.xlu0 %4600
        %4602 = vrot.lane.b32.xlu0 %v4178, 24
        %v4603 = vpop.permute.xlu0 %4602
        %4604 = vrot.lane.b32.xlu0 %v4180, 24
        %v4605 = vpop.permute.xlu0 %4604
        %4606 = vrot.lane.b32.xlu0 %v4182, 24
        %v4607 = vpop.permute.xlu0 %4606
        %4608 = vrot.lane.b32.xlu0 %v4184, 24
        %v4609 = vpop.permute.xlu0 %4608
        %4610 = vrot.lane.b32.xlu0 %v4186, 24
        %v4611 = vpop.permute.xlu0 %4610
        %4612 = vrot.lane.b32.xlu0 %v4188, 24
        %v4613 = vpop.permute.xlu0 %4612
        %4614 = vrot.lane.b32.xlu0 %v4190, 24
        %v4615 = vpop.permute.xlu0 %4614
        %4624 = vrot.lane.b32.xlu0 %v4256, 28
        %v4625 = vpop.permute.xlu0 %4624
        %4626 = vrot.lane.b32.xlu0 %v4259, 28
        %v4627 = vpop.permute.xlu0 %4626
        %4628 = vrot.lane.b32.xlu0 %v4262, 28
        %v4629 = vpop.permute.xlu0 %4628
        %4630 = vrot.lane.b32.xlu0 %v4265, 28
        %v4631 = vpop.permute.xlu0 %4630
        %4632 = vrot.lane.b32.xlu0 %v4268, 28
        %v4633 = vpop.permute.xlu0 %4632
        %4634 = vrot.lane.b32.xlu0 %v4271, 28
        %v4635 = vpop.permute.xlu0 %4634
        %4636 = vrot.lane.b32.xlu0 %v4300, 28
        %v4637 = vpop.permute.xlu0 %4636
        %4638 = vrot.lane.b32.xlu0 %v4308, 28
        %v4639 = vpop.permute.xlu0 %4638
        %4648 = vrot.lane.b32.xlu0 %v4280, 32
        %v4649 = vpop.permute.xlu0 %4648
        %4650 = vrot.lane.b32.xlu0 %v4283, 32
        %v4651 = vpop.permute.xlu0 %4650
        %4652 = vrot.lane.b32.xlu0 %v4286, 32
        %v4653 = vpop.permute.xlu0 %4652
        %4654 = vrot.lane.b32.xlu0 %v4289, 32
        %v4655 = vpop.permute.xlu0 %4654
        %4656 = vrot.lane.b32.xlu0 %v4292, 32
        %v4657 = vpop.permute.xlu0 %4656
        %4658 = vrot.lane.b32.xlu0 %v4295, 32
        %v4659 = vpop.permute.xlu0 %4658
        %4660 = vrot.lane.b32.xlu0 %v4303, 32
        %v4661 = vpop.permute.xlu0 %4660
        %4662 = vrot.lane.b32.xlu0 %v4311, 32
        %v4663 = vpop.permute.xlu0 %4662
        %4672 = vrot.lane.b32.xlu0 %v4192, 36
        %v4673 = vpop.permute.xlu0 %4672
        %4674 = vrot.lane.b32.xlu0 %v4194, 36
        %v4675 = vpop.permute.xlu0 %4674
        %4676 = vrot.lane.b32.xlu0 %v4196, 36
        %v4677 = vpop.permute.xlu0 %4676
        %4678 = vrot.lane.b32.xlu0 %v4198, 36
        %v4679 = vpop.permute.xlu0 %4678
        %4680 = vrot.lane.b32.xlu0 %v4200, 36
        %v4681 = vpop.permute.xlu0 %4680
        %4682 = vrot.lane.b32.xlu0 %v4202, 36
        %v4683 = vpop.permute.xlu0 %4682
        %4684 = vrot.lane.b32.xlu0 %v4204, 36
        %v4685 = vpop.permute.xlu0 %4684
        %4686 = vrot.lane.b32.xlu0 %v4206, 36
        %v4687 = vpop.permute.xlu0 %4686
        %4696 = vrot.lane.b32.xlu0 %v4330, 40
        %v4697 = vpop.permute.xlu0 %4696
        %4698 = vrot.lane.b32.xlu0 %v4333, 40
        %v4699 = vpop.permute.xlu0 %4698
        %4700 = vrot.lane.b32.xlu0 %v4336, 40
        %v4701 = vpop.permute.xlu0 %4700
        %4702 = vrot.lane.b32.xlu0 %v4339, 40
        %v4703 = vpop.permute.xlu0 %4702
        %4704 = vrot.lane.b32.xlu0 %v4342, 40
        %v4705 = vpop.permute.xlu0 %4704
        %4706 = vrot.lane.b32.xlu0 %v4345, 40
        %v4707 = vpop.permute.xlu0 %4706
        %4708 = vrot.lane.b32.xlu0 %v4348, 40
        %v4709 = vpop.permute.xlu0 %4708
        %4710 = vrot.lane.b32.xlu0 %v4351, 40
        %v4711 = vpop.permute.xlu0 %4710
        %4720 = vrot.lane.b32.xlu0 %v4354, 44
        %v4721 = vpop.permute.xlu0 %4720
        %4722 = vrot.lane.b32.xlu0 %v4357, 44
        %v4723 = vpop.permute.xlu0 %4722
        %4724 = vrot.lane.b32.xlu0 %v4360, 44
        %v4725 = vpop.permute.xlu0 %4724
        %4726 = vrot.lane.b32.xlu0 %v4363, 44
        %v4727 = vpop.permute.xlu0 %4726
        %4728 = vrot.lane.b32.xlu0 %v4366, 44
        %v4729 = vpop.permute.xlu0 %4728
        %4730 = vrot.lane.b32.xlu0 %v4369, 44
        %v4731 = vpop.permute.xlu0 %4730
        %4732 = vrot.lane.b32.xlu0 %v4372, 44
        %v4733 = vpop.permute.xlu0 %4732
        %4734 = vrot.lane.b32.xlu0 %v4375, 44
        %v4735 = vpop.permute.xlu0 %4734
        %4744 = vrot.lane.b32.xlu0 %v4194, 48
        %v4745 = vpop.permute.xlu0 %4744
        %4746 = vrot.lane.b32.xlu0 %v4196, 48
        %v4747 = vpop.permute.xlu0 %4746
        %4748 = vrot.lane.b32.xlu0 %v4198, 48
        %v4749 = vpop.permute.xlu0 %4748
        %4750 = vrot.lane.b32.xlu0 %v4200, 48
        %v4751 = vpop.permute.xlu0 %4750
        %4752 = vrot.lane.b32.xlu0 %v4202, 48
        %v4753 = vpop.permute.xlu0 %4752
        %4754 = vrot.lane.b32.xlu0 %v4204, 48
        %v4755 = vpop.permute.xlu0 %4754
        %4756 = vrot.lane.b32.xlu0 %v4206, 48
        %v4757 = vpop.permute.xlu0 %4756
        %4758 = vrot.lane.b32.xlu0 %v4208, 48
        %v4759 = vpop.permute.xlu0 %4758
        %4768 = vrot.lane.b32.xlu0 %v4333, 52
        %v4769 = vpop.permute.xlu0 %4768
        %4770 = vrot.lane.b32.xlu0 %v4336, 52
        %v4771 = vpop.permute.xlu0 %4770
        %4772 = vrot.lane.b32.xlu0 %v4339, 52
        %v4773 = vpop.permute.xlu0 %4772
        %4774 = vrot.lane.b32.xlu0 %v4342, 52
        %v4775 = vpop.permute.xlu0 %4774
        %4776 = vrot.lane.b32.xlu0 %v4345, 52
        %v4777 = vpop.permute.xlu0 %4776
        %4778 = vrot.lane.b32.xlu0 %v4348, 52
        %v4779 = vpop.permute.xlu0 %4778
        %4780 = vrot.lane.b32.xlu0 %v4351, 52
        %v4781 = vpop.permute.xlu0 %4780
        %4782 = vrot.lane.b32.xlu0 %v4380, 52
        %v4783 = vpop.permute.xlu0 %4782
        %4792 = vrot.lane.b32.xlu0 %v4357, 56
        %v4793 = vpop.permute.xlu0 %4792
        %4794 = vrot.lane.b32.xlu0 %v4360, 56
        %v4795 = vpop.permute.xlu0 %4794
        %4796 = vrot.lane.b32.xlu0 %v4363, 56
        %v4797 = vpop.permute.xlu0 %4796
        %4798 = vrot.lane.b32.xlu0 %v4366, 56
        %v4799 = vpop.permute.xlu0 %4798
        %4800 = vrot.lane.b32.xlu0 %v4369, 56
        %v4801 = vpop.permute.xlu0 %4800
        %4802 = vrot.lane.b32.xlu0 %v4372, 56
        %v4803 = vpop.permute.xlu0 %4802
        %4804 = vrot.lane.b32.xlu0 %v4375, 56
        %v4805 = vpop.permute.xlu0 %4804
        %4806 = vrot.lane.b32.xlu0 %v4383, 56
        %v4807 = vpop.permute.xlu0 %4806
        %4816 = vrot.lane.b32.xlu0 %v4196, 60
        %v4817 = vpop.permute.xlu0 %4816
        %4818 = vrot.lane.b32.xlu0 %v4198, 60
        %v4819 = vpop.permute.xlu0 %4818
        %4820 = vrot.lane.b32.xlu0 %v4200, 60
        %v4821 = vpop.permute.xlu0 %4820
        %4822 = vrot.lane.b32.xlu0 %v4202, 60
        %v4823 = vpop.permute.xlu0 %4822
        %4824 = vrot.lane.b32.xlu0 %v4204, 60
        %v4825 = vpop.permute.xlu0 %4824
        %4826 = vrot.lane.b32.xlu0 %v4206, 60
        %v4827 = vpop.permute.xlu0 %4826
        %4828 = vrot.lane.b32.xlu0 %v4208, 60
        %v4829 = vpop.permute.xlu0 %4828
        %4830 = vrot.lane.b32.xlu0 %v4210, 60
        %v4831 = vpop.permute.xlu0 %4830
        %v4840 = vsel %vm840, %v4172, %v4481
        %v4841 = vsel %vm840, %v4174, %v4483
        %v4842 = vsel %vm840, %v4176, %v4485
        %v4843 = vsel %vm840, %v4178, %v4487
        %v4844 = vsel %vm840, %v4180, %v4489
        %v4845 = vsel %vm840, %v4182, %v4491
        %v4846 = vsel %vm840, %v4184, %v4493
        %v4847 = vsel %vm840, %v4186, %v4495
        %v4848 = vsel %vm849, %v4840, %v4505
        %v4849 = vsel %vm849, %v4841, %v4507
        %v4850 = vsel %vm849, %v4842, %v4509
        %v4851 = vsel %vm849, %v4843, %v4511
        %v4852 = vsel %vm849, %v4844, %v4513
        %v4853 = vsel %vm849, %v4845, %v4515
        %v4854 = vsel %vm849, %v4846, %v4517
        %v4855 = vsel %vm849, %v4847, %v4519
        %v4856 = vsel %vm858, %v4848, %v4529
        %v4857 = vsel %vm858, %v4849, %v4531
        %v4858 = vsel %vm858, %v4850, %v4533
        %v4859 = vsel %vm858, %v4851, %v4535
        %v4860 = vsel %vm858, %v4852, %v4537
        %v4861 = vsel %vm858, %v4853, %v4539
        %v4862 = vsel %vm858, %v4854, %v4541
        %v4863 = vsel %vm858, %v4855, %v4543
        %v4864 = vsel %vm867, %v4856, %v4553
        %v4865 = vsel %vm867, %v4857, %v4555
        %v4866 = vsel %vm867, %v4858, %v4557
        %v4867 = vsel %vm867, %v4859, %v4559
        %v4868 = vsel %vm867, %v4860, %v4561
        %v4869 = vsel %vm867, %v4861, %v4563
        %v4870 = vsel %vm867, %v4862, %v4565
        %v4871 = vsel %vm867, %v4863, %v4567
        %v4872 = vsel %vm876, %v4864, %v4577
        %v4873 = vsel %vm876, %v4865, %v4579
        %v4874 = vsel %vm876, %v4866, %v4581
        %v4875 = vsel %vm876, %v4867, %v4583
        %v4876 = vsel %vm876, %v4868, %v4585
        %v4877 = vsel %vm876, %v4869, %v4587
        %v4878 = vsel %vm876, %v4870, %v4589
        %v4879 = vsel %vm876, %v4871, %v4591
        %v4880 = vsel %vm885, %v4872, %v4601
        %v4881 = vsel %vm885, %v4873, %v4603
        %v4882 = vsel %vm885, %v4874, %v4605
        %v4883 = vsel %vm885, %v4875, %v4607
        %v4884 = vsel %vm885, %v4876, %v4609
        %v4885 = vsel %vm885, %v4877, %v4611
        %v4886 = vsel %vm885, %v4878, %v4613
        %v4887 = vsel %vm885, %v4879, %v4615
        %v4888 = vsel %vm894, %v4880, %v4625
        %v4889 = vsel %vm894, %v4881, %v4627
        %v4890 = vsel %vm894, %v4882, %v4629
        %v4891 = vsel %vm894, %v4883, %v4631
        %v4892 = vsel %vm894, %v4884, %v4633
        %v4893 = vsel %vm894, %v4885, %v4635
        %v4894 = vsel %vm894, %v4886, %v4637
        %v4895 = vsel %vm894, %v4887, %v4639
        %v4896 = vsel %vm903, %v4888, %v4649
        %v4897 = vsel %vm903, %v4889, %v4651
        %v4898 = vsel %vm903, %v4890, %v4653
        %v4899 = vsel %vm903, %v4891, %v4655
        %v4900 = vsel %vm903, %v4892, %v4657
        %v4901 = vsel %vm903, %v4893, %v4659
        %v4902 = vsel %vm903, %v4894, %v4661
        %v4903 = vsel %vm903, %v4895, %v4663
        %v4904 = vsel %vm912, %v4896, %v4673
        %v4905 = vsel %vm912, %v4897, %v4675
        %v4906 = vsel %vm912, %v4898, %v4677
        %v4907 = vsel %vm912, %v4899, %v4679
        %v4908 = vsel %vm912, %v4900, %v4681
        %v4909 = vsel %vm912, %v4901, %v4683
        %v4910 = vsel %vm912, %v4902, %v4685
        %v4911 = vsel %vm912, %v4903, %v4687
        %v4912 = vsel %vm921, %v4904, %v4697
        %v4913 = vsel %vm921, %v4905, %v4699
        %v4914 = vsel %vm921, %v4906, %v4701
        %v4915 = vsel %vm921, %v4907, %v4703
        %v4916 = vsel %vm921, %v4908, %v4705
        %v4917 = vsel %vm921, %v4909, %v4707
        %v4918 = vsel %vm921, %v4910, %v4709
        %v4919 = vsel %vm921, %v4911, %v4711
        %v4920 = vsel %vm930, %v4912, %v4721
        %v4921 = vsel %vm930, %v4913, %v4723
        %v4922 = vsel %vm930, %v4914, %v4725
        %v4923 = vsel %vm930, %v4915, %v4727
        %v4924 = vsel %vm930, %v4916, %v4729
        %v4925 = vsel %vm930, %v4917, %v4731
        %v4926 = vsel %vm930, %v4918, %v4733
        %v4927 = vsel %vm930, %v4919, %v4735
        %v4928 = vsel %vm939, %v4920, %v4745
        %v4929 = vsel %vm939, %v4921, %v4747
        %v4930 = vsel %vm939, %v4922, %v4749
        %v4931 = vsel %vm939, %v4923, %v4751
        %v4932 = vsel %vm939, %v4924, %v4753
        %v4933 = vsel %vm939, %v4925, %v4755
        %v4934 = vsel %vm939, %v4926, %v4757
        %v4935 = vsel %vm939, %v4927, %v4759
        %v4936 = vsel %vm948, %v4928, %v4769
        %v4937 = vsel %vm948, %v4929, %v4771
        %v4938 = vsel %vm948, %v4930, %v4773
        %v4939 = vsel %vm948, %v4931, %v4775
        %v4940 = vsel %vm948, %v4932, %v4777
        %v4941 = vsel %vm948, %v4933, %v4779
        %v4942 = vsel %vm948, %v4934, %v4781
        %v4943 = vsel %vm948, %v4935, %v4783
        %v4944 = vsel %vm957, %v4936, %v4793
        %v4945 = vsel %vm957, %v4937, %v4795
        %v4946 = vsel %vm957, %v4938, %v4797
        %v4947 = vsel %vm957, %v4939, %v4799
        %v4948 = vsel %vm957, %v4940, %v4801
        %v4949 = vsel %vm957, %v4941, %v4803
        %v4950 = vsel %vm957, %v4942, %v4805
        %v4951 = vsel %vm957, %v4943, %v4807
        %v4952 = vsel %vm966, %v4944, %v4817
        %v4953 = vsel %vm966, %v4945, %v4819
        %v4954 = vsel %vm966, %v4946, %v4821
        %v4955 = vsel %vm966, %v4947, %v4823
        %v4956 = vsel %vm966, %v4948, %v4825
        %v4957 = vsel %vm966, %v4949, %v4827
        %v4958 = vsel %vm966, %v4950, %v4829
        %v4959 = vsel %vm966, %v4951, %v4831
        %4960 = vrot.lane.b32.xlu0 %v4360, 4
        %v4961 = vpop.permute.xlu0 %4960
        %4962 = vrot.lane.b32.xlu0 %v4363, 4
        %v4963 = vpop.permute.xlu0 %4962
        %4964 = vrot.lane.b32.xlu0 %v4366, 4
        %v4965 = vpop.permute.xlu0 %4964
        %4966 = vrot.lane.b32.xlu0 %v4369, 4
        %v4967 = vpop.permute.xlu0 %4966
        %4968 = vrot.lane.b32.xlu0 %v4372, 4
        %v4969 = vpop.permute.xlu0 %4968
        %4970 = vrot.lane.b32.xlu0 %v4375, 4
        %v4971 = vpop.permute.xlu0 %4970
        %4972 = vrot.lane.b32.xlu0 %v4383, 4
        %v4973 = vpop.permute.xlu0 %4972
        %4974 = vrot.lane.b32.xlu0 %v4399, 4
        %v4975 = vpop.permute.xlu0 %4974
        %4984 = vrot.lane.b32.xlu0 %v4212, 8
        %v4985 = vpop.permute.xlu0 %4984
        %4986 = vrot.lane.b32.xlu0 %v4214, 8
        %v4987 = vpop.permute.xlu0 %4986
        %4988 = vrot.lane.b32.xlu0 %v4216, 8
        %v4989 = vpop.permute.xlu0 %4988
        %4990 = vrot.lane.b32.xlu0 %v4218, 8
        %v4991 = vpop.permute.xlu0 %4990
        %4992 = vrot.lane.b32.xlu0 %v4220, 8
        %v4993 = vpop.permute.xlu0 %4992
        %4994 = vrot.lane.b32.xlu0 %v4222, 8
        %v4995 = vpop.permute.xlu0 %4994
        %4996 = vrot.lane.b32.xlu0 %v4224, 8
        %v4997 = vpop.permute.xlu0 %4996
        %4998 = vrot.lane.b32.xlu0 %v4226, 8
        %v4999 = vpop.permute.xlu0 %4998
        %5008 = vrot.lane.b32.xlu0 %v4418, 12
        %v5009 = vpop.permute.xlu0 %5008
        %5010 = vrot.lane.b32.xlu0 %v4421, 12
        %v5011 = vpop.permute.xlu0 %5010
        %5012 = vrot.lane.b32.xlu0 %v4424, 12
        %v5013 = vpop.permute.xlu0 %5012
        %5014 = vrot.lane.b32.xlu0 %v4427, 12
        %v5015 = vpop.permute.xlu0 %5014
        %5016 = vrot.lane.b32.xlu0 %v4430, 12
        %v5017 = vpop.permute.xlu0 %5016
        %5018 = vrot.lane.b32.xlu0 %v4433, 12
        %v5019 = vpop.permute.xlu0 %5018
        %5020 = vrot.lane.b32.xlu0 %v4436, 12
        %v5021 = vpop.permute.xlu0 %5020
        %5022 = vrot.lane.b32.xlu0 %v4439, 12
        %v5023 = vpop.permute.xlu0 %5022
        %5032 = vrot.lane.b32.xlu0 %v4442, 16
        %v5033 = vpop.permute.xlu0 %5032
        %5034 = vrot.lane.b32.xlu0 %v4445, 16
        %v5035 = vpop.permute.xlu0 %5034
        %5036 = vrot.lane.b32.xlu0 %v4448, 16
        %v5037 = vpop.permute.xlu0 %5036
        %5038 = vrot.lane.b32.xlu0 %v4451, 16
        %v5039 = vpop.permute.xlu0 %5038
        %5040 = vrot.lane.b32.xlu0 %v4454, 16
        %v5041 = vpop.permute.xlu0 %5040
        %5042 = vrot.lane.b32.xlu0 %v4457, 16
        %v5043 = vpop.permute.xlu0 %5042
        %5044 = vrot.lane.b32.xlu0 %v4460, 16
        %v5045 = vpop.permute.xlu0 %5044
        %5046 = vrot.lane.b32.xlu0 %v4463, 16
        %v5047 = vpop.permute.xlu0 %5046
        %5056 = vrot.lane.b32.xlu0 %v4214, 20
        %v5057 = vpop.permute.xlu0 %5056
        %5058 = vrot.lane.b32.xlu0 %v4216, 20
        %v5059 = vpop.permute.xlu0 %5058
        %5060 = vrot.lane.b32.xlu0 %v4218, 20
        %v5061 = vpop.permute.xlu0 %5060
        %5062 = vrot.lane.b32.xlu0 %v4220, 20
        %v5063 = vpop.permute.xlu0 %5062
        %5064 = vrot.lane.b32.xlu0 %v4222, 20
        %v5065 = vpop.permute.xlu0 %5064
        %5066 = vrot.lane.b32.xlu0 %v4224, 20
        %v5067 = vpop.permute.xlu0 %5066
        %5068 = vrot.lane.b32.xlu0 %v4226, 20
        %v5069 = vpop.permute.xlu0 %5068
        %5070 = vrot.lane.b32.xlu0 %v4228, 20
        %v5071 = vpop.permute.xlu0 %5070
        %5080 = vrot.lane.b32.xlu0 %v4421, 24
        %v5081 = vpop.permute.xlu0 %5080
        %5082 = vrot.lane.b32.xlu0 %v4424, 24
        %v5083 = vpop.permute.xlu0 %5082
        %5084 = vrot.lane.b32.xlu0 %v4427, 24
        %v5085 = vpop.permute.xlu0 %5084
        %5086 = vrot.lane.b32.xlu0 %v4430, 24
        %v5087 = vpop.permute.xlu0 %5086
        %5088 = vrot.lane.b32.xlu0 %v4433, 24
        %v5089 = vpop.permute.xlu0 %5088
        %5090 = vrot.lane.b32.xlu0 %v4436, 24
        %v5091 = vpop.permute.xlu0 %5090
        %5092 = vrot.lane.b32.xlu0 %v4439, 24
        %v5093 = vpop.permute.xlu0 %5092
        %5094 = vrot.lane.b32.xlu0 %v4468, 24
        %v5095 = vpop.permute.xlu0 %5094
        %5104 = vrot.lane.b32.xlu0 %v4445, 28
        %v5105 = vpop.permute.xlu0 %5104
        %5106 = vrot.lane.b32.xlu0 %v4448, 28
        %v5107 = vpop.permute.xlu0 %5106
        %5108 = vrot.lane.b32.xlu0 %v4451, 28
        %v5109 = vpop.permute.xlu0 %5108
        %5110 = vrot.lane.b32.xlu0 %v4454, 28
        %v5111 = vpop.permute.xlu0 %5110
        %5112 = vrot.lane.b32.xlu0 %v4457, 28
        %v5113 = vpop.permute.xlu0 %5112
        %5114 = vrot.lane.b32.xlu0 %v4460, 28
        %v5115 = vpop.permute.xlu0 %5114
        %5116 = vrot.lane.b32.xlu0 %v4463, 28
        %v5117 = vpop.permute.xlu0 %5116
        %5118 = vrot.lane.b32.xlu0 %v4471, 28
        %v5119 = vpop.permute.xlu0 %5118
        %5128 = vrot.lane.b32.xlu0 %v4216, 32
        %v5129 = vpop.permute.xlu0 %5128
        %5130 = vrot.lane.b32.xlu0 %v4218, 32
        %v5131 = vpop.permute.xlu0 %5130
        %5132 = vrot.lane.b32.xlu0 %v4220, 32
        %v5133 = vpop.permute.xlu0 %5132
        %5134 = vrot.lane.b32.xlu0 %v4222, 32
        %v5135 = vpop.permute.xlu0 %5134
        %5136 = vrot.lane.b32.xlu0 %v4224, 32
        %v5137 = vpop.permute.xlu0 %5136
        %5138 = vrot.lane.b32.xlu0 %v4226, 32
        %v5139 = vpop.permute.xlu0 %5138
        %5140 = vrot.lane.b32.xlu0 %v4228, 32
        %v5141 = vpop.permute.xlu0 %5140
        %5142 = vrot.lane.b32.xlu0 %v4230, 32
        %v5143 = vpop.permute.xlu0 %5142
        %5152 = vrot.lane.b32.xlu0 %v4424, 36
        %v5153 = vpop.permute.xlu0 %5152
        %5154 = vrot.lane.b32.xlu0 %v4427, 36
        %v5155 = vpop.permute.xlu0 %5154
        %5156 = vrot.lane.b32.xlu0 %v4430, 36
        %v5157 = vpop.permute.xlu0 %5156
        %5158 = vrot.lane.b32.xlu0 %v4433, 36
        %v5159 = vpop.permute.xlu0 %5158
        %5160 = vrot.lane.b32.xlu0 %v4436, 36
        %v5161 = vpop.permute.xlu0 %5160
        %5162 = vrot.lane.b32.xlu0 %v4439, 36
        %v5163 = vpop.permute.xlu0 %5162
        %5164 = vrot.lane.b32.xlu0 %v4468, 36
        %v5165 = vpop.permute.xlu0 %5164
        %5166 = vrot.lane.b32.xlu0 %v4476, 36
        %v5167 = vpop.permute.xlu0 %5166
        %5176 = vrot.lane.b32.xlu0 %v4448, 40
        %v5177 = vpop.permute.xlu0 %5176
        %5178 = vrot.lane.b32.xlu0 %v4451, 40
        %v5179 = vpop.permute.xlu0 %5178
        %5180 = vrot.lane.b32.xlu0 %v4454, 40
        %v5181 = vpop.permute.xlu0 %5180
        %5182 = vrot.lane.b32.xlu0 %v4457, 40
        %v5183 = vpop.permute.xlu0 %5182
        %5184 = vrot.lane.b32.xlu0 %v4460, 40
        %v5185 = vpop.permute.xlu0 %5184
        %5186 = vrot.lane.b32.xlu0 %v4463, 40
        %v5187 = vpop.permute.xlu0 %5186
        %5188 = vrot.lane.b32.xlu0 %v4471, 40
        %v5189 = vpop.permute.xlu0 %5188
        %5190 = vrot.lane.b32.xlu0 %v4479, 40
        %v5191 = vpop.permute.xlu0 %5190
        %v5200 = vsel %vm840, %v4336, %v4961
        %v5201 = vsel %vm840, %v4339, %v4963
        %v5202 = vsel %vm840, %v4342, %v4965
        %v5203 = vsel %vm840, %v4345, %v4967
        %v5204 = vsel %vm840, %v4348, %v4969
        %v5205 = vsel %vm840, %v4351, %v4971
        %v5206 = vsel %vm840, %v4380, %v4973
        %v5207 = vsel %vm840, %v4388, %v4975
        %v5208 = vsel %vm849, %v5200, %v4985
        %v5209 = vsel %vm849, %v5201, %v4987
        %v5210 = vsel %vm849, %v5202, %v4989
        %v5211 = vsel %vm849, %v5203, %v4991
        %v5212 = vsel %vm849, %v5204, %v4993
        %v5213 = vsel %vm849, %v5205, %v4995
        %v5214 = vsel %vm849, %v5206, %v4997
        %v5215 = vsel %vm849, %v5207, %v4999
        %v5216 = vsel %vm858, %v5208, %v5009
        %v5217 = vsel %vm858, %v5209, %v5011
        %v5218 = vsel %vm858, %v5210, %v5013
        %v5219 = vsel %vm858, %v5211, %v5015
        %v5220 = vsel %vm858, %v5212, %v5017
        %v5221 = vsel %vm858, %v5213, %v5019
        %v5222 = vsel %vm858, %v5214, %v5021
        %v5223 = vsel %vm858, %v5215, %v5023
        %v5224 = vsel %vm867, %v5216, %v5033
        %v5225 = vsel %vm867, %v5217, %v5035
        %v5226 = vsel %vm867, %v5218, %v5037
        %v5227 = vsel %vm867, %v5219, %v5039
        %v5228 = vsel %vm867, %v5220, %v5041
        %v5229 = vsel %vm867, %v5221, %v5043
        %v5230 = vsel %vm867, %v5222, %v5045
        %v5231 = vsel %vm867, %v5223, %v5047
        %v5232 = vsel %vm876, %v5224, %v5057
        %v5233 = vsel %vm876, %v5225, %v5059
        %v5234 = vsel %vm876, %v5226, %v5061
        %v5235 = vsel %vm876, %v5227, %v5063
        %v5236 = vsel %vm876, %v5228, %v5065
        %v5237 = vsel %vm876, %v5229, %v5067
        %v5238 = vsel %vm876, %v5230, %v5069
        %v5239 = vsel %vm876, %v5231, %v5071
        %v5240 = vsel %vm885, %v5232, %v5081
        %v5241 = vsel %vm885, %v5233, %v5083
        %v5242 = vsel %vm885, %v5234, %v5085
        %v5243 = vsel %vm885, %v5235, %v5087
        %v5244 = vsel %vm885, %v5236, %v5089
        %v5245 = vsel %vm885, %v5237, %v5091
        %v5246 = vsel %vm885, %v5238, %v5093
        %v5247 = vsel %vm885, %v5239, %v5095
        %v5248 = vsel %vm894, %v5240, %v5105
        %v5249 = vsel %vm894, %v5241, %v5107
        %v5250 = vsel %vm894, %v5242, %v5109
        %v5251 = vsel %vm894, %v5243, %v5111
        %v5252 = vsel %vm894, %v5244, %v5113
        %v5253 = vsel %vm894, %v5245, %v5115
        %v5254 = vsel %vm894, %v5246, %v5117
        %v5255 = vsel %vm894, %v5247, %v5119
        %v5256 = vsel %vm903, %v5248, %v5129
        %v5257 = vsel %vm903, %v5249, %v5131
        %v5258 = vsel %vm903, %v5250, %v5133
        %v5259 = vsel %vm903, %v5251, %v5135
        %v5260 = vsel %vm903, %v5252, %v5137
        %v5261 = vsel %vm903, %v5253, %v5139
        %v5262 = vsel %vm903, %v5254, %v5141
        %v5263 = vsel %vm903, %v5255, %v5143
        %v5264 = vsel %vm912, %v5256, %v5153
        %v5265 = vsel %vm912, %v5257, %v5155
        %v5266 = vsel %vm912, %v5258, %v5157
        %v5267 = vsel %vm912, %v5259, %v5159
        %v5268 = vsel %vm912, %v5260, %v5161
        %v5269 = vsel %vm912, %v5261, %v5163
        %v5270 = vsel %vm912, %v5262, %v5165
        %v5271 = vsel %vm912, %v5263, %v5167
        %v5272 = vsel %vm921, %v5264, %v5177
        %v5273 = vsel %vm921, %v5265, %v5179
        %v5274 = vsel %vm921, %v5266, %v5181
        %v5275 = vsel %vm921, %v5267, %v5183
        %v5276 = vsel %vm921, %v5268, %v5185
        %v5277 = vsel %vm921, %v5269, %v5187
        %v5278 = vsel %vm921, %v5270, %v5189
        %v5279 = vsel %vm921, %v5271, %v5191
        %5288 = vrot.lane.b32.xlu0 %v5272, 64
        %v5289 = vpop.permute.xlu0 %5288
        %5290 = vrot.lane.b32.xlu0 %v5273, 64
        %v5291 = vpop.permute.xlu0 %5290
        %5292 = vrot.lane.b32.xlu0 %v5274, 64
        %v5293 = vpop.permute.xlu0 %5292
        %5294 = vrot.lane.b32.xlu0 %v5275, 64
        %v5295 = vpop.permute.xlu0 %5294
        %5296 = vrot.lane.b32.xlu0 %v5276, 64
        %v5297 = vpop.permute.xlu0 %5296
        %5298 = vrot.lane.b32.xlu0 %v5277, 64
        %v5299 = vpop.permute.xlu0 %5298
        %5300 = vrot.lane.b32.xlu0 %v5278, 64
        %v5301 = vpop.permute.xlu0 %5300
        %5302 = vrot.lane.b32.xlu0 %v5279, 64
        %v5303 = vpop.permute.xlu0 %5302
        %v5312 = vsel %vm1327, %v4952, %v5289
        %v5313 = vsel %vm1327, %v4953, %v5291
        %v5314 = vsel %vm1327, %v4954, %v5293
        %v5315 = vsel %vm1327, %v4955, %v5295
        %v5316 = vsel %vm1327, %v4956, %v5297
        %v5317 = vsel %vm1327, %v4957, %v5299
        %v5318 = vsel %vm1327, %v4958, %v5301
        %v5319 = vsel %vm1327, %v4959, %v5303
        %v5320 = vpack.c.bf16 %v5313, %v5312
        %v5321 = vpack.c.bf16 %v5315, %v5314
        %v5322 = vpack.c.bf16 %v5317, %v5316
        %v5323 = vpack.c.bf16 %v5319, %v5318
        %v5324 = vld [vmem:[%s1] sm:$0xf]
        %v5325 = vld [vmem:[%s1 + $0x4] sm:$0xf]
        %v5326 = vld [vmem:[%s1 + $0x8] sm:$0xf]
        %v5327 = vld [vmem:[%s1 + $0xc] sm:$0xf]
        %v5328 = vld [vmem:[%s1 + $0x10] sm:$0xf]
        %v5329 = vld [vmem:[%s1 + $0x14] sm:$0xf]
        %v5330 = vld [vmem:[%s1 + $0x18] sm:$0xf]
        %v5331 = vld [vmem:[%s1 + $0x1c] sm:$0xf]
        %v5332 = vld [vmem:[%s1 + $0x20] sm:$0xf]
        %v5333 = vld [vmem:[%s1 + $0x24] sm:$0xf]
        %v5334 = vld [vmem:[%s1 + $0x28] sm:$0xf]
        %v5335 = vld [vmem:[%s1 + $0x2c] sm:$0xf]
        %v5336 = vld [vmem:[%s1 + $0x30] sm:$0xf]
        %v5337 = vld [vmem:[%s1 + $0x34] sm:$0x3]
        %v5338 = vld [vmem:[%s2] sm:$0x1]
        %v5340 = vlaneseq
        %v5341 = vshrl.u32 %v5340, 7
        %v5342 = vsub.s32 0, %v5341
        %v5343 = vrot.slane %v5338, %v5342
        %v5359 = vunpack.c.l.b16 %v5324
        %v5360 = vunpack.c.l.b16 %v5325
        %v5361 = vunpack.c.l.b16 %v5326
        %v5362 = vunpack.c.l.b16 %v5327
        %v5363 = vunpack.c.l.b16 %v5328
        %v5364 = vunpack.c.l.b16 %v5329
        %v5365 = vunpack.c.l.b16 %v5330
        %v5366 = vunpack.c.l.b16 %v5331
        %v5367 = vunpack.c.l.b16 %v5332
        %v5368 = vunpack.c.l.b16 %v5333
        %v5369 = vunpack.c.l.b16 %v5334
        %v5370 = vunpack.c.l.b16 %v5335
        %v5371 = vunpack.c.l.b16 %v5336
        %v5372 = vunpack.c.l.b16 %v5337
        %v5373 = vpack.c.b16 %v5360, %v5359
        %v5374 = vpack.c.b16 %v5362, %v5361
        %v5375 = vpack.c.b16 %v5364, %v5363
        %v5376 = vpack.c.b16 %v5366, %v5365
        %v5377 = vpack.c.b16 %v5368, %v5367
        %v5378 = vpack.c.b16 %v5370, %v5369
        %v5379 = vpack.c.b16 %v5372, %v5371
        %v5387 = vsel %vm1402, %v5320, 0
        %v5390 = vsel %vm1402, %v5321, 0
        %v5393 = vsel %vm1402, %v5322, 0
        %v5396 = vsel %vm1402, %v5323, 0
        %v5399 = vsel %vm271, %v5379, 0
        %5401 = vmatprep.subr.bf16.mxu0 0
        %5402 = vmatpush1.bf16.msra.mxu0 0
        %5403 = vmatprep.subr.bf16.mxu0 0
        %5404 = vmatpush1.bf16.msra.mxu0 %v5399
        %5405 = vmatprep.subr.bf16.mxu0 0
        %5406 = vmatpush1.bf16.msra.mxu0 %v5378
        %5407 = vmatprep.subr.bf16.mxu0 0
        %5408 = vmatpush1.bf16.msra.mxu0 %v5377
        %5409 = vmatprep.subr.bf16.mxu0 0
        %5410 = vmatpush1.bf16.msra.mxu0 %v5376
        %5411 = vmatprep.subr.bf16.mxu0 0
        %5412 = vmatpush1.bf16.msra.mxu0 %v5375
        %5413 = vmatprep.subr.bf16.mxu0 0
        %5414 = vmatpush1.bf16.msra.mxu0 %v5374
        %5415 = vmatprep.subr.bf16.mxu0 0
        %5416 = vmatpush1.bf16.msra.mxu0 %v5373
        %5417 = vmatprep.subr.bf16.mxu0 0
        %5418 = vmatpush2.bf16.msra.mxu0 0
        %5419 = vmatprep.subr.bf16.mxu0 0
        %5420 = vmatpush2.bf16.msra.mxu0 0
        %5421 = vmatprep.subr.bf16.mxu0 0
        %5422 = vmatpush2.bf16.msra.mxu0 0
        %5423 = vmatprep.subr.bf16.mxu0 0
        %5424 = vmatpush2.bf16.msra.mxu0 0
        %5425 = vmatprep.subr.bf16.mxu0 0
        %5426 = vmatpush2.bf16.msra.mxu0 0
        %5427 = vmatprep.subr.bf16.mxu0 0
        %5428 = vmatpush2.bf16.msra.mxu0 0
        %5429 = vmatprep.subr.bf16.mxu0 0
        %5430 = vmatpush2.bf16.msra.mxu0 0
        %5431 = vmatprep.subr.bf16.mxu0 0
        %5432 = vmatpush2.bf16.msra.mxu0 0
        %5433 = vmatprep.mubr.bf16.mxu0 0
        %5434 = vmatmul.mubr.bf16.gmra.mxu0 %v5387
        %v5435 = vpop.f32.mrf.mxu0
        %v5436 = vadd.f32 %v5343, %v5435
        %v5437 = vpop.f32.mrf.mxu0
        %v5438 = vpop.f32.mrf.mxu0
        %v5439 = vadd.f32 %v5343, %v5438
        %v5440 = vpop.f32.mrf.mxu0
        %5441 = vmatprep.mubr.bf16.mxu0 0
        %5442 = vmatmul.mubr.bf16.gmra.mxu0 %v5390
        %v5443 = vpop.f32.mrf.mxu0
        %v5444 = vadd.f32 %v5343, %v5443
        %v5445 = vpop.f32.mrf.mxu0
        %v5446 = vpop.f32.mrf.mxu0
        %v5447 = vadd.f32 %v5343, %v5446
        %v5448 = vpop.f32.mrf.mxu0
        %5449 = vmatprep.mubr.bf16.mxu0 0
        %5450 = vmatmul.mubr.bf16.gmra.mxu0 %v5393
        %v5451 = vpop.f32.mrf.mxu0
        %v5452 = vadd.f32 %v5343, %v5451
        %v5453 = vpop.f32.mrf.mxu0
        %v5454 = vpop.f32.mrf.mxu0
        %v5455 = vadd.f32 %v5343, %v5454
        %v5456 = vpop.f32.mrf.mxu0
        %5457 = vmatprep.mubr.bf16.mxu0 0
        %5458 = vmatmul.mubr.bf16.gmra.mxu0 %v5396
        %v5459 = vpop.f32.mrf.mxu0
        %v5460 = vadd.f32 %v5343, %v5459
        %v5461 = vpop.f32.mrf.mxu0
        %v5462 = vpop.f32.mrf.mxu0
        %v5463 = vadd.f32 %v5343, %v5462
        %v5464 = vpop.f32.mrf.mxu0
        %5465 = vdwg.mxu0
        %vm5466 = vcmp.gt.f32.partialorder %v5436, 0.0
        %vm5467 = vcmp.gt.f32.partialorder %v5439, 0.0
        %vm5468 = vcmp.gt.f32.partialorder %v5444, 0.0
        %vm5469 = vcmp.gt.f32.partialorder %v5447, 0.0
        %vm5470 = vcmp.gt.f32.partialorder %v5452, 0.0
        %vm5471 = vcmp.gt.f32.partialorder %v5455, 0.0
        %vm5472 = vcmp.gt.f32.partialorder %v5460, 0.0
        %vm5473 = vcmp.gt.f32.partialorder %v5463, 0.0
        %v5474 = vmul.f32 %v5436, 0.1
        %v5475 = vmul.f32 %v5439, 0.1
        %v5476 = vmul.f32 %v5444, 0.1
        %v5477 = vmul.f32 %v5447, 0.1
        %v5478 = vmul.f32 %v5452, 0.1
        %v5479 = vmul.f32 %v5455, 0.1
        %v5480 = vmul.f32 %v5460, 0.1
        %v5481 = vmul.f32 %v5463, 0.1
        %v5482 = vsel %vm5466, %v5436, %v5474
        %v5483 = vsel %vm5467, %v5439, %v5475
        %v5484 = vsel %vm5468, %v5444, %v5476
        %v5485 = vsel %vm5469, %v5447, %v5477
        %v5486 = vsel %vm5470, %v5452, %v5478
        %v5487 = vsel %vm5471, %v5455, %v5479
        %v5488 = vsel %vm5472, %v5460, %v5480
        %v5489 = vsel %vm5473, %v5463, %v5481
        %s5490 = scalar_lea.vmem %s163, 192 [#allocation2]
        %5491 = vst [vmem:[%s5490] sm:$0xff] %v5482
        %5492 = vst [vmem:[%s5490 + $0x8] sm:$0xff] %v5483
        %5493 = vst [vmem:[%s5490 + $0x10] sm:$0xff] %v5484
        %5494 = vst [vmem:[%s5490 + $0x18] sm:$0xff] %v5485
        %5495 = vst [vmem:[%s5490 + $0x20] sm:$0xff] %v5486
        %5496 = vst [vmem:[%s5490 + $0x28] sm:$0xff] %v5487
        %5497 = vst [vmem:[%s5490 + $0x30] sm:$0xff] %v5488
        %5498 = vst [vmem:[%s5490 + $0x38] sm:$0xff] %v5489
        %s5499 = sand.u32 %s93, 1
        %s5500 = scalar_lea.sflag [#allocation3], %s5499
        %s5501 = sand.u32 %s93, 1
        %s5502 = smul.addr %s5501, 256
        %s5503 = scalar_lea.vmem [#allocation2], %s5502
        // Predicated region
        $region33: #{tpu_custom_call.1} parent=31 // pred_check
          %p5504 = pneg %p103
        $region34: #{tpu_custom_call.1} parent=31 // pred_check_branch
          %5506 = sbr.rel (%p5504) target = $region36
        $region35: #{tpu_custom_call.1} parent=31 // pred_region
          %s5508 = ssub.s32 4096, 4096
          %5509 = vsyncadd %s5500, %s5508
          %s5510 = smul.addr %s17, 32
          %s5511 = smul.addr %s5510, 128
          %s5512 = scalar_lea.hbm %s3, %s5511
          %s5513 = sshll.u32 %s5503, 4
          %s5514 = int_to_ptr.vmem [resolvable:$true] %s5513
          %5519 = dma.vmem_to_hbm [thread:$0]  %s5514, 4096, %s5512, %s5500, 128, 128, 8
        $region36: #{tpu_custom_call.1} parent=31 // pred_fallthru
          _
      $region32: #{tpu_custom_call.1} parent=5 // pred_fallthru
        _
      %p5520 = scmp.le.s32.totalorder 2, %s12
      // Predicated region
      $region37: #{tpu_custom_call.1} parent=5 // pred_check
        %p5521 = pneg %p5520
      $region38: #{tpu_custom_call.1} parent=5 // pred_check_branch
        %5523 = sbr.rel (%p5521) target = $region40
      $region39: #{tpu_custom_call.1} parent=5 // pred_region
        %s5524 = ssub.s32 %s12, 2
        // Predicated region
        $region41: #{tpu_custom_call.1} parent=39 // pred_check
          %p5525 = pneg %p109
        $region42: #{tpu_custom_call.1} parent=39 // pred_check_branch
          %5527 = sbr.rel (%p5525) target = $region44
        $region43: #{tpu_custom_call.1} parent=39 // pred_region
          %s5528 = sand.u32 %s94, 1
          %s5529 = scalar_lea.sflag [#allocation3], %s5528
          %s5530 = sand.u32 %s94, 1
          %s5531 = smul.addr %s5530, 256
          %s5532 = scalar_lea.vmem [#allocation2], %s5531
          %5533 = dma.done %s5529, 4096
        $region44: #{tpu_custom_call.1} parent=39 // pred_fallthru
          _
      $region40: #{tpu_custom_call.1} parent=5 // pred_fallthru
        _
    $region6: #{tpu_custom_call.1} parent=1 // loop_footer
      %s16 = sadd.s32 1, %s12
    $region7: #{tpu_custom_call.1} parent=1 // loop_footer_branch
      %11 = sbr.rel target = $region3
    $region8: #{tpu_custom_call.1} parent=1 // loop_exit
      _
    %5534 = vsyncpa [#allocation3], 1
    %s5535 = scalar_lea.sflag [#allocation3], 1
    %5536 = vsyncpa %s5535, 1

</llo_original>
